<compile_context>
chip_gen: v5e
topology: v5e:2x2
jax: 0.10.0
libtpu: 0.0.40
codegen_flags: <defaults>
</compile_context>

<pallas_src>
import functools

import jax
import jax.numpy as jnp
from jax.experimental import pallas as pl
from jax.experimental.pallas import tpu as pltpu

FEAT = 2048          # ResNet-50 feature dim
HID = 1024           # fused hidden = 512 (policy) + 512 (value)
OUT_PAD = 128        # lane-dense padded output width
P1_ROWS = FEAT + 8   # weight rows + bias row, padded to sublane multiple
P2_ROWS = HID + 8


def _round_up(x, m):
    return (x + m - 1) // m * m


def _heads_kernel(feat_ref, p1_ref, p2_ref, out_ref, *, action_dim):
    x = feat_ref[...]                      # (TB, 2048)

    w1 = p1_ref[0:FEAT, :]                 # (2048, 1024)  = [W1p | W1v]
    b1 = p1_ref[FEAT:FEAT + 1, :]          # (1, 1024)     = [b1p | b1v]
    w2 = p2_ref[0:HID, :]                  # (1024, 128)   block-diag [W2p ; W2v], zero-padded
    b2 = p2_ref[HID:HID + 1, :]            # (1, 128)

    # fused trunk of both heads: Linear -> ReLU
    h = jnp.dot(x, w1, preferred_element_type=jnp.float32) + b1
    h = jnp.maximum(h, 0.0)                # (TB, 1024)

    # fused second layers: lanes [0, A) = policy logits, lane A = value, rest 0
    logits = jnp.dot(h, w2, preferred_element_type=jnp.float32) + b2   # (TB, 128)

    lane = jax.lax.broadcasted_iota(jnp.int32, logits.shape, 1)
    is_policy = lane < action_dim

    # masked, max-stabilized softmax over the policy lanes only
    m = jnp.max(jnp.where(is_policy, logits, -jnp.inf), axis=-1, keepdims=True)
    e = jnp.exp(jnp.where(is_policy, logits, -jnp.inf) - m)
    denom = jnp.sum(e, axis=-1, keepdims=True)
    policy = e * pl.reciprocal(denom, approx=False)

    # single unmasked 128-lane store: policy lanes, value lane, zeros elsewhere
    out_ref[...] = jnp.where(
        is_policy, policy, jnp.where(lane == action_dim, logits, 0.0)
    )


def pack_params(params, action_dim):
    """Pack the 8 head tensors into two (8,128)-aligned f32 buffers."""
    w1 = jnp.concatenate([params["w1p"], params["w1v"]], axis=1)       # (2048, 1024)
    b1 = jnp.concatenate([params["b1p"], params["b1v"]], axis=1)       # (1, 1024)
    p1 = jnp.zeros((P1_ROWS, HID), jnp.float32)
    p1 = p1.at[:FEAT, :].set(w1).at[FEAT, :].set(b1[0])

    w2 = jnp.zeros((HID, OUT_PAD), jnp.float32)
    w2 = w2.at[:512, :action_dim].set(params["w2p"])                   # policy block
    w2 = w2.at[512:, action_dim].set(params["w2v"][:, 0])              # value block
    b2 = jnp.zeros((OUT_PAD,), jnp.float32)
    b2 = b2.at[:action_dim].set(params["b2p"][0])
    b2 = b2.at[action_dim].set(params["b2v"][0, 0])
    p2 = jnp.zeros((P2_ROWS, OUT_PAD), jnp.float32)
    p2 = p2.at[:HID, :].set(w2).at[HID, :].set(b2)
    return p1, p2


def resnet_policy_value_heads(features, packed_p1, packed_p2, action_dim, *, tile_b=256):
    """features: (B, 2048) f32 -> (policy (B, action_dim), value (B, 1))."""
    B = features.shape[0]
    TB = min(tile_b, _round_up(B, 8))          # batch tile, multiple of 8 sublanes
    Bp = _round_up(B, TB)
    if Bp != B:
        features = jnp.pad(features, ((0, Bp - B), (0, 0)))

    grid = (Bp // TB,)
    out = pl.pallas_call(
        functools.partial(_heads_kernel, action_dim=action_dim),
        out_shape=jax.ShapeDtypeStruct((Bp, OUT_PAD), jnp.float32),
        grid=grid,
        in_specs=[
            pl.BlockSpec((TB, FEAT), lambda i: (i, 0)),        # activations: tiled over batch
            pl.BlockSpec((P1_ROWS, HID), lambda i: (0, 0)),    # weights: VMEM-resident
            pl.BlockSpec((P2_ROWS, OUT_PAD), lambda i: (0, 0)),
        ],
        out_specs=pl.BlockSpec((TB, OUT_PAD), lambda i: (i, 0)),
        compiler_params=pltpu.CompilerParams(
            dimension_semantics=("parallel",),                 # megacore on v7x
            vmem_limit_bytes=48 * 1024 * 1024,                 # fits v7x's 64 MiB physical
        ),
    )(features, packed_p1, packed_p2)

    policy = out[:B, :action_dim]
    value = out[:B, action_dim:action_dim + 1]
    return policy, value


def init_head_params(key, action_dim):
    """Deterministic synthetic head parameters (PyTorch Linear-style init).

    Weights stored (in_features, out_features), biases (1, out_features).
    """
    def linear(k, fan_in, fan_out):
        kw, kb = jax.random.split(k)
        s = 1.0 / jnp.sqrt(jnp.float32(fan_in))
        w = jax.random.uniform(kw, (fan_in, fan_out), jnp.float32, -s, s)
        b = jax.random.uniform(kb, (1, fan_out), jnp.float32, -s, s)
        return w, b

    k1, k2, k3, k4 = jax.random.split(key, 4)
    w1p, b1p = linear(k1, FEAT, 512)
    w2p, b2p = linear(k2, 512, action_dim)
    w1v, b1v = linear(k3, FEAT, 512)
    w2v, b2v = linear(k4, 512, 1)
    return dict(w1p=w1p, b1p=b1p, w2p=w2p, b2p=b2p,
                w1v=w1v, b1v=b1v, w2v=w2v, b2v=b2v)


def _reference(features, params):
    hp = jnp.maximum(
        jnp.dot(features, params["w1p"], precision=jax.lax.Precision.HIGHEST) + params["b1p"], 0.0)
    logits = jnp.dot(hp, params["w2p"], precision=jax.lax.Precision.HIGHEST) + params["b2p"]
    policy = jax.nn.softmax(logits, axis=-1)
    hv = jnp.maximum(
        jnp.dot(features, params["w1v"], precision=jax.lax.Precision.HIGHEST) + params["b1v"], 0.0)
    value = jnp.dot(hv, params["w2v"], precision=jax.lax.Precision.HIGHEST) + params["b2v"]
    return policy, value


if __name__ == "__main__":
    key = jax.random.PRNGKey(0)
    batch, action_dim = 2, 6

    kparams, kfeat = jax.random.split(key)
    params = init_head_params(kparams, action_dim)
    # Stand-in for ResNet-50 features (see TODO(synk) above).
    features = jax.random.normal(kfeat, (batch, FEAT), jnp.float32)

    p1, p2 = pack_params(params, action_dim)
    policy, value = resnet_policy_value_heads(features, p1, p2, action_dim)
    jax.block_until_ready((policy, value))

    ref_policy, ref_value = _reference(features, params)
    assert policy.shape == (batch, action_dim)
    assert value.shape == (batch, 1)
    assert jnp.allclose(policy, ref_policy, atol=1e-4, rtol=1e-4)
    assert jnp.allclose(value, ref_value, atol=1e-4, rtol=1e-4)
    assert jnp.allclose(jnp.sum(policy, axis=-1), 1.0, atol=1e-5)

    print("KERNEL_OK")
</pallas_src>

<mosaic_0001>
module attributes {stable_mosaic.version = 11 : i64} {
  func.func @_heads_kernel(%arg0: i32, %arg1: memref<8x2048xf32, #tpu.memory_space<vmem>>, %arg2: memref<2056x1024xf32, #tpu.memory_space<vmem>>, %arg3: memref<1032x128xf32, #tpu.memory_space<vmem>>, %arg4: memref<8x128xf32, #tpu.memory_space<vmem>>) attributes {dimension_semantics = [#tpu.dimension_semantics<parallel>], iteration_bounds = array<i64: 1>, scalar_prefetch = 0 : i64, scratch_operands = 0 : i64, tpu.core_type = #tpu.core_type<tc>, window_params = [{transform_indices = @transform_0, window_bounds = array<i64: 8, 2048>}, {pipeline_mode = #tpu.pipeline_mode<synchronous>, transform_indices = @transform_1, window_bounds = array<i64: 2056, 1024>}, {pipeline_mode = #tpu.pipeline_mode<synchronous>, transform_indices = @transform_2, window_bounds = array<i64: 1032, 128>}, {transform_indices = @transform_3, window_bounds = array<i64: 8, 128>}]} {
    %c0 = arith.constant 0 : index
    %c0_0 = arith.constant 0 : index
    %0 = vector.load %arg1[%c0, %c0_0] : memref<8x2048xf32, #tpu.memory_space<vmem>>, vector<8x2048xf32>
    %c0_1 = arith.constant 0 : index
    %c0_2 = arith.constant 0 : index
    %1 = vector.load %arg2[%c0_1, %c0_2] : memref<2056x1024xf32, #tpu.memory_space<vmem>>, vector<2048x1024xf32>
    %c2048 = arith.constant 2048 : index
    %c0_3 = arith.constant 0 : index
    %2 = vector.load %arg2[%c2048, %c0_3] : memref<2056x1024xf32, #tpu.memory_space<vmem>>, vector<1x1024xf32>
    %c0_4 = arith.constant 0 : index
    %c0_5 = arith.constant 0 : index
    %3 = vector.load %arg3[%c0_4, %c0_5] : memref<1032x128xf32, #tpu.memory_space<vmem>>, vector<1024x128xf32>
    %c1024 = arith.constant 1024 : index
    %c0_6 = arith.constant 0 : index
    %4 = vector.load %arg3[%c1024, %c0_6] : memref<1032x128xf32, #tpu.memory_space<vmem>>, vector<1x128xf32>
    %cst = arith.constant dense<0.000000e+00> : vector<8x1024xf32>
    %5 = tpu.matmul %0, %1, %cst {dimension_numbers = #tpu.dot_dimension_numbers<[1], [0], [0], [1], [0, 0, 1, 1], [], []>} : vector<8x2048xf32>, vector<2048x1024xf32>, vector<8x1024xf32> -> vector<8x1024xf32>
    %6 = vector.broadcast %2 : vector<1x1024xf32> to vector<8x1024xf32>
    %7 = arith.addf %5, %6 : vector<8x1024xf32>
    %cst_7 = arith.constant 0.000000e+00 : f32
    %8 = vector.broadcast %cst_7 : f32 to vector<8x1024xf32>
    %9 = arith.maximumf %7, %8 : vector<8x1024xf32>
    %cst_8 = arith.constant dense<0.000000e+00> : vector<8x128xf32>
    %10 = tpu.matmul %9, %3, %cst_8 {dimension_numbers = #tpu.dot_dimension_numbers<[1], [0], [0], [1], [0, 0, 1, 1], [], []>} : vector<8x1024xf32>, vector<1024x128xf32>, vector<8x128xf32> -> vector<8x128xf32>
    %11 = vector.broadcast %4 : vector<1x128xf32> to vector<8x128xf32>
    %12 = arith.addf %10, %11 : vector<8x128xf32>
    %13 = tpu.iota {dimensions = array<i32: 1>} : vector<8x128xi32>
    %c6_i32 = arith.constant 6 : i32
    %14 = vector.broadcast %c6_i32 : i32 to vector<8x128xi32>
    %15 = arith.cmpi slt, %13, %14 : vector<8x128xi32>
    %cst_9 = arith.constant 0xFF800000 : f32
    %16 = vector.broadcast %cst_9 : f32 to vector<8x128xf32>
    %17 = arith.select %15, %12, %16 : vector<8x128xi1>, vector<8x128xf32>
    %cst_10 = arith.constant dense<0xFF800000> : vector<8xf32>
    %18 = vector.multi_reduction <maximumf>, %17, %cst_10 [1] : vector<8x128xf32> to vector<8xf32>
    %19 = vector.shape_cast %18 : vector<8xf32> to vector<8x1xf32>
    %cst_11 = arith.constant 0xFF800000 : f32
    %20 = vector.broadcast %cst_11 : f32 to vector<8x128xf32>
    %21 = arith.select %15, %12, %20 : vector<8x128xi1>, vector<8x128xf32>
    %22 = vector.broadcast %19 : vector<8x1xf32> to vector<8x128xf32>
    %23 = arith.subf %21, %22 : vector<8x128xf32>
    %24 = math.exp %23 : vector<8x128xf32>
    %cst_12 = arith.constant dense<0.000000e+00> : vector<8xf32>
    %25 = vector.multi_reduction <add>, %24, %cst_12 [1] : vector<8x128xf32> to vector<8xf32>
    %26 = vector.shape_cast %25 : vector<8xf32> to vector<8x1xf32>
    %27 = tpu.reciprocal %26 : vector<8x1xf32> -> vector<8x1xf32>
    %28 = vector.broadcast %27 : vector<8x1xf32> to vector<8x128xf32>
    %29 = arith.mulf %24, %28 : vector<8x128xf32>
    %c6_i32_13 = arith.constant 6 : i32
    %30 = vector.broadcast %c6_i32_13 : i32 to vector<8x128xi32>
    %31 = arith.cmpi eq, %13, %30 : vector<8x128xi32>
    %cst_14 = arith.constant 0.000000e+00 : f32
    %32 = vector.broadcast %cst_14 : f32 to vector<8x128xf32>
    %33 = arith.select %31, %12, %32 : vector<8x128xi1>, vector<8x128xf32>
    %34 = arith.select %15, %29, %33 : vector<8x128xi1>, vector<8x128xf32>
    %c0_15 = arith.constant 0 : index
    %c0_16 = arith.constant 0 : index
    %35 = vector.load %arg4[%c0_15, %c0_16] : memref<8x128xf32, #tpu.memory_space<vmem>>, vector<8x128xf32>
    tpu.vector_store %arg4[%c0_15, %c0_16], %34 {strides = array<i32>} : memref<8x128xf32, #tpu.memory_space<vmem>>, vector<8x128xf32>,
    return
  }
  func.func @transform_0(%arg0: i32) -> (i32, i32) {
    %c0_i32 = arith.constant 0 : i32
    %c0_i32_0 = arith.constant 0 : i32
    return %arg0, %c0_i32 : i32, i32
  }
  func.func @transform_1(%arg0: i32) -> (i32, i32) {
    %c0_i32 = arith.constant 0 : i32
    %c0_i32_0 = arith.constant 0 : i32
    %c0_i32_1 = arith.constant 0 : i32
    return %c0_i32, %c0_i32_0 : i32, i32
  }
  func.func @transform_2(%arg0: i32) -> (i32, i32) {
    %c0_i32 = arith.constant 0 : i32
    %c0_i32_0 = arith.constant 0 : i32
    %c0_i32_1 = arith.constant 0 : i32
    return %c0_i32, %c0_i32_0 : i32, i32
  }
  func.func @transform_3(%arg0: i32) -> (i32, i32) {
    %c0_i32 = arith.constant 0 : i32
    %c0_i32_0 = arith.constant 0 : i32
    return %arg0, %c0_i32 : i32, i32
  }
}

</mosaic_0001>

<llo_original>
// kernel: tpu_custom_call.1
$region0: #{tpu_custom_call.1}
  #allocation0 [shape = 'u32[]', space=smem, size = 0x4, offset = 0x4, fixed_abs, tag = 'smem constant byte address 0x4 - core index']
  #allocation1 [shape = 'u32[72,128]{1,0:T(1,128)}', space=vmem, size = 0x9000, scoped, tag = 'internal scratch']
  %s0 = inlined_call_operand.hbm [shape: f32[8,2048], index: 0, kind: input, shape index: {}]
  %s1 = inlined_call_operand.hbm [shape: f32[2056,1024], index: 1, kind: input, shape index: {}]
  %s2 = inlined_call_operand.hbm [shape: f32[1032,128], index: 2, kind: input, shape index: {}]
  %s3 = inlined_call_operand.hbm [shape: f32[8,128], index: 3, kind: output, shape index: {}]
  %s4 = sld [smem:[#allocation0]]
  $region34: #{tpu_custom_call.1} parent=0
    _
  %s6 = ssub.s32 1, %s4
  %s7 = scalar_select 0, %s6, %s4
  $region1: #{tpu_custom_call.1} parent=0
    #allocation2 [shape = 'u8[65536]{0}', space=vmem, size = 0x10000, scoped, tag = 'input window, operand 0, single buffered']
    #allocation3 [shape = 's32[1]{0}', space=sflag, size = 0x4, scoped, tag = 'scoped memory for tpu_custom_call.1']
    #allocation4 [shape = 's32[1]{0}', space=sflag, size = 0x4, scoped, tag = 'scoped memory for tpu_custom_call.1']
    #allocation5 [shape = 'u8[8421376]{0}', space=vmem, size = 0x808000, scoped, tag = 'input window, operand 1, single buffered']
    #allocation6 [shape = 's32[1]{0}', space=sflag, size = 0x4, scoped, tag = 'scoped memory for tpu_custom_call.1']
    #allocation7 [shape = 'u8[528384]{0}', space=vmem, size = 0x81000, scoped, tag = 'input window, operand 2, single buffered']
    #allocation8 [shape = 'u8[4096]{0}', space=vmem, size = 0x1000, scoped, tag = 'output window, operand 0, single buffered']
    %8 = vsyncpa [#allocation3], 0
    %9 = vsyncpa [#allocation6], 0
    %10 = vsyncpa [#allocation4], 0
    // Predicated region
    $region2: #{tpu_custom_call.1} parent=1 // pred_check
      _
    $region3: #{tpu_custom_call.1} parent=1 // pred_check_branch
      %12 = sbr.rel (0) target = $region5
    $region4: #{tpu_custom_call.1} parent=1 // pred_region
      %14 = vsyncadd [#allocation3], 0
      %s16 = sshll.u32 %s0, 4
      %s17 = int_to_ptr.hbm [resolvable:$true] %s16
      %s18 = sshll.u32 [#allocation2], 4
      %s19 = int_to_ptr.vmem [resolvable:$true] %s18
      %21 = dma.hbm_to_vmem [thread:$0]  %s17, 2048, %s19, [#allocation3]
    $region5: #{tpu_custom_call.1} parent=1 // pred_fallthru
      _
    // Predicated region
    $region6: #{tpu_custom_call.1} parent=1 // pred_check
      _
    $region7: #{tpu_custom_call.1} parent=1 // pred_check_branch
      %23 = sbr.rel (0) target = $region9
    $region8: #{tpu_custom_call.1} parent=1 // pred_region
      %25 = vsyncadd [#allocation6], 0
      %s26 = sshll.u32 %s1, 4
      %s27 = int_to_ptr.hbm [resolvable:$true] %s26
      %s28 = sshll.u32 [#allocation5], 4
      %s29 = int_to_ptr.vmem [resolvable:$true] %s28
      %34 = dma.hbm_to_vmem [thread:$0]  %s27, 263168, %s29, [#allocation6], 1024, 1024, 64
    $region9: #{tpu_custom_call.1} parent=1 // pred_fallthru
      _
    // Predicated region
    $region10: #{tpu_custom_call.1} parent=1 // pred_check
      _
    $region11: #{tpu_custom_call.1} parent=1 // pred_check_branch
      %36 = sbr.rel (0) target = $region13
    $region12: #{tpu_custom_call.1} parent=1 // pred_region
      %38 = vsyncadd [#allocation6], 0
      %s39 = sshll.u32 %s2, 4
      %s40 = int_to_ptr.hbm [resolvable:$true] %s39
      %s41 = sshll.u32 [#allocation7], 4
      %s42 = int_to_ptr.vmem [resolvable:$true] %s41
      %47 = dma.hbm_to_vmem [thread:$0]  %s40, 16512, %s42, [#allocation6], 128, 128, 8
    $region13: #{tpu_custom_call.1} parent=1 // pred_fallthru
      _
    // Predicated region
    $region14: #{tpu_custom_call.1} parent=1 // pred_check
      _
    $region15: #{tpu_custom_call.1} parent=1 // pred_check_branch
      %49 = sbr.rel (0) target = $region17
    $region16: #{tpu_custom_call.1} parent=1 // pred_region
      %51 = dma.done [#allocation3], 2048
    $region17: #{tpu_custom_call.1} parent=1 // pred_fallthru
      _
    // Predicated region
    $region18: #{tpu_custom_call.1} parent=1 // pred_check
      _
    $region19: #{tpu_custom_call.1} parent=1 // pred_check_branch
      %53 = sbr.rel (0) target = $region21
    $region20: #{tpu_custom_call.1} parent=1 // pred_region
      %55 = dma.done [#allocation6], 263168
    $region21: #{tpu_custom_call.1} parent=1 // pred_fallthru
      _
    // Predicated region
    $region22: #{tpu_custom_call.1} parent=1 // pred_check
      _
    $region23: #{tpu_custom_call.1} parent=1 // pred_check_branch
      %57 = sbr.rel (0) target = $region25
    $region24: #{tpu_custom_call.1} parent=1 // pred_region
      %59 = dma.done [#allocation6], 16512
    $region25: #{tpu_custom_call.1} parent=1 // pred_fallthru
      _
    %v60 = vld [vmem:[#allocation2] sm:$0xff]
    %v61 = vld [vmem:[#allocation2 + $0x8] sm:$0xff]
    %v62 = vld [vmem:[#allocation2 + $0x10] sm:$0xff]
    %v63 = vld [vmem:[#allocation2 + $0x18] sm:$0xff]
    %v64 = vld [vmem:[#allocation2 + $0x20] sm:$0xff]
    %v65 = vld [vmem:[#allocation2 + $0x28] sm:$0xff]
    %v66 = vld [vmem:[#allocation2 + $0x30] sm:$0xff]
    %v67 = vld [vmem:[#allocation2 + $0x38] sm:$0xff]
    %v68 = vld [vmem:[#allocation2 + $0x40] sm:$0xff]
    %v69 = vld [vmem:[#allocation2 + $0x48] sm:$0xff]
    %v70 = vld [vmem:[#allocation2 + $0x50] sm:$0xff]
    %v71 = vld [vmem:[#allocation2 + $0x58] sm:$0xff]
    %v72 = vld [vmem:[#allocation2 + $0x60] sm:$0xff]
    %v73 = vld [vmem:[#allocation2 + $0x68] sm:$0xff]
    %v74 = vld [vmem:[#allocation2 + $0x70] sm:$0xff]
    %v75 = vld [vmem:[#allocation2 + $0x78] sm:$0xff]
    %v76 = vld [vmem:[#allocation5] sm:$0xff]
    %v77 = vld [vmem:[#allocation5 + $0x8] sm:$0xff]
    %v78 = vld [vmem:[#allocation5 + $0x10] sm:$0xff]
    %v79 = vld [vmem:[#allocation5 + $0x18] sm:$0xff]
    %v80 = vld [vmem:[#allocation5 + $0x20] sm:$0xff]
    %v81 = vld [vmem:[#allocation5 + $0x28] sm:$0xff]
    %v82 = vld [vmem:[#allocation5 + $0x30] sm:$0xff]
    %v83 = vld [vmem:[#allocation5 + $0x38] sm:$0xff]
    %v84 = vld [vmem:[#allocation5 + $0x40] sm:$0xff]
    %v85 = vld [vmem:[#allocation5 + $0x48] sm:$0xff]
    %v86 = vld [vmem:[#allocation5 + $0x50] sm:$0xff]
    %v87 = vld [vmem:[#allocation5 + $0x58] sm:$0xff]
    %v88 = vld [vmem:[#allocation5 + $0x60] sm:$0xff]
    %v89 = vld [vmem:[#allocation5 + $0x68] sm:$0xff]
    %v90 = vld [vmem:[#allocation5 + $0x70] sm:$0xff]
    %v91 = vld [vmem:[#allocation5 + $0x78] sm:$0xff]
    %v92 = vld [vmem:[#allocation5 + $0x80] sm:$0xff]
    %v93 = vld [vmem:[#allocation5 + $0x88] sm:$0xff]
    %v94 = vld [vmem:[#allocation5 + $0x90] sm:$0xff]
    %v95 = vld [vmem:[#allocation5 + $0x98] sm:$0xff]
    %v96 = vld [vmem:[#allocation5 + $0xa0] sm:$0xff]
    %v97 = vld [vmem:[#allocation5 + $0xa8] sm:$0xff]
    %v98 = vld [vmem:[#allocation5 + $0xb0] sm:$0xff]
    %v99 = vld [vmem:[#allocation5 + $0xb8] sm:$0xff]
    %v100 = vld [vmem:[#allocation5 + $0xc0] sm:$0xff]
    %v101 = vld [vmem:[#allocation5 + $0xc8] sm:$0xff]
    %v102 = vld [vmem:[#allocation5 + $0xd0] sm:$0xff]
    %v103 = vld [vmem:[#allocation5 + $0xd8] sm:$0xff]
    %v104 = vld [vmem:[#allocation5 + $0xe0] sm:$0xff]
    %v105 = vld [vmem:[#allocation5 + $0xe8] sm:$0xff]
    %v106 = vld [vmem:[#allocation5 + $0xf0] sm:$0xff]
    %v107 = vld [vmem:[#allocation5 + $0xf8] sm:$0xff]
    %v108 = vld [vmem:[#allocation5 + $0x100] sm:$0xff]
    %v109 = vld [vmem:[#allocation5 + $0x108] sm:$0xff]
    %v110 = vld [vmem:[#allocation5 + $0x110] sm:$0xff]
    %v111 = vld [vmem:[#allocation5 + $0x118] sm:$0xff]
    %v112 = vld [vmem:[#allocation5 + $0x120] sm:$0xff]
    %v113 = vld [vmem:[#allocation5 + $0x128] sm:$0xff]
    %v114 = vld [vmem:[#allocation5 + $0x130] sm:$0xff]
    %v115 = vld [vmem:[#allocation5 + $0x138] sm:$0xff]
    %v116 = vld [vmem:[#allocation5 + $0x140] sm:$0xff]
    %v117 = vld [vmem:[#allocation5 + $0x148] sm:$0xff]
    %v118 = vld [vmem:[#allocation5 + $0x150] sm:$0xff]
    %v119 = vld [vmem:[#allocation5 + $0x158] sm:$0xff]
    %v120 = vld [vmem:[#allocation5 + $0x160] sm:$0xff]
    %v121 = vld [vmem:[#allocation5 + $0x168] sm:$0xff]
    %v122 = vld [vmem:[#allocation5 + $0x170] sm:$0xff]
    %v123 = vld [vmem:[#allocation5 + $0x178] sm:$0xff]
    %v124 = vld [vmem:[#allocation5 + $0x180] sm:$0xff]
    %v125 = vld [vmem:[#allocation5 + $0x188] sm:$0xff]
    %v126 = vld [vmem:[#allocation5 + $0x190] sm:$0xff]
    %v127 = vld [vmem:[#allocation5 + $0x198] sm:$0xff]
    %v128 = vld [vmem:[#allocation5 + $0x1a0] sm:$0xff]
    %v129 = vld [vmem:[#allocation5 + $0x1a8] sm:$0xff]
    %v130 = vld [vmem:[#allocation5 + $0x1b0] sm:$0xff]
    %v131 = vld [vmem:[#allocation5 + $0x1b8] sm:$0xff]
    %v132 = vld [vmem:[#allocation5 + $0x1c0] sm:$0xff]
    %v133 = vld [vmem:[#allocation5 + $0x1c8] sm:$0xff]
    %v134 = vld [vmem:[#allocation5 + $0x1d0] sm:$0xff]
    %v135 = vld [vmem:[#allocation5 + $0x1d8] sm:$0xff]
    %v136 = vld [vmem:[#allocation5 + $0x1e0] sm:$0xff]
    %v137 = vld [vmem:[#allocation5 + $0x1e8] sm:$0xff]
    %v138 = vld [vmem:[#allocation5 + $0x1f0] sm:$0xff]
    %v139 = vld [vmem:[#allocation5 + $0x1f8] sm:$0xff]
    %v140 = vld [vmem:[#allocation5 + $0x200] sm:$0xff]
    %v141 = vld [vmem:[#allocation5 + $0x208] sm:$0xff]
    %v142 = vld [vmem:[#allocation5 + $0x210] sm:$0xff]
    %v143 = vld [vmem:[#allocation5 + $0x218] sm:$0xff]
    %v144 = vld [vmem:[#allocation5 + $0x220] sm:$0xff]
    %v145 = vld [vmem:[#allocation5 + $0x228] sm:$0xff]
    %v146 = vld [vmem:[#allocation5 + $0x230] sm:$0xff]
    %v147 = vld [vmem:[#allocation5 + $0x238] sm:$0xff]
    %v148 = vld [vmem:[#allocation5 + $0x240] sm:$0xff]
    %v149 = vld [vmem:[#allocation5 + $0x248] sm:$0xff]
    %v150 = vld [vmem:[#allocation5 + $0x250] sm:$0xff]
    %v151 = vld [vmem:[#allocation5 + $0x258] sm:$0xff]
    %v152 = vld [vmem:[#allocation5 + $0x260] sm:$0xff]
    %v153 = vld [vmem:[#allocation5 + $0x268] sm:$0xff]
    %v154 = vld [vmem:[#allocation5 + $0x270] sm:$0xff]
    %v155 = vld [vmem:[#allocation5 + $0x278] sm:$0xff]
    %v156 = vld [vmem:[#allocation5 + $0x280] sm:$0xff]
    %v157 = vld [vmem:[#allocation5 + $0x288] sm:$0xff]
    %v158 = vld [vmem:[#allocation5 + $0x290] sm:$0xff]
    %v159 = vld [vmem:[#allocation5 + $0x298] sm:$0xff]
    %v160 = vld [vmem:[#allocation5 + $0x2a0] sm:$0xff]
    %v161 = vld [vmem:[#allocation5 + $0x2a8] sm:$0xff]
    %v162 = vld [vmem:[#allocation5 + $0x2b0] sm:$0xff]
    %v163 = vld [vmem:[#allocation5 + $0x2b8] sm:$0xff]
    %v164 = vld [vmem:[#allocation5 + $0x2c0] sm:$0xff]
    %v165 = vld [vmem:[#allocation5 + $0x2c8] sm:$0xff]
    %v166 = vld [vmem:[#allocation5 + $0x2d0] sm:$0xff]
    %v167 = vld [vmem:[#allocation5 + $0x2d8] sm:$0xff]
    %v168 = vld [vmem:[#allocation5 + $0x2e0] sm:$0xff]
    %v169 = vld [vmem:[#allocation5 + $0x2e8] sm:$0xff]
    %v170 = vld [vmem:[#allocation5 + $0x2f0] sm:$0xff]
    %v171 = vld [vmem:[#allocation5 + $0x2f8] sm:$0xff]
    %v172 = vld [vmem:[#allocation5 + $0x300] sm:$0xff]
    %v173 = vld [vmem:[#allocation5 + $0x308] sm:$0xff]
    %v174 = vld [vmem:[#allocation5 + $0x310] sm:$0xff]
    %v175 = vld [vmem:[#allocation5 + $0x318] sm:$0xff]
    %v176 = vld [vmem:[#allocation5 + $0x320] sm:$0xff]
    %v177 = vld [vmem:[#allocation5 + $0x328] sm:$0xff]
    %v178 = vld [vmem:[#allocation5 + $0x330] sm:$0xff]
    %v179 = vld [vmem:[#allocation5 + $0x338] sm:$0xff]
    %v180 = vld [vmem:[#allocation5 + $0x340] sm:$0xff]
    %v181 = vld [vmem:[#allocation5 + $0x348] sm:$0xff]
    %v182 = vld [vmem:[#allocation5 + $0x350] sm:$0xff]
    %v183 = vld [vmem:[#allocation5 + $0x358] sm:$0xff]
    %v184 = vld [vmem:[#allocation5 + $0x360] sm:$0xff]
    %v185 = vld [vmem:[#allocation5 + $0x368] sm:$0xff]
    %v186 = vld [vmem:[#allocation5 + $0x370] sm:$0xff]
    %v187 = vld [vmem:[#allocation5 + $0x378] sm:$0xff]
    %v188 = vld [vmem:[#allocation5 + $0x380] sm:$0xff]
    %v189 = vld [vmem:[#allocation5 + $0x388] sm:$0xff]
    %v190 = vld [vmem:[#allocation5 + $0x390] sm:$0xff]
    %v191 = vld [vmem:[#allocation5 + $0x398] sm:$0xff]
    %v192 = vld [vmem:[#allocation5 + $0x3a0] sm:$0xff]
    %v193 = vld [vmem:[#allocation5 + $0x3a8] sm:$0xff]
    %v194 = vld [vmem:[#allocation5 + $0x3b0] sm:$0xff]
    %v195 = vld [vmem:[#allocation5 + $0x3b8] sm:$0xff]
    %v196 = vld [vmem:[#allocation5 + $0x3c0] sm:$0xff]
    %v197 = vld [vmem:[#allocation5 + $0x3c8] sm:$0xff]
    %v198 = vld [vmem:[#allocation5 + $0x3d0] sm:$0xff]
    %v199 = vld [vmem:[#allocation5 + $0x3d8] sm:$0xff]
    %v200 = vld [vmem:[#allocation5 + $0x3e0] sm:$0xff]
    %v201 = vld [vmem:[#allocation5 + $0x3e8] sm:$0xff]
    %v202 = vld [vmem:[#allocation5 + $0x3f0] sm:$0xff]
    %v203 = vld [vmem:[#allocation5 + $0x3f8] sm:$0xff]
    %v204 = vld [vmem:[#allocation5 + $0x400] sm:$0xff]
    %v205 = vld [vmem:[#allocation5 + $0x408] sm:$0xff]
    %v206 = vld [vmem:[#allocation5 + $0x410] sm:$0xff]
    %v207 = vld [vmem:[#allocation5 + $0x418] sm:$0xff]
    %v208 = vld [vmem:[#allocation5 + $0x420] sm:$0xff]
    %v209 = vld [vmem:[#allocation5 + $0x428] sm:$0xff]
    %v210 = vld [vmem:[#allocation5 + $0x430] sm:$0xff]
    %v211 = vld [vmem:[#allocation5 + $0x438] sm:$0xff]
    %v212 = vld [vmem:[#allocation5 + $0x440] sm:$0xff]
    %v213 = vld [vmem:[#allocation5 + $0x448] sm:$0xff]
    %v214 = vld [vmem:[#allocation5 + $0x450] sm:$0xff]
    %v215 = vld [vmem:[#allocation5 + $0x458] sm:$0xff]
    %v216 = vld [vmem:[#allocation5 + $0x460] sm:$0xff]
    %v217 = vld [vmem:[#allocation5 + $0x468] sm:$0xff]
    %v218 = vld [vmem:[#allocation5 + $0x470] sm:$0xff]
    %v219 = vld [vmem:[#allocation5 + $0x478] sm:$0xff]
    %v220 = vld [vmem:[#allocation5 + $0x480] sm:$0xff]
    %v221 = vld [vmem:[#allocation5 + $0x488] sm:$0xff]
    %v222 = vld [vmem:[#allocation5 + $0x490] sm:$0xff]
    %v223 = vld [vmem:[#allocation5 + $0x498] sm:$0xff]
    %v224 = vld [vmem:[#allocation5 + $0x4a0] sm:$0xff]
    %v225 = vld [vmem:[#allocation5 + $0x4a8] sm:$0xff]
    %v226 = vld [vmem:[#allocation5 + $0x4b0] sm:$0xff]
    %v227 = vld [vmem:[#allocation5 + $0x4b8] sm:$0xff]
    %v228 = vld [vmem:[#allocation5 + $0x4c0] sm:$0xff]
    %v229 = vld [vmem:[#allocation5 + $0x4c8] sm:$0xff]
    %v230 = vld [vmem:[#allocation5 + $0x4d0] sm:$0xff]
    %v231 = vld [vmem:[#allocation5 + $0x4d8] sm:$0xff]
    %v232 = vld [vmem:[#allocation5 + $0x4e0] sm:$0xff]
    %v233 = vld [vmem:[#allocation5 + $0x4e8] sm:$0xff]
    %v234 = vld [vmem:[#allocation5 + $0x4f0] sm:$0xff]
    %v235 = vld [vmem:[#allocation5 + $0x4f8] sm:$0xff]
    %v236 = vld [vmem:[#allocation5 + $0x500] sm:$0xff]
    %v237 = vld [vmem:[#allocation5 + $0x508] sm:$0xff]
    %v238 = vld [vmem:[#allocation5 + $0x510] sm:$0xff]
    %v239 = vld [vmem:[#allocation5 + $0x518] sm:$0xff]
    %v240 = vld [vmem:[#allocation5 + $0x520] sm:$0xff]
    %v241 = vld [vmem:[#allocation5 + $0x528] sm:$0xff]
    %v242 = vld [vmem:[#allocation5 + $0x530] sm:$0xff]
    %v243 = vld [vmem:[#allocation5 + $0x538] sm:$0xff]
    %v244 = vld [vmem:[#allocation5 + $0x540] sm:$0xff]
    %v245 = vld [vmem:[#allocation5 + $0x548] sm:$0xff]
    %v246 = vld [vmem:[#allocation5 + $0x550] sm:$0xff]
    %v247 = vld [vmem:[#allocation5 + $0x558] sm:$0xff]
    %v248 = vld [vmem:[#allocation5 + $0x560] sm:$0xff]
    %v249 = vld [vmem:[#allocation5 + $0x568] sm:$0xff]
    %v250 = vld [vmem:[#allocation5 + $0x570] sm:$0xff]
    %v251 = vld [vmem:[#allocation5 + $0x578] sm:$0xff]
    %v252 = vld [vmem:[#allocation5 + $0x580] sm:$0xff]
    %v253 = vld [vmem:[#allocation5 + $0x588] sm:$0xff]
    %v254 = vld [vmem:[#allocation5 + $0x590] sm:$0xff]
    %v255 = vld [vmem:[#allocation5 + $0x598] sm:$0xff]
    %v256 = vld [vmem:[#allocation5 + $0x5a0] sm:$0xff]
    %v257 = vld [vmem:[#allocation5 + $0x5a8] sm:$0xff]
    %v258 = vld [vmem:[#allocation5 + $0x5b0] sm:$0xff]
    %v259 = vld [vmem:[#allocation5 + $0x5b8] sm:$0xff]
    %v260 = vld [vmem:[#allocation5 + $0x5c0] sm:$0xff]
    %v261 = vld [vmem:[#allocation5 + $0x5c8] sm:$0xff]
    %v262 = vld [vmem:[#allocation5 + $0x5d0] sm:$0xff]
    %v263 = vld [vmem:[#allocation5 + $0x5d8] sm:$0xff]
    %v264 = vld [vmem:[#allocation5 + $0x5e0] sm:$0xff]
    %v265 = vld [vmem:[#allocation5 + $0x5e8] sm:$0xff]
    %v266 = vld [vmem:[#allocation5 + $0x5f0] sm:$0xff]
    %v267 = vld [vmem:[#allocation5 + $0x5f8] sm:$0xff]
    %v268 = vld [vmem:[#allocation5 + $0x600] sm:$0xff]
    %v269 = vld [vmem:[#allocation5 + $0x608] sm:$0xff]
    %v270 = vld [vmem:[#allocation5 + $0x610] sm:$0xff]
    %v271 = vld [vmem:[#allocation5 + $0x618] sm:$0xff]
    %v272 = vld [vmem:[#allocation5 + $0x620] sm:$0xff]
    %v273 = vld [vmem:[#allocation5 + $0x628] sm:$0xff]
    %v274 = vld [vmem:[#allocation5 + $0x630] sm:$0xff]
    %v275 = vld [vmem:[#allocation5 + $0x638] sm:$0xff]
    %v276 = vld [vmem:[#allocation5 + $0x640] sm:$0xff]
    %v277 = vld [vmem:[#allocation5 + $0x648] sm:$0xff]
    %v278 = vld [vmem:[#allocation5 + $0x650] sm:$0xff]
    %v279 = vld [vmem:[#allocation5 + $0x658] sm:$0xff]
    %v280 = vld [vmem:[#allocation5 + $0x660] sm:$0xff]
    %v281 = vld [vmem:[#allocation5 + $0x668] sm:$0xff]
    %v282 = vld [vmem:[#allocation5 + $0x670] sm:$0xff]
    %v283 = vld [vmem:[#allocation5 + $0x678] sm:$0xff]
    %v284 = vld [vmem:[#allocation5 + $0x680] sm:$0xff]
    %v285 = vld [vmem:[#allocation5 + $0x688] sm:$0xff]
    %v286 = vld [vmem:[#allocation5 + $0x690] sm:$0xff]
    %v287 = vld [vmem:[#allocation5 + $0x698] sm:$0xff]
    %v288 = vld [vmem:[#allocation5 + $0x6a0] sm:$0xff]
    %v289 = vld [vmem:[#allocation5 + $0x6a8] sm:$0xff]
    %v290 = vld [vmem:[#allocation5 + $0x6b0] sm:$0xff]
    %v291 = vld [vmem:[#allocation5 + $0x6b8] sm:$0xff]
    %v292 = vld [vmem:[#allocation5 + $0x6c0] sm:$0xff]
    %v293 = vld [vmem:[#allocation5 + $0x6c8] sm:$0xff]
    %v294 = vld [vmem:[#allocation5 + $0x6d0] sm:$0xff]
    %v295 = vld [vmem:[#allocation5 + $0x6d8] sm:$0xff]
    %v296 = vld [vmem:[#allocation5 + $0x6e0] sm:$0xff]
    %v297 = vld [vmem:[#allocation5 + $0x6e8] sm:$0xff]
    %v298 = vld [vmem:[#allocation5 + $0x6f0] sm:$0xff]
    %v299 = vld [vmem:[#allocation5 + $0x6f8] sm:$0xff]
    %v300 = vld [vmem:[#allocation5 + $0x700] sm:$0xff]
    %v301 = vld [vmem:[#allocation5 + $0x708] sm:$0xff]
    %v302 = vld [vmem:[#allocation5 + $0x710] sm:$0xff]
    %v303 = vld [vmem:[#allocation5 + $0x718] sm:$0xff]
    %v304 = vld [vmem:[#allocation5 + $0x720] sm:$0xff]
    %v305 = vld [vmem:[#allocation5 + $0x728] sm:$0xff]
    %v306 = vld [vmem:[#allocation5 + $0x730] sm:$0xff]
    %v307 = vld [vmem:[#allocation5 + $0x738] sm:$0xff]
    %v308 = vld [vmem:[#allocation5 + $0x740] sm:$0xff]
    %v309 = vld [vmem:[#allocation5 + $0x748] sm:$0xff]
    %v310 = vld [vmem:[#allocation5 + $0x750] sm:$0xff]
    %v311 = vld [vmem:[#allocation5 + $0x758] sm:$0xff]
    %v312 = vld [vmem:[#allocation5 + $0x760] sm:$0xff]
    %v313 = vld [vmem:[#allocation5 + $0x768] sm:$0xff]
    %v314 = vld [vmem:[#allocation5 + $0x770] sm:$0xff]
    %v315 = vld [vmem:[#allocation5 + $0x778] sm:$0xff]
    %v316 = vld [vmem:[#allocation5 + $0x780] sm:$0xff]
    %v317 = vld [vmem:[#allocation5 + $0x788] sm:$0xff]
    %v318 = vld [vmem:[#allocation5 + $0x790] sm:$0xff]
    %v319 = vld [vmem:[#allocation5 + $0x798] sm:$0xff]
    %v320 = vld [vmem:[#allocation5 + $0x7a0] sm:$0xff]
    %v321 = vld [vmem:[#allocation5 + $0x7a8] sm:$0xff]
    %v322 = vld [vmem:[#allocation5 + $0x7b0] sm:$0xff]
    %v323 = vld [vmem:[#allocation5 + $0x7b8] sm:$0xff]
    %v324 = vld [vmem:[#allocation5 + $0x7c0] sm:$0xff]
    %v325 = vld [vmem:[#allocation5 + $0x7c8] sm:$0xff]
    %v326 = vld [vmem:[#allocation5 + $0x7d0] sm:$0xff]
    %v327 = vld [vmem:[#allocation5 + $0x7d8] sm:$0xff]
    %v328 = vld [vmem:[#allocation5 + $0x7e0] sm:$0xff]
    %v329 = vld [vmem:[#allocation5 + $0x7e8] sm:$0xff]
    %v330 = vld [vmem:[#allocation5 + $0x7f0] sm:$0xff]
    %v331 = vld [vmem:[#allocation5 + $0x7f8] sm:$0xff]
    %v332 = vld [vmem:[#allocation5 + $0x800] sm:$0xff]
    %v333 = vld [vmem:[#allocation5 + $0x808] sm:$0xff]
    %v334 = vld [vmem:[#allocation5 + $0x810] sm:$0xff]
    %v335 = vld [vmem:[#allocation5 + $0x818] sm:$0xff]
    %v336 = vld [vmem:[#allocation5 + $0x820] sm:$0xff]
    %v337 = vld [vmem:[#allocation5 + $0x828] sm:$0xff]
    %v338 = vld [vmem:[#allocation5 + $0x830] sm:$0xff]
    %v339 = vld [vmem:[#allocation5 + $0x838] sm:$0xff]
    %v340 = vld [vmem:[#allocation5 + $0x840] sm:$0xff]
    %v341 = vld [vmem:[#allocation5 + $0x848] sm:$0xff]
    %v342 = vld [vmem:[#allocation5 + $0x850] sm:$0xff]
    %v343 = vld [vmem:[#allocation5 + $0x858] sm:$0xff]
    %v344 = vld [vmem:[#allocation5 + $0x860] sm:$0xff]
    %v345 = vld [vmem:[#allocation5 + $0x868] sm:$0xff]
    %v346 = vld [vmem:[#allocation5 + $0x870] sm:$0xff]
    %v347 = vld [vmem:[#allocation5 + $0x878] sm:$0xff]
    %v348 = vld [vmem:[#allocation5 + $0x880] sm:$0xff]
    %v349 = vld [vmem:[#allocation5 + $0x888] sm:$0xff]
    %v350 = vld [vmem:[#allocation5 + $0x890] sm:$0xff]
    %v351 = vld [vmem:[#allocation5 + $0x898] sm:$0xff]
    %v352 = vld [vmem:[#allocation5 + $0x8a0] sm:$0xff]
    %v353 = vld [vmem:[#allocation5 + $0x8a8] sm:$0xff]
    %v354 = vld [vmem:[#allocation5 + $0x8b0] sm:$0xff]
    %v355 = vld [vmem:[#allocation5 + $0x8b8] sm:$0xff]
    %v356 = vld [vmem:[#allocation5 + $0x8c0] sm:$0xff]
    %v357 = vld [vmem:[#allocation5 + $0x8c8] sm:$0xff]
    %v358 = vld [vmem:[#allocation5 + $0x8d0] sm:$0xff]
    %v359 = vld [vmem:[#allocation5 + $0x8d8] sm:$0xff]
    %v360 = vld [vmem:[#allocation5 + $0x8e0] sm:$0xff]
    %v361 = vld [vmem:[#allocation5 + $0x8e8] sm:$0xff]
    %v362 = vld [vmem:[#allocation5 + $0x8f0] sm:$0xff]
    %v363 = vld [vmem:[#allocation5 + $0x8f8] sm:$0xff]
    %v364 = vld [vmem:[#allocation5 + $0x900] sm:$0xff]
    %v365 = vld [vmem:[#allocation5 + $0x908] sm:$0xff]
    %v366 = vld [vmem:[#allocation5 + $0x910] sm:$0xff]
    %v367 = vld [vmem:[#allocation5 + $0x918] sm:$0xff]
    %v368 = vld [vmem:[#allocation5 + $0x920] sm:$0xff]
    %v369 = vld [vmem:[#allocation5 + $0x928] sm:$0xff]
    %v370 = vld [vmem:[#allocation5 + $0x930] sm:$0xff]
    %v371 = vld [vmem:[#allocation5 + $0x938] sm:$0xff]
    %v372 = vld [vmem:[#allocation5 + $0x940] sm:$0xff]
    %v373 = vld [vmem:[#allocation5 + $0x948] sm:$0xff]
    %v374 = vld [vmem:[#allocation5 + $0x950] sm:$0xff]
    %v375 = vld [vmem:[#allocation5 + $0x958] sm:$0xff]
    %v376 = vld [vmem:[#allocation5 + $0x960] sm:$0xff]
    %v377 = vld [vmem:[#allocation5 + $0x968] sm:$0xff]
    %v378 = vld [vmem:[#allocation5 + $0x970] sm:$0xff]
    %v379 = vld [vmem:[#allocation5 + $0x978] sm:$0xff]
    %v380 = vld [vmem:[#allocation5 + $0x980] sm:$0xff]
    %v381 = vld [vmem:[#allocation5 + $0x988] sm:$0xff]
    %v382 = vld [vmem:[#allocation5 + $0x990] sm:$0xff]
    %v383 = vld [vmem:[#allocation5 + $0x998] sm:$0xff]
    %v384 = vld [vmem:[#allocation5 + $0x9a0] sm:$0xff]
    %v385 = vld [vmem:[#allocation5 + $0x9a8] sm:$0xff]
    %v386 = vld [vmem:[#allocation5 + $0x9b0] sm:$0xff]
    %v387 = vld [vmem:[#allocation5 + $0x9b8] sm:$0xff]
    %v388 = vld [vmem:[#allocation5 + $0x9c0] sm:$0xff]
    %v389 = vld [vmem:[#allocation5 + $0x9c8] sm:$0xff]
    %v390 = vld [vmem:[#allocation5 + $0x9d0] sm:$0xff]
    %v391 = vld [vmem:[#allocation5 + $0x9d8] sm:$0xff]
    %v392 = vld [vmem:[#allocation5 + $0x9e0] sm:$0xff]
    %v393 = vld [vmem:[#allocation5 + $0x9e8] sm:$0xff]
    %v394 = vld [vmem:[#allocation5 + $0x9f0] sm:$0xff]
    %v395 = vld [vmem:[#allocation5 + $0x9f8] sm:$0xff]
    %v396 = vld [vmem:[#allocation5 + $0xa00] sm:$0xff]
    %v397 = vld [vmem:[#allocation5 + $0xa08] sm:$0xff]
    %v398 = vld [vmem:[#allocation5 + $0xa10] sm:$0xff]
    %v399 = vld [vmem:[#allocation5 + $0xa18] sm:$0xff]
    %v400 = vld [vmem:[#allocation5 + $0xa20] sm:$0xff]
    %v401 = vld [vmem:[#allocation5 + $0xa28] sm:$0xff]
    %v402 = vld [vmem:[#allocation5 + $0xa30] sm:$0xff]
    %v403 = vld [vmem:[#allocation5 + $0xa38] sm:$0xff]
    %v404 = vld [vmem:[#allocation5 + $0xa40] sm:$0xff]
    %v405 = vld [vmem:[#allocation5 + $0xa48] sm:$0xff]
    %v406 = vld [vmem:[#allocation5 + $0xa50] sm:$0xff]
    %v407 = vld [vmem:[#allocation5 + $0xa58] sm:$0xff]
    %v408 = vld [vmem:[#allocation5 + $0xa60] sm:$0xff]
    %v409 = vld [vmem:[#allocation5 + $0xa68] sm:$0xff]
    %v410 = vld [vmem:[#allocation5 + $0xa70] sm:$0xff]
    %v411 = vld [vmem:[#allocation5 + $0xa78] sm:$0xff]
    %v412 = vld [vmem:[#allocation5 + $0xa80] sm:$0xff]
    %v413 = vld [vmem:[#allocation5 + $0xa88] sm:$0xff]
    %v414 = vld [vmem:[#allocation5 + $0xa90] sm:$0xff]
    %v415 = vld [vmem:[#allocation5 + $0xa98] sm:$0xff]
    %v416 = vld [vmem:[#allocation5 + $0xaa0] sm:$0xff]
    %v417 = vld [vmem:[#allocation5 + $0xaa8] sm:$0xff]
    %v418 = vld [vmem:[#allocation5 + $0xab0] sm:$0xff]
    %v419 = vld [vmem:[#allocation5 + $0xab8] sm:$0xff]
    %v420 = vld [vmem:[#allocation5 + $0xac0] sm:$0xff]
    %v421 = vld [vmem:[#allocation5 + $0xac8] sm:$0xff]
    %v422 = vld [vmem:[#allocation5 + $0xad0] sm:$0xff]
    %v423 = vld [vmem:[#allocation5 + $0xad8] sm:$0xff]
    %v424 = vld [vmem:[#allocation5 + $0xae0] sm:$0xff]
    %v425 = vld [vmem:[#allocation5 + $0xae8] sm:$0xff]
    %v426 = vld [vmem:[#allocation5 + $0xaf0] sm:$0xff]
    %v427 = vld [vmem:[#allocation5 + $0xaf8] sm:$0xff]
    %v428 = vld [vmem:[#allocation5 + $0xb00] sm:$0xff]
    %v429 = vld [vmem:[#allocation5 + $0xb08] sm:$0xff]
    %v430 = vld [vmem:[#allocation5 + $0xb10] sm:$0xff]
    %v431 = vld [vmem:[#allocation5 + $0xb18] sm:$0xff]
    %v432 = vld [vmem:[#allocation5 + $0xb20] sm:$0xff]
    %v433 = vld [vmem:[#allocation5 + $0xb28] sm:$0xff]
    %v434 = vld [vmem:[#allocation5 + $0xb30] sm:$0xff]
    %v435 = vld [vmem:[#allocation5 + $0xb38] sm:$0xff]
    %v436 = vld [vmem:[#allocation5 + $0xb40] sm:$0xff]
    %v437 = vld [vmem:[#allocation5 + $0xb48] sm:$0xff]
    %v438 = vld [vmem:[#allocation5 + $0xb50] sm:$0xff]
    %v439 = vld [vmem:[#allocation5 + $0xb58] sm:$0xff]
    %v440 = vld [vmem:[#allocation5 + $0xb60] sm:$0xff]
    %v441 = vld [vmem:[#allocation5 + $0xb68] sm:$0xff]
    %v442 = vld [vmem:[#allocation5 + $0xb70] sm:$0xff]
    %v443 = vld [vmem:[#allocation5 + $0xb78] sm:$0xff]
    %v444 = vld [vmem:[#allocation5 + $0xb80] sm:$0xff]
    %v445 = vld [vmem:[#allocation5 + $0xb88] sm:$0xff]
    %v446 = vld [vmem:[#allocation5 + $0xb90] sm:$0xff]
    %v447 = vld [vmem:[#allocation5 + $0xb98] sm:$0xff]
    %v448 = vld [vmem:[#allocation5 + $0xba0] sm:$0xff]
    %v449 = vld [vmem:[#allocation5 + $0xba8] sm:$0xff]
    %v450 = vld [vmem:[#allocation5 + $0xbb0] sm:$0xff]
    %v451 = vld [vmem:[#allocation5 + $0xbb8] sm:$0xff]
    %v452 = vld [vmem:[#allocation5 + $0xbc0] sm:$0xff]
    %v453 = vld [vmem:[#allocation5 + $0xbc8] sm:$0xff]
    %v454 = vld [vmem:[#allocation5 + $0xbd0] sm:$0xff]
    %v455 = vld [vmem:[#allocation5 + $0xbd8] sm:$0xff]
    %v456 = vld [vmem:[#allocation5 + $0xbe0] sm:$0xff]
    %v457 = vld [vmem:[#allocation5 + $0xbe8] sm:$0xff]
    %v458 = vld [vmem:[#allocation5 + $0xbf0] sm:$0xff]
    %v459 = vld [vmem:[#allocation5 + $0xbf8] sm:$0xff]
    %v460 = vld [vmem:[#allocation5 + $0xc00] sm:$0xff]
    %v461 = vld [vmem:[#allocation5 + $0xc08] sm:$0xff]
    %v462 = vld [vmem:[#allocation5 + $0xc10] sm:$0xff]
    %v463 = vld [vmem:[#allocation5 + $0xc18] sm:$0xff]
    %v464 = vld [vmem:[#allocation5 + $0xc20] sm:$0xff]
    %v465 = vld [vmem:[#allocation5 + $0xc28] sm:$0xff]
    %v466 = vld [vmem:[#allocation5 + $0xc30] sm:$0xff]
    %v467 = vld [vmem:[#allocation5 + $0xc38] sm:$0xff]
    %v468 = vld [vmem:[#allocation5 + $0xc40] sm:$0xff]
    %v469 = vld [vmem:[#allocation5 + $0xc48] sm:$0xff]
    %v470 = vld [vmem:[#allocation5 + $0xc50] sm:$0xff]
    %v471 = vld [vmem:[#allocation5 + $0xc58] sm:$0xff]
    %v472 = vld [vmem:[#allocation5 + $0xc60] sm:$0xff]
    %v473 = vld [vmem:[#allocation5 + $0xc68] sm:$0xff]
    %v474 = vld [vmem:[#allocation5 + $0xc70] sm:$0xff]
    %v475 = vld [vmem:[#allocation5 + $0xc78] sm:$0xff]
    %v476 = vld [vmem:[#allocation5 + $0xc80] sm:$0xff]
    %v477 = vld [vmem:[#allocation5 + $0xc88] sm:$0xff]
    %v478 = vld [vmem:[#allocation5 + $0xc90] sm:$0xff]
    %v479 = vld [vmem:[#allocation5 + $0xc98] sm:$0xff]
    %v480 = vld [vmem:[#allocation5 + $0xca0] sm:$0xff]
    %v481 = vld [vmem:[#allocation5 + $0xca8] sm:$0xff]
    %v482 = vld [vmem:[#allocation5 + $0xcb0] sm:$0xff]
    %v483 = vld [vmem:[#allocation5 + $0xcb8] sm:$0xff]
    %v484 = vld [vmem:[#allocation5 + $0xcc0] sm:$0xff]
    %v485 = vld [vmem:[#allocation5 + $0xcc8] sm:$0xff]
    %v486 = vld [vmem:[#allocation5 + $0xcd0] sm:$0xff]
    %v487 = vld [vmem:[#allocation5 + $0xcd8] sm:$0xff]
    %v488 = vld [vmem:[#allocation5 + $0xce0] sm:$0xff]
    %v489 = vld [vmem:[#allocation5 + $0xce8] sm:$0xff]
    %v490 = vld [vmem:[#allocation5 + $0xcf0] sm:$0xff]
    %v491 = vld [vmem:[#allocation5 + $0xcf8] sm:$0xff]
    %v492 = vld [vmem:[#allocation5 + $0xd00] sm:$0xff]
    %v493 = vld [vmem:[#allocation5 + $0xd08] sm:$0xff]
    %v494 = vld [vmem:[#allocation5 + $0xd10] sm:$0xff]
    %v495 = vld [vmem:[#allocation5 + $0xd18] sm:$0xff]
    %v496 = vld [vmem:[#allocation5 + $0xd20] sm:$0xff]
    %v497 = vld [vmem:[#allocation5 + $0xd28] sm:$0xff]
    %v498 = vld [vmem:[#allocation5 + $0xd30] sm:$0xff]
    %v499 = vld [vmem:[#allocation5 + $0xd38] sm:$0xff]
    %v500 = vld [vmem:[#allocation5 + $0xd40] sm:$0xff]
    %v501 = vld [vmem:[#allocation5 + $0xd48] sm:$0xff]
    %v502 = vld [vmem:[#allocation5 + $0xd50] sm:$0xff]
    %v503 = vld [vmem:[#allocation5 + $0xd58] sm:$0xff]
    %v504 = vld [vmem:[#allocation5 + $0xd60] sm:$0xff]
    %v505 = vld [vmem:[#allocation5 + $0xd68] sm:$0xff]
    %v506 = vld [vmem:[#allocation5 + $0xd70] sm:$0xff]
    %v507 = vld [vmem:[#allocation5 + $0xd78] sm:$0xff]
    %v508 = vld [vmem:[#allocation5 + $0xd80] sm:$0xff]
    %v509 = vld [vmem:[#allocation5 + $0xd88] sm:$0xff]
    %v510 = vld [vmem:[#allocation5 + $0xd90] sm:$0xff]
    %v511 = vld [vmem:[#allocation5 + $0xd98] sm:$0xff]
    %v512 = vld [vmem:[#allocation5 + $0xda0] sm:$0xff]
    %v513 = vld [vmem:[#allocation5 + $0xda8] sm:$0xff]
    %v514 = vld [vmem:[#allocation5 + $0xdb0] sm:$0xff]
    %v515 = vld [vmem:[#allocation5 + $0xdb8] sm:$0xff]
    %v516 = vld [vmem:[#allocation5 + $0xdc0] sm:$0xff]
    %v517 = vld [vmem:[#allocation5 + $0xdc8] sm:$0xff]
    %v518 = vld [vmem:[#allocation5 + $0xdd0] sm:$0xff]
    %v519 = vld [vmem:[#allocation5 + $0xdd8] sm:$0xff]
    %v520 = vld [vmem:[#allocation5 + $0xde0] sm:$0xff]
    %v521 = vld [vmem:[#allocation5 + $0xde8] sm:$0xff]
    %v522 = vld [vmem:[#allocation5 + $0xdf0] sm:$0xff]
    %v523 = vld [vmem:[#allocation5 + $0xdf8] sm:$0xff]
    %v524 = vld [vmem:[#allocation5 + $0xe00] sm:$0xff]
    %v525 = vld [vmem:[#allocation5 + $0xe08] sm:$0xff]
    %v526 = vld [vmem:[#allocation5 + $0xe10] sm:$0xff]
    %v527 = vld [vmem:[#allocation5 + $0xe18] sm:$0xff]
    %v528 = vld [vmem:[#allocation5 + $0xe20] sm:$0xff]
    %v529 = vld [vmem:[#allocation5 + $0xe28] sm:$0xff]
    %v530 = vld [vmem:[#allocation5 + $0xe30] sm:$0xff]
    %v531 = vld [vmem:[#allocation5 + $0xe38] sm:$0xff]
    %v532 = vld [vmem:[#allocation5 + $0xe40] sm:$0xff]
    %v533 = vld [vmem:[#allocation5 + $0xe48] sm:$0xff]
    %v534 = vld [vmem:[#allocation5 + $0xe50] sm:$0xff]
    %v535 = vld [vmem:[#allocation5 + $0xe58] sm:$0xff]
    %v536 = vld [vmem:[#allocation5 + $0xe60] sm:$0xff]
    %v537 = vld [vmem:[#allocation5 + $0xe68] sm:$0xff]
    %v538 = vld [vmem:[#allocation5 + $0xe70] sm:$0xff]
    %v539 = vld [vmem:[#allocation5 + $0xe78] sm:$0xff]
    %v540 = vld [vmem:[#allocation5 + $0xe80] sm:$0xff]
    %v541 = vld [vmem:[#allocation5 + $0xe88] sm:$0xff]
    %v542 = vld [vmem:[#allocation5 + $0xe90] sm:$0xff]
    %v543 = vld [vmem:[#allocation5 + $0xe98] sm:$0xff]
    %v544 = vld [vmem:[#allocation5 + $0xea0] sm:$0xff]
    %v545 = vld [vmem:[#allocation5 + $0xea8] sm:$0xff]
    %v546 = vld [vmem:[#allocation5 + $0xeb0] sm:$0xff]
    %v547 = vld [vmem:[#allocation5 + $0xeb8] sm:$0xff]
    %v548 = vld [vmem:[#allocation5 + $0xec0] sm:$0xff]
    %v549 = vld [vmem:[#allocation5 + $0xec8] sm:$0xff]
    %v550 = vld [vmem:[#allocation5 + $0xed0] sm:$0xff]
    %v551 = vld [vmem:[#allocation5 + $0xed8] sm:$0xff]
    %v552 = vld [vmem:[#allocation5 + $0xee0] sm:$0xff]
    %v553 = vld [vmem:[#allocation5 + $0xee8] sm:$0xff]
    %v554 = vld [vmem:[#allocation5 + $0xef0] sm:$0xff]
    %v555 = vld [vmem:[#allocation5 + $0xef8] sm:$0xff]
    %v556 = vld [vmem:[#allocation5 + $0xf00] sm:$0xff]
    %v557 = vld [vmem:[#allocation5 + $0xf08] sm:$0xff]
    %v558 = vld [vmem:[#allocation5 + $0xf10] sm:$0xff]
    %v559 = vld [vmem:[#allocation5 + $0xf18] sm:$0xff]
    %v560 = vld [vmem:[#allocation5 + $0xf20] sm:$0xff]
    %v561 = vld [vmem:[#allocation5 + $0xf28] sm:$0xff]
    %v562 = vld [vmem:[#allocation5 + $0xf30] sm:$0xff]
    %v563 = vld [vmem:[#allocation5 + $0xf38] sm:$0xff]
    %v564 = vld [vmem:[#allocation5 + $0xf40] sm:$0xff]
    %v565 = vld [vmem:[#allocation5 + $0xf48] sm:$0xff]
    %v566 = vld [vmem:[#allocation5 + $0xf50] sm:$0xff]
    %v567 = vld [vmem:[#allocation5 + $0xf58] sm:$0xff]
    %v568 = vld [vmem:[#allocation5 + $0xf60] sm:$0xff]
    %v569 = vld [vmem:[#allocation5 + $0xf68] sm:$0xff]
    %v570 = vld [vmem:[#allocation5 + $0xf70] sm:$0xff]
    %v571 = vld [vmem:[#allocation5 + $0xf78] sm:$0xff]
    %v572 = vld [vmem:[#allocation5 + $0xf80] sm:$0xff]
    %v573 = vld [vmem:[#allocation5 + $0xf88] sm:$0xff]
    %v574 = vld [vmem:[#allocation5 + $0xf90] sm:$0xff]
    %v575 = vld [vmem:[#allocation5 + $0xf98] sm:$0xff]
    %v576 = vld [vmem:[#allocation5 + $0xfa0] sm:$0xff]
    %v577 = vld [vmem:[#allocation5 + $0xfa8] sm:$0xff]
    %v578 = vld [vmem:[#allocation5 + $0xfb0] sm:$0xff]
    %v579 = vld [vmem:[#allocation5 + $0xfb8] sm:$0xff]
    %v580 = vld [vmem:[#allocation5 + $0xfc0] sm:$0xff]
    %v581 = vld [vmem:[#allocation5 + $0xfc8] sm:$0xff]
    %v582 = vld [vmem:[#allocation5 + $0xfd0] sm:$0xff]
    %v583 = vld [vmem:[#allocation5 + $0xfd8] sm:$0xff]
    %v584 = vld [vmem:[#allocation5 + $0xfe0] sm:$0xff]
    %v585 = vld [vmem:[#allocation5 + $0xfe8] sm:$0xff]
    %v586 = vld [vmem:[#allocation5 + $0xff0] sm:$0xff]
    %v587 = vld [vmem:[#allocation5 + $0xff8] sm:$0xff]
    %v588 = vld [vmem:[#allocation5 + $0x1000] sm:$0xff]
    %v589 = vld [vmem:[#allocation5 + $0x1008] sm:$0xff]
    %v590 = vld [vmem:[#allocation5 + $0x1010] sm:$0xff]
    %v591 = vld [vmem:[#allocation5 + $0x1018] sm:$0xff]
    %v592 = vld [vmem:[#allocation5 + $0x1020] sm:$0xff]
    %v593 = vld [vmem:[#allocation5 + $0x1028] sm:$0xff]
    %v594 = vld [vmem:[#allocation5 + $0x1030] sm:$0xff]
    %v595 = vld [vmem:[#allocation5 + $0x1038] sm:$0xff]
    %v596 = vld [vmem:[#allocation5 + $0x1040] sm:$0xff]
    %v597 = vld [vmem:[#allocation5 + $0x1048] sm:$0xff]
    %v598 = vld [vmem:[#allocation5 + $0x1050] sm:$0xff]
    %v599 = vld [vmem:[#allocation5 + $0x1058] sm:$0xff]
    %v600 = vld [vmem:[#allocation5 + $0x1060] sm:$0xff]
    %v601 = vld [vmem:[#allocation5 + $0x1068] sm:$0xff]
    %v602 = vld [vmem:[#allocation5 + $0x1070] sm:$0xff]
    %v603 = vld [vmem:[#allocation5 + $0x1078] sm:$0xff]
    %v604 = vld [vmem:[#allocation5 + $0x1080] sm:$0xff]
    %v605 = vld [vmem:[#allocation5 + $0x1088] sm:$0xff]
    %v606 = vld [vmem:[#allocation5 + $0x1090] sm:$0xff]
    %v607 = vld [vmem:[#allocation5 + $0x1098] sm:$0xff]
    %v608 = vld [vmem:[#allocation5 + $0x10a0] sm:$0xff]
    %v609 = vld [vmem:[#allocation5 + $0x10a8] sm:$0xff]
    %v610 = vld [vmem:[#allocation5 + $0x10b0] sm:$0xff]
    %v611 = vld [vmem:[#allocation5 + $0x10b8] sm:$0xff]
    %v612 = vld [vmem:[#allocation5 + $0x10c0] sm:$0xff]
    %v613 = vld [vmem:[#allocation5 + $0x10c8] sm:$0xff]
    %v614 = vld [vmem:[#allocation5 + $0x10d0] sm:$0xff]
    %v615 = vld [vmem:[#allocation5 + $0x10d8] sm:$0xff]
    %v616 = vld [vmem:[#allocation5 + $0x10e0] sm:$0xff]
    %v617 = vld [vmem:[#allocation5 + $0x10e8] sm:$0xff]
    %v618 = vld [vmem:[#allocation5 + $0x10f0] sm:$0xff]
    %v619 = vld [vmem:[#allocation5 + $0x10f8] sm:$0xff]
    %v620 = vld [vmem:[#allocation5 + $0x1100] sm:$0xff]
    %v621 = vld [vmem:[#allocation5 + $0x1108] sm:$0xff]
    %v622 = vld [vmem:[#allocation5 + $0x1110] sm:$0xff]
    %v623 = vld [vmem:[#allocation5 + $0x1118] sm:$0xff]
    %v624 = vld [vmem:[#allocation5 + $0x1120] sm:$0xff]
    %v625 = vld [vmem:[#allocation5 + $0x1128] sm:$0xff]
    %v626 = vld [vmem:[#allocation5 + $0x1130] sm:$0xff]
    %v627 = vld [vmem:[#allocation5 + $0x1138] sm:$0xff]
    %v628 = vld [vmem:[#allocation5 + $0x1140] sm:$0xff]
    %v629 = vld [vmem:[#allocation5 + $0x1148] sm:$0xff]
    %v630 = vld [vmem:[#allocation5 + $0x1150] sm:$0xff]
    %v631 = vld [vmem:[#allocation5 + $0x1158] sm:$0xff]
    %v632 = vld [vmem:[#allocation5 + $0x1160] sm:$0xff]
    %v633 = vld [vmem:[#allocation5 + $0x1168] sm:$0xff]
    %v634 = vld [vmem:[#allocation5 + $0x1170] sm:$0xff]
    %v635 = vld [vmem:[#allocation5 + $0x1178] sm:$0xff]
    %v636 = vld [vmem:[#allocation5 + $0x1180] sm:$0xff]
    %v637 = vld [vmem:[#allocation5 + $0x1188] sm:$0xff]
    %v638 = vld [vmem:[#allocation5 + $0x1190] sm:$0xff]
    %v639 = vld [vmem:[#allocation5 + $0x1198] sm:$0xff]
    %v640 = vld [vmem:[#allocation5 + $0x11a0] sm:$0xff]
    %v641 = vld [vmem:[#allocation5 + $0x11a8] sm:$0xff]
    %v642 = vld [vmem:[#allocation5 + $0x11b0] sm:$0xff]
    %v643 = vld [vmem:[#allocation5 + $0x11b8] sm:$0xff]
    %v644 = vld [vmem:[#allocation5 + $0x11c0] sm:$0xff]
    %v645 = vld [vmem:[#allocation5 + $0x11c8] sm:$0xff]
    %v646 = vld [vmem:[#allocation5 + $0x11d0] sm:$0xff]
    %v647 = vld [vmem:[#allocation5 + $0x11d8] sm:$0xff]
    %v648 = vld [vmem:[#allocation5 + $0x11e0] sm:$0xff]
    %v649 = vld [vmem:[#allocation5 + $0x11e8] sm:$0xff]
    %v650 = vld [vmem:[#allocation5 + $0x11f0] sm:$0xff]
    %v651 = vld [vmem:[#allocation5 + $0x11f8] sm:$0xff]
    %v652 = vld [vmem:[#allocation5 + $0x1200] sm:$0xff]
    %v653 = vld [vmem:[#allocation5 + $0x1208] sm:$0xff]
    %v654 = vld [vmem:[#allocation5 + $0x1210] sm:$0xff]
    %v655 = vld [vmem:[#allocation5 + $0x1218] sm:$0xff]
    %v656 = vld [vmem:[#allocation5 + $0x1220] sm:$0xff]
    %v657 = vld [vmem:[#allocation5 + $0x1228] sm:$0xff]
    %v658 = vld [vmem:[#allocation5 + $0x1230] sm:$0xff]
    %v659 = vld [vmem:[#allocation5 + $0x1238] sm:$0xff]
    %v660 = vld [vmem:[#allocation5 + $0x1240] sm:$0xff]
    %v661 = vld [vmem:[#allocation5 + $0x1248] sm:$0xff]
    %v662 = vld [vmem:[#allocation5 + $0x1250] sm:$0xff]
    %v663 = vld [vmem:[#allocation5 + $0x1258] sm:$0xff]
    %v664 = vld [vmem:[#allocation5 + $0x1260] sm:$0xff]
    %v665 = vld [vmem:[#allocation5 + $0x1268] sm:$0xff]
    %v666 = vld [vmem:[#allocation5 + $0x1270] sm:$0xff]
    %v667 = vld [vmem:[#allocation5 + $0x1278] sm:$0xff]
    %v668 = vld [vmem:[#allocation5 + $0x1280] sm:$0xff]
    %v669 = vld [vmem:[#allocation5 + $0x1288] sm:$0xff]
    %v670 = vld [vmem:[#allocation5 + $0x1290] sm:$0xff]
    %v671 = vld [vmem:[#allocation5 + $0x1298] sm:$0xff]
    %v672 = vld [vmem:[#allocation5 + $0x12a0] sm:$0xff]
    %v673 = vld [vmem:[#allocation5 + $0x12a8] sm:$0xff]
    %v674 = vld [vmem:[#allocation5 + $0x12b0] sm:$0xff]
    %v675 = vld [vmem:[#allocation5 + $0x12b8] sm:$0xff]
    %v676 = vld [vmem:[#allocation5 + $0x12c0] sm:$0xff]
    %v677 = vld [vmem:[#allocation5 + $0x12c8] sm:$0xff]
    %v678 = vld [vmem:[#allocation5 + $0x12d0] sm:$0xff]
    %v679 = vld [vmem:[#allocation5 + $0x12d8] sm:$0xff]
    %v680 = vld [vmem:[#allocation5 + $0x12e0] sm:$0xff]
    %v681 = vld [vmem:[#allocation5 + $0x12e8] sm:$0xff]
    %v682 = vld [vmem:[#allocation5 + $0x12f0] sm:$0xff]
    %v683 = vld [vmem:[#allocation5 + $0x12f8] sm:$0xff]
    %v684 = vld [vmem:[#allocation5 + $0x1300] sm:$0xff]
    %v685 = vld [vmem:[#allocation5 + $0x1308] sm:$0xff]
    %v686 = vld [vmem:[#allocation5 + $0x1310] sm:$0xff]
    %v687 = vld [vmem:[#allocation5 + $0x1318] sm:$0xff]
    %v688 = vld [vmem:[#allocation5 + $0x1320] sm:$0xff]
    %v689 = vld [vmem:[#allocation5 + $0x1328] sm:$0xff]
    %v690 = vld [vmem:[#allocation5 + $0x1330] sm:$0xff]
    %v691 = vld [vmem:[#allocation5 + $0x1338] sm:$0xff]
    %v692 = vld [vmem:[#allocation5 + $0x1340] sm:$0xff]
    %v693 = vld [vmem:[#allocation5 + $0x1348] sm:$0xff]
    %v694 = vld [vmem:[#allocation5 + $0x1350] sm:$0xff]
    %v695 = vld [vmem:[#allocation5 + $0x1358] sm:$0xff]
    %v696 = vld [vmem:[#allocation5 + $0x1360] sm:$0xff]
    %v697 = vld [vmem:[#allocation5 + $0x1368] sm:$0xff]
    %v698 = vld [vmem:[#allocation5 + $0x1370] sm:$0xff]
    %v699 = vld [vmem:[#allocation5 + $0x1378] sm:$0xff]
    %v700 = vld [vmem:[#allocation5 + $0x1380] sm:$0xff]
    %v701 = vld [vmem:[#allocation5 + $0x1388] sm:$0xff]
    %v702 = vld [vmem:[#allocation5 + $0x1390] sm:$0xff]
    %v703 = vld [vmem:[#allocation5 + $0x1398] sm:$0xff]
    %v704 = vld [vmem:[#allocation5 + $0x13a0] sm:$0xff]
    %v705 = vld [vmem:[#allocation5 + $0x13a8] sm:$0xff]
    %v706 = vld [vmem:[#allocation5 + $0x13b0] sm:$0xff]
    %v707 = vld [vmem:[#allocation5 + $0x13b8] sm:$0xff]
    %v708 = vld [vmem:[#allocation5 + $0x13c0] sm:$0xff]
    %v709 = vld [vmem:[#allocation5 + $0x13c8] sm:$0xff]
    %v710 = vld [vmem:[#allocation5 + $0x13d0] sm:$0xff]
    %v711 = vld [vmem:[#allocation5 + $0x13d8] sm:$0xff]
    %v712 = vld [vmem:[#allocation5 + $0x13e0] sm:$0xff]
    %v713 = vld [vmem:[#allocation5 + $0x13e8] sm:$0xff]
    %v714 = vld [vmem:[#allocation5 + $0x13f0] sm:$0xff]
    %v715 = vld [vmem:[#allocation5 + $0x13f8] sm:$0xff]
    %v716 = vld [vmem:[#allocation5 + $0x1400] sm:$0xff]
    %v717 = vld [vmem:[#allocation5 + $0x1408] sm:$0xff]
    %v718 = vld [vmem:[#allocation5 + $0x1410] sm:$0xff]
    %v719 = vld [vmem:[#allocation5 + $0x1418] sm:$0xff]
    %v720 = vld [vmem:[#allocation5 + $0x1420] sm:$0xff]
    %v721 = vld [vmem:[#allocation5 + $0x1428] sm:$0xff]
    %v722 = vld [vmem:[#allocation5 + $0x1430] sm:$0xff]
    %v723 = vld [vmem:[#allocation5 + $0x1438] sm:$0xff]
    %v724 = vld [vmem:[#allocation5 + $0x1440] sm:$0xff]
    %v725 = vld [vmem:[#allocation5 + $0x1448] sm:$0xff]
    %v726 = vld [vmem:[#allocation5 + $0x1450] sm:$0xff]
    %v727 = vld [vmem:[#allocation5 + $0x1458] sm:$0xff]
    %v728 = vld [vmem:[#allocation5 + $0x1460] sm:$0xff]
    %v729 = vld [vmem:[#allocation5 + $0x1468] sm:$0xff]
    %v730 = vld [vmem:[#allocation5 + $0x1470] sm:$0xff]
    %v731 = vld [vmem:[#allocation5 + $0x1478] sm:$0xff]
    %v732 = vld [vmem:[#allocation5 + $0x1480] sm:$0xff]
    %v733 = vld [vmem:[#allocation5 + $0x1488] sm:$0xff]
    %v734 = vld [vmem:[#allocation5 + $0x1490] sm:$0xff]
    %v735 = vld [vmem:[#allocation5 + $0x1498] sm:$0xff]
    %v736 = vld [vmem:[#allocation5 + $0x14a0] sm:$0xff]
    %v737 = vld [vmem:[#allocation5 + $0x14a8] sm:$0xff]
    %v738 = vld [vmem:[#allocation5 + $0x14b0] sm:$0xff]
    %v739 = vld [vmem:[#allocation5 + $0x14b8] sm:$0xff]
    %v740 = vld [vmem:[#allocation5 + $0x14c0] sm:$0xff]
    %v741 = vld [vmem:[#allocation5 + $0x14c8] sm:$0xff]
    %v742 = vld [vmem:[#allocation5 + $0x14d0] sm:$0xff]
    %v743 = vld [vmem:[#allocation5 + $0x14d8] sm:$0xff]
    %v744 = vld [vmem:[#allocation5 + $0x14e0] sm:$0xff]
    %v745 = vld [vmem:[#allocation5 + $0x14e8] sm:$0xff]
    %v746 = vld [vmem:[#allocation5 + $0x14f0] sm:$0xff]
    %v747 = vld [vmem:[#allocation5 + $0x14f8] sm:$0xff]
    %v748 = vld [vmem:[#allocation5 + $0x1500] sm:$0xff]
    %v749 = vld [vmem:[#allocation5 + $0x1508] sm:$0xff]
    %v750 = vld [vmem:[#allocation5 + $0x1510] sm:$0xff]
    %v751 = vld [vmem:[#allocation5 + $0x1518] sm:$0xff]
    %v752 = vld [vmem:[#allocation5 + $0x1520] sm:$0xff]
    %v753 = vld [vmem:[#allocation5 + $0x1528] sm:$0xff]
    %v754 = vld [vmem:[#allocation5 + $0x1530] sm:$0xff]
    %v755 = vld [vmem:[#allocation5 + $0x1538] sm:$0xff]
    %v756 = vld [vmem:[#allocation5 + $0x1540] sm:$0xff]
    %v757 = vld [vmem:[#allocation5 + $0x1548] sm:$0xff]
    %v758 = vld [vmem:[#allocation5 + $0x1550] sm:$0xff]
    %v759 = vld [vmem:[#allocation5 + $0x1558] sm:$0xff]
    %v760 = vld [vmem:[#allocation5 + $0x1560] sm:$0xff]
    %v761 = vld [vmem:[#allocation5 + $0x1568] sm:$0xff]
    %v762 = vld [vmem:[#allocation5 + $0x1570] sm:$0xff]
    %v763 = vld [vmem:[#allocation5 + $0x1578] sm:$0xff]
    %v764 = vld [vmem:[#allocation5 + $0x1580] sm:$0xff]
    %v765 = vld [vmem:[#allocation5 + $0x1588] sm:$0xff]
    %v766 = vld [vmem:[#allocation5 + $0x1590] sm:$0xff]
    %v767 = vld [vmem:[#allocation5 + $0x1598] sm:$0xff]
    %v768 = vld [vmem:[#allocation5 + $0x15a0] sm:$0xff]
    %v769 = vld [vmem:[#allocation5 + $0x15a8] sm:$0xff]
    %v770 = vld [vmem:[#allocation5 + $0x15b0] sm:$0xff]
    %v771 = vld [vmem:[#allocation5 + $0x15b8] sm:$0xff]
    %v772 = vld [vmem:[#allocation5 + $0x15c0] sm:$0xff]
    %v773 = vld [vmem:[#allocation5 + $0x15c8] sm:$0xff]
    %v774 = vld [vmem:[#allocation5 + $0x15d0] sm:$0xff]
    %v775 = vld [vmem:[#allocation5 + $0x15d8] sm:$0xff]
    %v776 = vld [vmem:[#allocation5 + $0x15e0] sm:$0xff]
    %v777 = vld [vmem:[#allocation5 + $0x15e8] sm:$0xff]
    %v778 = vld [vmem:[#allocation5 + $0x15f0] sm:$0xff]
    %v779 = vld [vmem:[#allocation5 + $0x15f8] sm:$0xff]
    %v780 = vld [vmem:[#allocation5 + $0x1600] sm:$0xff]
    %v781 = vld [vmem:[#allocation5 + $0x1608] sm:$0xff]
    %v782 = vld [vmem:[#allocation5 + $0x1610] sm:$0xff]
    %v783 = vld [vmem:[#allocation5 + $0x1618] sm:$0xff]
    %v784 = vld [vmem:[#allocation5 + $0x1620] sm:$0xff]
    %v785 = vld [vmem:[#allocation5 + $0x1628] sm:$0xff]
    %v786 = vld [vmem:[#allocation5 + $0x1630] sm:$0xff]
    %v787 = vld [vmem:[#allocation5 + $0x1638] sm:$0xff]
    %v788 = vld [vmem:[#allocation5 + $0x1640] sm:$0xff]
    %v789 = vld [vmem:[#allocation5 + $0x1648] sm:$0xff]
    %v790 = vld [vmem:[#allocation5 + $0x1650] sm:$0xff]
    %v791 = vld [vmem:[#allocation5 + $0x1658] sm:$0xff]
    %v792 = vld [vmem:[#allocation5 + $0x1660] sm:$0xff]
    %v793 = vld [vmem:[#allocation5 + $0x1668] sm:$0xff]
    %v794 = vld [vmem:[#allocation5 + $0x1670] sm:$0xff]
    %v795 = vld [vmem:[#allocation5 + $0x1678] sm:$0xff]
    %v796 = vld [vmem:[#allocation5 + $0x1680] sm:$0xff]
    %v797 = vld [vmem:[#allocation5 + $0x1688] sm:$0xff]
    %v798 = vld [vmem:[#allocation5 + $0x1690] sm:$0xff]
    %v799 = vld [vmem:[#allocation5 + $0x1698] sm:$0xff]
    %v800 = vld [vmem:[#allocation5 + $0x16a0] sm:$0xff]
    %v801 = vld [vmem:[#allocation5 + $0x16a8] sm:$0xff]
    %v802 = vld [vmem:[#allocation5 + $0x16b0] sm:$0xff]
    %v803 = vld [vmem:[#allocation5 + $0x16b8] sm:$0xff]
    %v804 = vld [vmem:[#allocation5 + $0x16c0] sm:$0xff]
    %v805 = vld [vmem:[#allocation5 + $0x16c8] sm:$0xff]
    %v806 = vld [vmem:[#allocation5 + $0x16d0] sm:$0xff]
    %v807 = vld [vmem:[#allocation5 + $0x16d8] sm:$0xff]
    %v808 = vld [vmem:[#allocation5 + $0x16e0] sm:$0xff]
    %v809 = vld [vmem:[#allocation5 + $0x16e8] sm:$0xff]
    %v810 = vld [vmem:[#allocation5 + $0x16f0] sm:$0xff]
    %v811 = vld [vmem:[#allocation5 + $0x16f8] sm:$0xff]
    %v812 = vld [vmem:[#allocation5 + $0x1700] sm:$0xff]
    %v813 = vld [vmem:[#allocation5 + $0x1708] sm:$0xff]
    %v814 = vld [vmem:[#allocation5 + $0x1710] sm:$0xff]
    %v815 = vld [vmem:[#allocation5 + $0x1718] sm:$0xff]
    %v816 = vld [vmem:[#allocation5 + $0x1720] sm:$0xff]
    %v817 = vld [vmem:[#allocation5 + $0x1728] sm:$0xff]
    %v818 = vld [vmem:[#allocation5 + $0x1730] sm:$0xff]
    %v819 = vld [vmem:[#allocation5 + $0x1738] sm:$0xff]
    %v820 = vld [vmem:[#allocation5 + $0x1740] sm:$0xff]
    %v821 = vld [vmem:[#allocation5 + $0x1748] sm:$0xff]
    %v822 = vld [vmem:[#allocation5 + $0x1750] sm:$0xff]
    %v823 = vld [vmem:[#allocation5 + $0x1758] sm:$0xff]
    %v824 = vld [vmem:[#allocation5 + $0x1760] sm:$0xff]
    %v825 = vld [vmem:[#allocation5 + $0x1768] sm:$0xff]
    %v826 = vld [vmem:[#allocation5 + $0x1770] sm:$0xff]
    %v827 = vld [vmem:[#allocation5 + $0x1778] sm:$0xff]
    %v828 = vld [vmem:[#allocation5 + $0x1780] sm:$0xff]
    %v829 = vld [vmem:[#allocation5 + $0x1788] sm:$0xff]
    %v830 = vld [vmem:[#allocation5 + $0x1790] sm:$0xff]
    %v831 = vld [vmem:[#allocation5 + $0x1798] sm:$0xff]
    %v832 = vld [vmem:[#allocation5 + $0x17a0] sm:$0xff]
    %v833 = vld [vmem:[#allocation5 + $0x17a8] sm:$0xff]
    %v834 = vld [vmem:[#allocation5 + $0x17b0] sm:$0xff]
    %v835 = vld [vmem:[#allocation5 + $0x17b8] sm:$0xff]
    %v836 = vld [vmem:[#allocation5 + $0x17c0] sm:$0xff]
    %v837 = vld [vmem:[#allocation5 + $0x17c8] sm:$0xff]
    %v838 = vld [vmem:[#allocation5 + $0x17d0] sm:$0xff]
    %v839 = vld [vmem:[#allocation5 + $0x17d8] sm:$0xff]
    %v840 = vld [vmem:[#allocation5 + $0x17e0] sm:$0xff]
    %v841 = vld [vmem:[#allocation5 + $0x17e8] sm:$0xff]
    %v842 = vld [vmem:[#allocation5 + $0x17f0] sm:$0xff]
    %v843 = vld [vmem:[#allocation5 + $0x17f8] sm:$0xff]
    %v844 = vld [vmem:[#allocation5 + $0x1800] sm:$0xff]
    %v845 = vld [vmem:[#allocation5 + $0x1808] sm:$0xff]
    %v846 = vld [vmem:[#allocation5 + $0x1810] sm:$0xff]
    %v847 = vld [vmem:[#allocation5 + $0x1818] sm:$0xff]
    %v848 = vld [vmem:[#allocation5 + $0x1820] sm:$0xff]
    %v849 = vld [vmem:[#allocation5 + $0x1828] sm:$0xff]
    %v850 = vld [vmem:[#allocation5 + $0x1830] sm:$0xff]
    %v851 = vld [vmem:[#allocation5 + $0x1838] sm:$0xff]
    %v852 = vld [vmem:[#allocation5 + $0x1840] sm:$0xff]
    %v853 = vld [vmem:[#allocation5 + $0x1848] sm:$0xff]
    %v854 = vld [vmem:[#allocation5 + $0x1850] sm:$0xff]
    %v855 = vld [vmem:[#allocation5 + $0x1858] sm:$0xff]
    %v856 = vld [vmem:[#allocation5 + $0x1860] sm:$0xff]
    %v857 = vld [vmem:[#allocation5 + $0x1868] sm:$0xff]
    %v858 = vld [vmem:[#allocation5 + $0x1870] sm:$0xff]
    %v859 = vld [vmem:[#allocation5 + $0x1878] sm:$0xff]
    %v860 = vld [vmem:[#allocation5 + $0x1880] sm:$0xff]
    %v861 = vld [vmem:[#allocation5 + $0x1888] sm:$0xff]
    %v862 = vld [vmem:[#allocation5 + $0x1890] sm:$0xff]
    %v863 = vld [vmem:[#allocation5 + $0x1898] sm:$0xff]
    %v864 = vld [vmem:[#allocation5 + $0x18a0] sm:$0xff]
    %v865 = vld [vmem:[#allocation5 + $0x18a8] sm:$0xff]
    %v866 = vld [vmem:[#allocation5 + $0x18b0] sm:$0xff]
    %v867 = vld [vmem:[#allocation5 + $0x18b8] sm:$0xff]
    %v868 = vld [vmem:[#allocation5 + $0x18c0] sm:$0xff]
    %v869 = vld [vmem:[#allocation5 + $0x18c8] sm:$0xff]
    %v870 = vld [vmem:[#allocation5 + $0x18d0] sm:$0xff]
    %v871 = vld [vmem:[#allocation5 + $0x18d8] sm:$0xff]
    %v872 = vld [vmem:[#allocation5 + $0x18e0] sm:$0xff]
    %v873 = vld [vmem:[#allocation5 + $0x18e8] sm:$0xff]
    %v874 = vld [vmem:[#allocation5 + $0x18f0] sm:$0xff]
    %v875 = vld [vmem:[#allocation5 + $0x18f8] sm:$0xff]
    %v876 = vld [vmem:[#allocation5 + $0x1900] sm:$0xff]
    %v877 = vld [vmem:[#allocation5 + $0x1908] sm:$0xff]
    %v878 = vld [vmem:[#allocation5 + $0x1910] sm:$0xff]
    %v879 = vld [vmem:[#allocation5 + $0x1918] sm:$0xff]
    %v880 = vld [vmem:[#allocation5 + $0x1920] sm:$0xff]
    %v881 = vld [vmem:[#allocation5 + $0x1928] sm:$0xff]
    %v882 = vld [vmem:[#allocation5 + $0x1930] sm:$0xff]
    %v883 = vld [vmem:[#allocation5 + $0x1938] sm:$0xff]
    %v884 = vld [vmem:[#allocation5 + $0x1940] sm:$0xff]
    %v885 = vld [vmem:[#allocation5 + $0x1948] sm:$0xff]
    %v886 = vld [vmem:[#allocation5 + $0x1950] sm:$0xff]
    %v887 = vld [vmem:[#allocation5 + $0x1958] sm:$0xff]
    %v888 = vld [vmem:[#allocation5 + $0x1960] sm:$0xff]
    %v889 = vld [vmem:[#allocation5 + $0x1968] sm:$0xff]
    %v890 = vld [vmem:[#allocation5 + $0x1970] sm:$0xff]
    %v891 = vld [vmem:[#allocation5 + $0x1978] sm:$0xff]
    %v892 = vld [vmem:[#allocation5 + $0x1980] sm:$0xff]
    %v893 = vld [vmem:[#allocation5 + $0x1988] sm:$0xff]
    %v894 = vld [vmem:[#allocation5 + $0x1990] sm:$0xff]
    %v895 = vld [vmem:[#allocation5 + $0x1998] sm:$0xff]
    %v896 = vld [vmem:[#allocation5 + $0x19a0] sm:$0xff]
    %v897 = vld [vmem:[#allocation5 + $0x19a8] sm:$0xff]
    %v898 = vld [vmem:[#allocation5 + $0x19b0] sm:$0xff]
    %v899 = vld [vmem:[#allocation5 + $0x19b8] sm:$0xff]
    %v900 = vld [vmem:[#allocation5 + $0x19c0] sm:$0xff]
    %v901 = vld [vmem:[#allocation5 + $0x19c8] sm:$0xff]
    %v902 = vld [vmem:[#allocation5 + $0x19d0] sm:$0xff]
    %v903 = vld [vmem:[#allocation5 + $0x19d8] sm:$0xff]
    %v904 = vld [vmem:[#allocation5 + $0x19e0] sm:$0xff]
    %v905 = vld [vmem:[#allocation5 + $0x19e8] sm:$0xff]
    %v906 = vld [vmem:[#allocation5 + $0x19f0] sm:$0xff]
    %v907 = vld [vmem:[#allocation5 + $0x19f8] sm:$0xff]
    %v908 = vld [vmem:[#allocation5 + $0x1a00] sm:$0xff]
    %v909 = vld [vmem:[#allocation5 + $0x1a08] sm:$0xff]
    %v910 = vld [vmem:[#allocation5 + $0x1a10] sm:$0xff]
    %v911 = vld [vmem:[#allocation5 + $0x1a18] sm:$0xff]
    %v912 = vld [vmem:[#allocation5 + $0x1a20] sm:$0xff]
    %v913 = vld [vmem:[#allocation5 + $0x1a28] sm:$0xff]
    %v914 = vld [vmem:[#allocation5 + $0x1a30] sm:$0xff]
    %v915 = vld [vmem:[#allocation5 + $0x1a38] sm:$0xff]
    %v916 = vld [vmem:[#allocation5 + $0x1a40] sm:$0xff]
    %v917 = vld [vmem:[#allocation5 + $0x1a48] sm:$0xff]
    %v918 = vld [vmem:[#allocation5 + $0x1a50] sm:$0xff]
    %v919 = vld [vmem:[#allocation5 + $0x1a58] sm:$0xff]
    %v920 = vld [vmem:[#allocation5 + $0x1a60] sm:$0xff]
    %v921 = vld [vmem:[#allocation5 + $0x1a68] sm:$0xff]
    %v922 = vld [vmem:[#allocation5 + $0x1a70] sm:$0xff]
    %v923 = vld [vmem:[#allocation5 + $0x1a78] sm:$0xff]
    %v924 = vld [vmem:[#allocation5 + $0x1a80] sm:$0xff]
    %v925 = vld [vmem:[#allocation5 + $0x1a88] sm:$0xff]
    %v926 = vld [vmem:[#allocation5 + $0x1a90] sm:$0xff]
    %v927 = vld [vmem:[#allocation5 + $0x1a98] sm:$0xff]
    %v928 = vld [vmem:[#allocation5 + $0x1aa0] sm:$0xff]
    %v929 = vld [vmem:[#allocation5 + $0x1aa8] sm:$0xff]
    %v930 = vld [vmem:[#allocation5 + $0x1ab0] sm:$0xff]
    %v931 = vld [vmem:[#allocation5 + $0x1ab8] sm:$0xff]
    %v932 = vld [vmem:[#allocation5 + $0x1ac0] sm:$0xff]
    %v933 = vld [vmem:[#allocation5 + $0x1ac8] sm:$0xff]
    %v934 = vld [vmem:[#allocation5 + $0x1ad0] sm:$0xff]
    %v935 = vld [vmem:[#allocation5 + $0x1ad8] sm:$0xff]
    %v936 = vld [vmem:[#allocation5 + $0x1ae0] sm:$0xff]
    %v937 = vld [vmem:[#allocation5 + $0x1ae8] sm:$0xff]
    %v938 = vld [vmem:[#allocation5 + $0x1af0] sm:$0xff]
    %v939 = vld [vmem:[#allocation5 + $0x1af8] sm:$0xff]
    %v940 = vld [vmem:[#allocation5 + $0x1b00] sm:$0xff]
    %v941 = vld [vmem:[#allocation5 + $0x1b08] sm:$0xff]
    %v942 = vld [vmem:[#allocation5 + $0x1b10] sm:$0xff]
    %v943 = vld [vmem:[#allocation5 + $0x1b18] sm:$0xff]
    %v944 = vld [vmem:[#allocation5 + $0x1b20] sm:$0xff]
    %v945 = vld [vmem:[#allocation5 + $0x1b28] sm:$0xff]
    %v946 = vld [vmem:[#allocation5 + $0x1b30] sm:$0xff]
    %v947 = vld [vmem:[#allocation5 + $0x1b38] sm:$0xff]
    %v948 = vld [vmem:[#allocation5 + $0x1b40] sm:$0xff]
    %v949 = vld [vmem:[#allocation5 + $0x1b48] sm:$0xff]
    %v950 = vld [vmem:[#allocation5 + $0x1b50] sm:$0xff]
    %v951 = vld [vmem:[#allocation5 + $0x1b58] sm:$0xff]
    %v952 = vld [vmem:[#allocation5 + $0x1b60] sm:$0xff]
    %v953 = vld [vmem:[#allocation5 + $0x1b68] sm:$0xff]
    %v954 = vld [vmem:[#allocation5 + $0x1b70] sm:$0xff]
    %v955 = vld [vmem:[#allocation5 + $0x1b78] sm:$0xff]
    %v956 = vld [vmem:[#allocation5 + $0x1b80] sm:$0xff]
    %v957 = vld [vmem:[#allocation5 + $0x1b88] sm:$0xff]
    %v958 = vld [vmem:[#allocation5 + $0x1b90] sm:$0xff]
    %v959 = vld [vmem:[#allocation5 + $0x1b98] sm:$0xff]
    %v960 = vld [vmem:[#allocation5 + $0x1ba0] sm:$0xff]
    %v961 = vld [vmem:[#allocation5 + $0x1ba8] sm:$0xff]
    %v962 = vld [vmem:[#allocation5 + $0x1bb0] sm:$0xff]
    %v963 = vld [vmem:[#allocation5 + $0x1bb8] sm:$0xff]
    %v964 = vld [vmem:[#allocation5 + $0x1bc0] sm:$0xff]
    %v965 = vld [vmem:[#allocation5 + $0x1bc8] sm:$0xff]
    %v966 = vld [vmem:[#allocation5 + $0x1bd0] sm:$0xff]
    %v967 = vld [vmem:[#allocation5 + $0x1bd8] sm:$0xff]
    %v968 = vld [vmem:[#allocation5 + $0x1be0] sm:$0xff]
    %v969 = vld [vmem:[#allocation5 + $0x1be8] sm:$0xff]
    %v970 = vld [vmem:[#allocation5 + $0x1bf0] sm:$0xff]
    %v971 = vld [vmem:[#allocation5 + $0x1bf8] sm:$0xff]
    %v972 = vld [vmem:[#allocation5 + $0x1c00] sm:$0xff]
    %v973 = vld [vmem:[#allocation5 + $0x1c08] sm:$0xff]
    %v974 = vld [vmem:[#allocation5 + $0x1c10] sm:$0xff]
    %v975 = vld [vmem:[#allocation5 + $0x1c18] sm:$0xff]
    %v976 = vld [vmem:[#allocation5 + $0x1c20] sm:$0xff]
    %v977 = vld [vmem:[#allocation5 + $0x1c28] sm:$0xff]
    %v978 = vld [vmem:[#allocation5 + $0x1c30] sm:$0xff]
    %v979 = vld [vmem:[#allocation5 + $0x1c38] sm:$0xff]
    %v980 = vld [vmem:[#allocation5 + $0x1c40] sm:$0xff]
    %v981 = vld [vmem:[#allocation5 + $0x1c48] sm:$0xff]
    %v982 = vld [vmem:[#allocation5 + $0x1c50] sm:$0xff]
    %v983 = vld [vmem:[#allocation5 + $0x1c58] sm:$0xff]
    %v984 = vld [vmem:[#allocation5 + $0x1c60] sm:$0xff]
    %v985 = vld [vmem:[#allocation5 + $0x1c68] sm:$0xff]
    %v986 = vld [vmem:[#allocation5 + $0x1c70] sm:$0xff]
    %v987 = vld [vmem:[#allocation5 + $0x1c78] sm:$0xff]
    %v988 = vld [vmem:[#allocation5 + $0x1c80] sm:$0xff]
    %v989 = vld [vmem:[#allocation5 + $0x1c88] sm:$0xff]
    %v990 = vld [vmem:[#allocation5 + $0x1c90] sm:$0xff]
    %v991 = vld [vmem:[#allocation5 + $0x1c98] sm:$0xff]
    %v992 = vld [vmem:[#allocation5 + $0x1ca0] sm:$0xff]
    %v993 = vld [vmem:[#allocation5 + $0x1ca8] sm:$0xff]
    %v994 = vld [vmem:[#allocation5 + $0x1cb0] sm:$0xff]
    %v995 = vld [vmem:[#allocation5 + $0x1cb8] sm:$0xff]
    %v996 = vld [vmem:[#allocation5 + $0x1cc0] sm:$0xff]
    %v997 = vld [vmem:[#allocation5 + $0x1cc8] sm:$0xff]
    %v998 = vld [vmem:[#allocation5 + $0x1cd0] sm:$0xff]
    %v999 = vld [vmem:[#allocation5 + $0x1cd8] sm:$0xff]
    %v1000 = vld [vmem:[#allocation5 + $0x1ce0] sm:$0xff]
    %v1001 = vld [vmem:[#allocation5 + $0x1ce8] sm:$0xff]
    %v1002 = vld [vmem:[#allocation5 + $0x1cf0] sm:$0xff]
    %v1003 = vld [vmem:[#allocation5 + $0x1cf8] sm:$0xff]
    %v1004 = vld [vmem:[#allocation5 + $0x1d00] sm:$0xff]
    %v1005 = vld [vmem:[#allocation5 + $0x1d08] sm:$0xff]
    %v1006 = vld [vmem:[#allocation5 + $0x1d10] sm:$0xff]
    %v1007 = vld [vmem:[#allocation5 + $0x1d18] sm:$0xff]
    %v1008 = vld [vmem:[#allocation5 + $0x1d20] sm:$0xff]
    %v1009 = vld [vmem:[#allocation5 + $0x1d28] sm:$0xff]
    %v1010 = vld [vmem:[#allocation5 + $0x1d30] sm:$0xff]
    %v1011 = vld [vmem:[#allocation5 + $0x1d38] sm:$0xff]
    %v1012 = vld [vmem:[#allocation5 + $0x1d40] sm:$0xff]
    %v1013 = vld [vmem:[#allocation5 + $0x1d48] sm:$0xff]
    %v1014 = vld [vmem:[#allocation5 + $0x1d50] sm:$0xff]
    %v1015 = vld [vmem:[#allocation5 + $0x1d58] sm:$0xff]
    %v1016 = vld [vmem:[#allocation5 + $0x1d60] sm:$0xff]
    %v1017 = vld [vmem:[#allocation5 + $0x1d68] sm:$0xff]
    %v1018 = vld [vmem:[#allocation5 + $0x1d70] sm:$0xff]
    %v1019 = vld [vmem:[#allocation5 + $0x1d78] sm:$0xff]
    %v1020 = vld [vmem:[#allocation5 + $0x1d80] sm:$0xff]
    %v1021 = vld [vmem:[#allocation5 + $0x1d88] sm:$0xff]
    %v1022 = vld [vmem:[#allocation5 + $0x1d90] sm:$0xff]
    %v1023 = vld [vmem:[#allocation5 + $0x1d98] sm:$0xff]
    %v1024 = vld [vmem:[#allocation5 + $0x1da0] sm:$0xff]
    %v1025 = vld [vmem:[#allocation5 + $0x1da8] sm:$0xff]
    %v1026 = vld [vmem:[#allocation5 + $0x1db0] sm:$0xff]
    %v1027 = vld [vmem:[#allocation5 + $0x1db8] sm:$0xff]
    %v1028 = vld [vmem:[#allocation5 + $0x1dc0] sm:$0xff]
    %v1029 = vld [vmem:[#allocation5 + $0x1dc8] sm:$0xff]
    %v1030 = vld [vmem:[#allocation5 + $0x1dd0] sm:$0xff]
    %v1031 = vld [vmem:[#allocation5 + $0x1dd8] sm:$0xff]
    %v1032 = vld [vmem:[#allocation5 + $0x1de0] sm:$0xff]
    %v1033 = vld [vmem:[#allocation5 + $0x1de8] sm:$0xff]
    %v1034 = vld [vmem:[#allocation5 + $0x1df0] sm:$0xff]
    %v1035 = vld [vmem:[#allocation5 + $0x1df8] sm:$0xff]
    %v1036 = vld [vmem:[#allocation5 + $0x1e00] sm:$0xff]
    %v1037 = vld [vmem:[#allocation5 + $0x1e08] sm:$0xff]
    %v1038 = vld [vmem:[#allocation5 + $0x1e10] sm:$0xff]
    %v1039 = vld [vmem:[#allocation5 + $0x1e18] sm:$0xff]
    %v1040 = vld [vmem:[#allocation5 + $0x1e20] sm:$0xff]
    %v1041 = vld [vmem:[#allocation5 + $0x1e28] sm:$0xff]
    %v1042 = vld [vmem:[#allocation5 + $0x1e30] sm:$0xff]
    %v1043 = vld [vmem:[#allocation5 + $0x1e38] sm:$0xff]
    %v1044 = vld [vmem:[#allocation5 + $0x1e40] sm:$0xff]
    %v1045 = vld [vmem:[#allocation5 + $0x1e48] sm:$0xff]
    %v1046 = vld [vmem:[#allocation5 + $0x1e50] sm:$0xff]
    %v1047 = vld [vmem:[#allocation5 + $0x1e58] sm:$0xff]
    %v1048 = vld [vmem:[#allocation5 + $0x1e60] sm:$0xff]
    %v1049 = vld [vmem:[#allocation5 + $0x1e68] sm:$0xff]
    %v1050 = vld [vmem:[#allocation5 + $0x1e70] sm:$0xff]
    %v1051 = vld [vmem:[#allocation5 + $0x1e78] sm:$0xff]
    %v1052 = vld [vmem:[#allocation5 + $0x1e80] sm:$0xff]
    %v1053 = vld [vmem:[#allocation5 + $0x1e88] sm:$0xff]
    %v1054 = vld [vmem:[#allocation5 + $0x1e90] sm:$0xff]
    %v1055 = vld [vmem:[#allocation5 + $0x1e98] sm:$0xff]
    %v1056 = vld [vmem:[#allocation5 + $0x1ea0] sm:$0xff]
    %v1057 = vld [vmem:[#allocation5 + $0x1ea8] sm:$0xff]
    %v1058 = vld [vmem:[#allocation5 + $0x1eb0] sm:$0xff]
    %v1059 = vld [vmem:[#allocation5 + $0x1eb8] sm:$0xff]
    %v1060 = vld [vmem:[#allocation5 + $0x1ec0] sm:$0xff]
    %v1061 = vld [vmem:[#allocation5 + $0x1ec8] sm:$0xff]
    %v1062 = vld [vmem:[#allocation5 + $0x1ed0] sm:$0xff]
    %v1063 = vld [vmem:[#allocation5 + $0x1ed8] sm:$0xff]
    %v1064 = vld [vmem:[#allocation5 + $0x1ee0] sm:$0xff]
    %v1065 = vld [vmem:[#allocation5 + $0x1ee8] sm:$0xff]
    %v1066 = vld [vmem:[#allocation5 + $0x1ef0] sm:$0xff]
    %v1067 = vld [vmem:[#allocation5 + $0x1ef8] sm:$0xff]
    %v1068 = vld [vmem:[#allocation5 + $0x1f00] sm:$0xff]
    %v1069 = vld [vmem:[#allocation5 + $0x1f08] sm:$0xff]
    %v1070 = vld [vmem:[#allocation5 + $0x1f10] sm:$0xff]
    %v1071 = vld [vmem:[#allocation5 + $0x1f18] sm:$0xff]
    %v1072 = vld [vmem:[#allocation5 + $0x1f20] sm:$0xff]
    %v1073 = vld [vmem:[#allocation5 + $0x1f28] sm:$0xff]
    %v1074 = vld [vmem:[#allocation5 + $0x1f30] sm:$0xff]
    %v1075 = vld [vmem:[#allocation5 + $0x1f38] sm:$0xff]
    %v1076 = vld [vmem:[#allocation5 + $0x1f40] sm:$0xff]
    %v1077 = vld [vmem:[#allocation5 + $0x1f48] sm:$0xff]
    %v1078 = vld [vmem:[#allocation5 + $0x1f50] sm:$0xff]
    %v1079 = vld [vmem:[#allocation5 + $0x1f58] sm:$0xff]
    %v1080 = vld [vmem:[#allocation5 + $0x1f60] sm:$0xff]
    %v1081 = vld [vmem:[#allocation5 + $0x1f68] sm:$0xff]
    %v1082 = vld [vmem:[#allocation5 + $0x1f70] sm:$0xff]
    %v1083 = vld [vmem:[#allocation5 + $0x1f78] sm:$0xff]
    %v1084 = vld [vmem:[#allocation5 + $0x1f80] sm:$0xff]
    %v1085 = vld [vmem:[#allocation5 + $0x1f88] sm:$0xff]
    %v1086 = vld [vmem:[#allocation5 + $0x1f90] sm:$0xff]
    %v1087 = vld [vmem:[#allocation5 + $0x1f98] sm:$0xff]
    %v1088 = vld [vmem:[#allocation5 + $0x1fa0] sm:$0xff]
    %v1089 = vld [vmem:[#allocation5 + $0x1fa8] sm:$0xff]
    %v1090 = vld [vmem:[#allocation5 + $0x1fb0] sm:$0xff]
    %v1091 = vld [vmem:[#allocation5 + $0x1fb8] sm:$0xff]
    %v1092 = vld [vmem:[#allocation5 + $0x1fc0] sm:$0xff]
    %v1093 = vld [vmem:[#allocation5 + $0x1fc8] sm:$0xff]
    %v1094 = vld [vmem:[#allocation5 + $0x1fd0] sm:$0xff]
    %v1095 = vld [vmem:[#allocation5 + $0x1fd8] sm:$0xff]
    %v1096 = vld [vmem:[#allocation5 + $0x1fe0] sm:$0xff]
    %v1097 = vld [vmem:[#allocation5 + $0x1fe8] sm:$0xff]
    %v1098 = vld [vmem:[#allocation5 + $0x1ff0] sm:$0xff]
    %v1099 = vld [vmem:[#allocation5 + $0x1ff8] sm:$0xff]
    %v1100 = vld [vmem:[#allocation5 + $0x2000] sm:$0xff]
    %v1101 = vld [vmem:[#allocation5 + $0x2008] sm:$0xff]
    %v1102 = vld [vmem:[#allocation5 + $0x2010] sm:$0xff]
    %v1103 = vld [vmem:[#allocation5 + $0x2018] sm:$0xff]
    %v1104 = vld [vmem:[#allocation5 + $0x2020] sm:$0xff]
    %v1105 = vld [vmem:[#allocation5 + $0x2028] sm:$0xff]
    %v1106 = vld [vmem:[#allocation5 + $0x2030] sm:$0xff]
    %v1107 = vld [vmem:[#allocation5 + $0x2038] sm:$0xff]
    %v1108 = vld [vmem:[#allocation5 + $0x2040] sm:$0xff]
    %v1109 = vld [vmem:[#allocation5 + $0x2048] sm:$0xff]
    %v1110 = vld [vmem:[#allocation5 + $0x2050] sm:$0xff]
    %v1111 = vld [vmem:[#allocation5 + $0x2058] sm:$0xff]
    %v1112 = vld [vmem:[#allocation5 + $0x2060] sm:$0xff]
    %v1113 = vld [vmem:[#allocation5 + $0x2068] sm:$0xff]
    %v1114 = vld [vmem:[#allocation5 + $0x2070] sm:$0xff]
    %v1115 = vld [vmem:[#allocation5 + $0x2078] sm:$0xff]
    %v1116 = vld [vmem:[#allocation5 + $0x2080] sm:$0xff]
    %v1117 = vld [vmem:[#allocation5 + $0x2088] sm:$0xff]
    %v1118 = vld [vmem:[#allocation5 + $0x2090] sm:$0xff]
    %v1119 = vld [vmem:[#allocation5 + $0x2098] sm:$0xff]
    %v1120 = vld [vmem:[#allocation5 + $0x20a0] sm:$0xff]
    %v1121 = vld [vmem:[#allocation5 + $0x20a8] sm:$0xff]
    %v1122 = vld [vmem:[#allocation5 + $0x20b0] sm:$0xff]
    %v1123 = vld [vmem:[#allocation5 + $0x20b8] sm:$0xff]
    %v1124 = vld [vmem:[#allocation5 + $0x20c0] sm:$0xff]
    %v1125 = vld [vmem:[#allocation5 + $0x20c8] sm:$0xff]
    %v1126 = vld [vmem:[#allocation5 + $0x20d0] sm:$0xff]
    %v1127 = vld [vmem:[#allocation5 + $0x20d8] sm:$0xff]
    %v1128 = vld [vmem:[#allocation5 + $0x20e0] sm:$0xff]
    %v1129 = vld [vmem:[#allocation5 + $0x20e8] sm:$0xff]
    %v1130 = vld [vmem:[#allocation5 + $0x20f0] sm:$0xff]
    %v1131 = vld [vmem:[#allocation5 + $0x20f8] sm:$0xff]
    %v1132 = vld [vmem:[#allocation5 + $0x2100] sm:$0xff]
    %v1133 = vld [vmem:[#allocation5 + $0x2108] sm:$0xff]
    %v1134 = vld [vmem:[#allocation5 + $0x2110] sm:$0xff]
    %v1135 = vld [vmem:[#allocation5 + $0x2118] sm:$0xff]
    %v1136 = vld [vmem:[#allocation5 + $0x2120] sm:$0xff]
    %v1137 = vld [vmem:[#allocation5 + $0x2128] sm:$0xff]
    %v1138 = vld [vmem:[#allocation5 + $0x2130] sm:$0xff]
    %v1139 = vld [vmem:[#allocation5 + $0x2138] sm:$0xff]
    %v1140 = vld [vmem:[#allocation5 + $0x2140] sm:$0xff]
    %v1141 = vld [vmem:[#allocation5 + $0x2148] sm:$0xff]
    %v1142 = vld [vmem:[#allocation5 + $0x2150] sm:$0xff]
    %v1143 = vld [vmem:[#allocation5 + $0x2158] sm:$0xff]
    %v1144 = vld [vmem:[#allocation5 + $0x2160] sm:$0xff]
    %v1145 = vld [vmem:[#allocation5 + $0x2168] sm:$0xff]
    %v1146 = vld [vmem:[#allocation5 + $0x2170] sm:$0xff]
    %v1147 = vld [vmem:[#allocation5 + $0x2178] sm:$0xff]
    %v1148 = vld [vmem:[#allocation5 + $0x2180] sm:$0xff]
    %v1149 = vld [vmem:[#allocation5 + $0x2188] sm:$0xff]
    %v1150 = vld [vmem:[#allocation5 + $0x2190] sm:$0xff]
    %v1151 = vld [vmem:[#allocation5 + $0x2198] sm:$0xff]
    %v1152 = vld [vmem:[#allocation5 + $0x21a0] sm:$0xff]
    %v1153 = vld [vmem:[#allocation5 + $0x21a8] sm:$0xff]
    %v1154 = vld [vmem:[#allocation5 + $0x21b0] sm:$0xff]
    %v1155 = vld [vmem:[#allocation5 + $0x21b8] sm:$0xff]
    %v1156 = vld [vmem:[#allocation5 + $0x21c0] sm:$0xff]
    %v1157 = vld [vmem:[#allocation5 + $0x21c8] sm:$0xff]
    %v1158 = vld [vmem:[#allocation5 + $0x21d0] sm:$0xff]
    %v1159 = vld [vmem:[#allocation5 + $0x21d8] sm:$0xff]
    %v1160 = vld [vmem:[#allocation5 + $0x21e0] sm:$0xff]
    %v1161 = vld [vmem:[#allocation5 + $0x21e8] sm:$0xff]
    %v1162 = vld [vmem:[#allocation5 + $0x21f0] sm:$0xff]
    %v1163 = vld [vmem:[#allocation5 + $0x21f8] sm:$0xff]
    %v1164 = vld [vmem:[#allocation5 + $0x2200] sm:$0xff]
    %v1165 = vld [vmem:[#allocation5 + $0x2208] sm:$0xff]
    %v1166 = vld [vmem:[#allocation5 + $0x2210] sm:$0xff]
    %v1167 = vld [vmem:[#allocation5 + $0x2218] sm:$0xff]
    %v1168 = vld [vmem:[#allocation5 + $0x2220] sm:$0xff]
    %v1169 = vld [vmem:[#allocation5 + $0x2228] sm:$0xff]
    %v1170 = vld [vmem:[#allocation5 + $0x2230] sm:$0xff]
    %v1171 = vld [vmem:[#allocation5 + $0x2238] sm:$0xff]
    %v1172 = vld [vmem:[#allocation5 + $0x2240] sm:$0xff]
    %v1173 = vld [vmem:[#allocation5 + $0x2248] sm:$0xff]
    %v1174 = vld [vmem:[#allocation5 + $0x2250] sm:$0xff]
    %v1175 = vld [vmem:[#allocation5 + $0x2258] sm:$0xff]
    %v1176 = vld [vmem:[#allocation5 + $0x2260] sm:$0xff]
    %v1177 = vld [vmem:[#allocation5 + $0x2268] sm:$0xff]
    %v1178 = vld [vmem:[#allocation5 + $0x2270] sm:$0xff]
    %v1179 = vld [vmem:[#allocation5 + $0x2278] sm:$0xff]
    %v1180 = vld [vmem:[#allocation5 + $0x2280] sm:$0xff]
    %v1181 = vld [vmem:[#allocation5 + $0x2288] sm:$0xff]
    %v1182 = vld [vmem:[#allocation5 + $0x2290] sm:$0xff]
    %v1183 = vld [vmem:[#allocation5 + $0x2298] sm:$0xff]
    %v1184 = vld [vmem:[#allocation5 + $0x22a0] sm:$0xff]
    %v1185 = vld [vmem:[#allocation5 + $0x22a8] sm:$0xff]
    %v1186 = vld [vmem:[#allocation5 + $0x22b0] sm:$0xff]
    %v1187 = vld [vmem:[#allocation5 + $0x22b8] sm:$0xff]
    %v1188 = vld [vmem:[#allocation5 + $0x22c0] sm:$0xff]
    %v1189 = vld [vmem:[#allocation5 + $0x22c8] sm:$0xff]
    %v1190 = vld [vmem:[#allocation5 + $0x22d0] sm:$0xff]
    %v1191 = vld [vmem:[#allocation5 + $0x22d8] sm:$0xff]
    %v1192 = vld [vmem:[#allocation5 + $0x22e0] sm:$0xff]
    %v1193 = vld [vmem:[#allocation5 + $0x22e8] sm:$0xff]
    %v1194 = vld [vmem:[#allocation5 + $0x22f0] sm:$0xff]
    %v1195 = vld [vmem:[#allocation5 + $0x22f8] sm:$0xff]
    %v1196 = vld [vmem:[#allocation5 + $0x2300] sm:$0xff]
    %v1197 = vld [vmem:[#allocation5 + $0x2308] sm:$0xff]
    %v1198 = vld [vmem:[#allocation5 + $0x2310] sm:$0xff]
    %v1199 = vld [vmem:[#allocation5 + $0x2318] sm:$0xff]
    %v1200 = vld [vmem:[#allocation5 + $0x2320] sm:$0xff]
    %v1201 = vld [vmem:[#allocation5 + $0x2328] sm:$0xff]
    %v1202 = vld [vmem:[#allocation5 + $0x2330] sm:$0xff]
    %v1203 = vld [vmem:[#allocation5 + $0x2338] sm:$0xff]
    %v1204 = vld [vmem:[#allocation5 + $0x2340] sm:$0xff]
    %v1205 = vld [vmem:[#allocation5 + $0x2348] sm:$0xff]
    %v1206 = vld [vmem:[#allocation5 + $0x2350] sm:$0xff]
    %v1207 = vld [vmem:[#allocation5 + $0x2358] sm:$0xff]
    %v1208 = vld [vmem:[#allocation5 + $0x2360] sm:$0xff]
    %v1209 = vld [vmem:[#allocation5 + $0x2368] sm:$0xff]
    %v1210 = vld [vmem:[#allocation5 + $0x2370] sm:$0xff]
    %v1211 = vld [vmem:[#allocation5 + $0x2378] sm:$0xff]
    %v1212 = vld [vmem:[#allocation5 + $0x2380] sm:$0xff]
    %v1213 = vld [vmem:[#allocation5 + $0x2388] sm:$0xff]
    %v1214 = vld [vmem:[#allocation5 + $0x2390] sm:$0xff]
    %v1215 = vld [vmem:[#allocation5 + $0x2398] sm:$0xff]
    %v1216 = vld [vmem:[#allocation5 + $0x23a0] sm:$0xff]
    %v1217 = vld [vmem:[#allocation5 + $0x23a8] sm:$0xff]
    %v1218 = vld [vmem:[#allocation5 + $0x23b0] sm:$0xff]
    %v1219 = vld [vmem:[#allocation5 + $0x23b8] sm:$0xff]
    %v1220 = vld [vmem:[#allocation5 + $0x23c0] sm:$0xff]
    %v1221 = vld [vmem:[#allocation5 + $0x23c8] sm:$0xff]
    %v1222 = vld [vmem:[#allocation5 + $0x23d0] sm:$0xff]
    %v1223 = vld [vmem:[#allocation5 + $0x23d8] sm:$0xff]
    %v1224 = vld [vmem:[#allocation5 + $0x23e0] sm:$0xff]
    %v1225 = vld [vmem:[#allocation5 + $0x23e8] sm:$0xff]
    %v1226 = vld [vmem:[#allocation5 + $0x23f0] sm:$0xff]
    %v1227 = vld [vmem:[#allocation5 + $0x23f8] sm:$0xff]
    %v1228 = vld [vmem:[#allocation5 + $0x2400] sm:$0xff]
    %v1229 = vld [vmem:[#allocation5 + $0x2408] sm:$0xff]
    %v1230 = vld [vmem:[#allocation5 + $0x2410] sm:$0xff]
    %v1231 = vld [vmem:[#allocation5 + $0x2418] sm:$0xff]
    %v1232 = vld [vmem:[#allocation5 + $0x2420] sm:$0xff]
    %v1233 = vld [vmem:[#allocation5 + $0x2428] sm:$0xff]
    %v1234 = vld [vmem:[#allocation5 + $0x2430] sm:$0xff]
    %v1235 = vld [vmem:[#allocation5 + $0x2438] sm:$0xff]
    %v1236 = vld [vmem:[#allocation5 + $0x2440] sm:$0xff]
    %v1237 = vld [vmem:[#allocation5 + $0x2448] sm:$0xff]
    %v1238 = vld [vmem:[#allocation5 + $0x2450] sm:$0xff]
    %v1239 = vld [vmem:[#allocation5 + $0x2458] sm:$0xff]
    %v1240 = vld [vmem:[#allocation5 + $0x2460] sm:$0xff]
    %v1241 = vld [vmem:[#allocation5 + $0x2468] sm:$0xff]
    %v1242 = vld [vmem:[#allocation5 + $0x2470] sm:$0xff]
    %v1243 = vld [vmem:[#allocation5 + $0x2478] sm:$0xff]
    %v1244 = vld [vmem:[#allocation5 + $0x2480] sm:$0xff]
    %v1245 = vld [vmem:[#allocation5 + $0x2488] sm:$0xff]
    %v1246 = vld [vmem:[#allocation5 + $0x2490] sm:$0xff]
    %v1247 = vld [vmem:[#allocation5 + $0x2498] sm:$0xff]
    %v1248 = vld [vmem:[#allocation5 + $0x24a0] sm:$0xff]
    %v1249 = vld [vmem:[#allocation5 + $0x24a8] sm:$0xff]
    %v1250 = vld [vmem:[#allocation5 + $0x24b0] sm:$0xff]
    %v1251 = vld [vmem:[#allocation5 + $0x24b8] sm:$0xff]
    %v1252 = vld [vmem:[#allocation5 + $0x24c0] sm:$0xff]
    %v1253 = vld [vmem:[#allocation5 + $0x24c8] sm:$0xff]
    %v1254 = vld [vmem:[#allocation5 + $0x24d0] sm:$0xff]
    %v1255 = vld [vmem:[#allocation5 + $0x24d8] sm:$0xff]
    %v1256 = vld [vmem:[#allocation5 + $0x24e0] sm:$0xff]
    %v1257 = vld [vmem:[#allocation5 + $0x24e8] sm:$0xff]
    %v1258 = vld [vmem:[#allocation5 + $0x24f0] sm:$0xff]
    %v1259 = vld [vmem:[#allocation5 + $0x24f8] sm:$0xff]
    %v1260 = vld [vmem:[#allocation5 + $0x2500] sm:$0xff]
    %v1261 = vld [vmem:[#allocation5 + $0x2508] sm:$0xff]
    %v1262 = vld [vmem:[#allocation5 + $0x2510] sm:$0xff]
    %v1263 = vld [vmem:[#allocation5 + $0x2518] sm:$0xff]
    %v1264 = vld [vmem:[#allocation5 + $0x2520] sm:$0xff]
    %v1265 = vld [vmem:[#allocation5 + $0x2528] sm:$0xff]
    %v1266 = vld [vmem:[#allocation5 + $0x2530] sm:$0xff]
    %v1267 = vld [vmem:[#allocation5 + $0x2538] sm:$0xff]
    %v1268 = vld [vmem:[#allocation5 + $0x2540] sm:$0xff]
    %v1269 = vld [vmem:[#allocation5 + $0x2548] sm:$0xff]
    %v1270 = vld [vmem:[#allocation5 + $0x2550] sm:$0xff]
    %v1271 = vld [vmem:[#allocation5 + $0x2558] sm:$0xff]
    %v1272 = vld [vmem:[#allocation5 + $0x2560] sm:$0xff]
    %v1273 = vld [vmem:[#allocation5 + $0x2568] sm:$0xff]
    %v1274 = vld [vmem:[#allocation5 + $0x2570] sm:$0xff]
    %v1275 = vld [vmem:[#allocation5 + $0x2578] sm:$0xff]
    %v1276 = vld [vmem:[#allocation5 + $0x2580] sm:$0xff]
    %v1277 = vld [vmem:[#allocation5 + $0x2588] sm:$0xff]
    %v1278 = vld [vmem:[#allocation5 + $0x2590] sm:$0xff]
    %v1279 = vld [vmem:[#allocation5 + $0x2598] sm:$0xff]
    %v1280 = vld [vmem:[#allocation5 + $0x25a0] sm:$0xff]
    %v1281 = vld [vmem:[#allocation5 + $0x25a8] sm:$0xff]
    %v1282 = vld [vmem:[#allocation5 + $0x25b0] sm:$0xff]
    %v1283 = vld [vmem:[#allocation5 + $0x25b8] sm:$0xff]
    %v1284 = vld [vmem:[#allocation5 + $0x25c0] sm:$0xff]
    %v1285 = vld [vmem:[#allocation5 + $0x25c8] sm:$0xff]
    %v1286 = vld [vmem:[#allocation5 + $0x25d0] sm:$0xff]
    %v1287 = vld [vmem:[#allocation5 + $0x25d8] sm:$0xff]
    %v1288 = vld [vmem:[#allocation5 + $0x25e0] sm:$0xff]
    %v1289 = vld [vmem:[#allocation5 + $0x25e8] sm:$0xff]
    %v1290 = vld [vmem:[#allocation5 + $0x25f0] sm:$0xff]
    %v1291 = vld [vmem:[#allocation5 + $0x25f8] sm:$0xff]
    %v1292 = vld [vmem:[#allocation5 + $0x2600] sm:$0xff]
    %v1293 = vld [vmem:[#allocation5 + $0x2608] sm:$0xff]
    %v1294 = vld [vmem:[#allocation5 + $0x2610] sm:$0xff]
    %v1295 = vld [vmem:[#allocation5 + $0x2618] sm:$0xff]
    %v1296 = vld [vmem:[#allocation5 + $0x2620] sm:$0xff]
    %v1297 = vld [vmem:[#allocation5 + $0x2628] sm:$0xff]
    %v1298 = vld [vmem:[#allocation5 + $0x2630] sm:$0xff]
    %v1299 = vld [vmem:[#allocation5 + $0x2638] sm:$0xff]
    %v1300 = vld [vmem:[#allocation5 + $0x2640] sm:$0xff]
    %v1301 = vld [vmem:[#allocation5 + $0x2648] sm:$0xff]
    %v1302 = vld [vmem:[#allocation5 + $0x2650] sm:$0xff]
    %v1303 = vld [vmem:[#allocation5 + $0x2658] sm:$0xff]
    %v1304 = vld [vmem:[#allocation5 + $0x2660] sm:$0xff]
    %v1305 = vld [vmem:[#allocation5 + $0x2668] sm:$0xff]
    %v1306 = vld [vmem:[#allocation5 + $0x2670] sm:$0xff]
    %v1307 = vld [vmem:[#allocation5 + $0x2678] sm:$0xff]
    %v1308 = vld [vmem:[#allocation5 + $0x2680] sm:$0xff]
    %v1309 = vld [vmem:[#allocation5 + $0x2688] sm:$0xff]
    %v1310 = vld [vmem:[#allocation5 + $0x2690] sm:$0xff]
    %v1311 = vld [vmem:[#allocation5 + $0x2698] sm:$0xff]
    %v1312 = vld [vmem:[#allocation5 + $0x26a0] sm:$0xff]
    %v1313 = vld [vmem:[#allocation5 + $0x26a8] sm:$0xff]
    %v1314 = vld [vmem:[#allocation5 + $0x26b0] sm:$0xff]
    %v1315 = vld [vmem:[#allocation5 + $0x26b8] sm:$0xff]
    %v1316 = vld [vmem:[#allocation5 + $0x26c0] sm:$0xff]
    %v1317 = vld [vmem:[#allocation5 + $0x26c8] sm:$0xff]
    %v1318 = vld [vmem:[#allocation5 + $0x26d0] sm:$0xff]
    %v1319 = vld [vmem:[#allocation5 + $0x26d8] sm:$0xff]
    %v1320 = vld [vmem:[#allocation5 + $0x26e0] sm:$0xff]
    %v1321 = vld [vmem:[#allocation5 + $0x26e8] sm:$0xff]
    %v1322 = vld [vmem:[#allocation5 + $0x26f0] sm:$0xff]
    %v1323 = vld [vmem:[#allocation5 + $0x26f8] sm:$0xff]
    %v1324 = vld [vmem:[#allocation5 + $0x2700] sm:$0xff]
    %v1325 = vld [vmem:[#allocation5 + $0x2708] sm:$0xff]
    %v1326 = vld [vmem:[#allocation5 + $0x2710] sm:$0xff]
    %v1327 = vld [vmem:[#allocation5 + $0x2718] sm:$0xff]
    %v1328 = vld [vmem:[#allocation5 + $0x2720] sm:$0xff]
    %v1329 = vld [vmem:[#allocation5 + $0x2728] sm:$0xff]
    %v1330 = vld [vmem:[#allocation5 + $0x2730] sm:$0xff]
    %v1331 = vld [vmem:[#allocation5 + $0x2738] sm:$0xff]
    %v1332 = vld [vmem:[#allocation5 + $0x2740] sm:$0xff]
    %v1333 = vld [vmem:[#allocation5 + $0x2748] sm:$0xff]
    %v1334 = vld [vmem:[#allocation5 + $0x2750] sm:$0xff]
    %v1335 = vld [vmem:[#allocation5 + $0x2758] sm:$0xff]
    %v1336 = vld [vmem:[#allocation5 + $0x2760] sm:$0xff]
    %v1337 = vld [vmem:[#allocation5 + $0x2768] sm:$0xff]
    %v1338 = vld [vmem:[#allocation5 + $0x2770] sm:$0xff]
    %v1339 = vld [vmem:[#allocation5 + $0x2778] sm:$0xff]
    %v1340 = vld [vmem:[#allocation5 + $0x2780] sm:$0xff]
    %v1341 = vld [vmem:[#allocation5 + $0x2788] sm:$0xff]
    %v1342 = vld [vmem:[#allocation5 + $0x2790] sm:$0xff]
    %v1343 = vld [vmem:[#allocation5 + $0x2798] sm:$0xff]
    %v1344 = vld [vmem:[#allocation5 + $0x27a0] sm:$0xff]
    %v1345 = vld [vmem:[#allocation5 + $0x27a8] sm:$0xff]
    %v1346 = vld [vmem:[#allocation5 + $0x27b0] sm:$0xff]
    %v1347 = vld [vmem:[#allocation5 + $0x27b8] sm:$0xff]
    %v1348 = vld [vmem:[#allocation5 + $0x27c0] sm:$0xff]
    %v1349 = vld [vmem:[#allocation5 + $0x27c8] sm:$0xff]
    %v1350 = vld [vmem:[#allocation5 + $0x27d0] sm:$0xff]
    %v1351 = vld [vmem:[#allocation5 + $0x27d8] sm:$0xff]
    %v1352 = vld [vmem:[#allocation5 + $0x27e0] sm:$0xff]
    %v1353 = vld [vmem:[#allocation5 + $0x27e8] sm:$0xff]
    %v1354 = vld [vmem:[#allocation5 + $0x27f0] sm:$0xff]
    %v1355 = vld [vmem:[#allocation5 + $0x27f8] sm:$0xff]
    %v1356 = vld [vmem:[#allocation5 + $0x2800] sm:$0xff]
    %v1357 = vld [vmem:[#allocation5 + $0x2808] sm:$0xff]
    %v1358 = vld [vmem:[#allocation5 + $0x2810] sm:$0xff]
    %v1359 = vld [vmem:[#allocation5 + $0x2818] sm:$0xff]
    %v1360 = vld [vmem:[#allocation5 + $0x2820] sm:$0xff]
    %v1361 = vld [vmem:[#allocation5 + $0x2828] sm:$0xff]
    %v1362 = vld [vmem:[#allocation5 + $0x2830] sm:$0xff]
    %v1363 = vld [vmem:[#allocation5 + $0x2838] sm:$0xff]
    %v1364 = vld [vmem:[#allocation5 + $0x2840] sm:$0xff]
    %v1365 = vld [vmem:[#allocation5 + $0x2848] sm:$0xff]
    %v1366 = vld [vmem:[#allocation5 + $0x2850] sm:$0xff]
    %v1367 = vld [vmem:[#allocation5 + $0x2858] sm:$0xff]
    %v1368 = vld [vmem:[#allocation5 + $0x2860] sm:$0xff]
    %v1369 = vld [vmem:[#allocation5 + $0x2868] sm:$0xff]
    %v1370 = vld [vmem:[#allocation5 + $0x2870] sm:$0xff]
    %v1371 = vld [vmem:[#allocation5 + $0x2878] sm:$0xff]
    %v1372 = vld [vmem:[#allocation5 + $0x2880] sm:$0xff]
    %v1373 = vld [vmem:[#allocation5 + $0x2888] sm:$0xff]
    %v1374 = vld [vmem:[#allocation5 + $0x2890] sm:$0xff]
    %v1375 = vld [vmem:[#allocation5 + $0x2898] sm:$0xff]
    %v1376 = vld [vmem:[#allocation5 + $0x28a0] sm:$0xff]
    %v1377 = vld [vmem:[#allocation5 + $0x28a8] sm:$0xff]
    %v1378 = vld [vmem:[#allocation5 + $0x28b0] sm:$0xff]
    %v1379 = vld [vmem:[#allocation5 + $0x28b8] sm:$0xff]
    %v1380 = vld [vmem:[#allocation5 + $0x28c0] sm:$0xff]
    %v1381 = vld [vmem:[#allocation5 + $0x28c8] sm:$0xff]
    %v1382 = vld [vmem:[#allocation5 + $0x28d0] sm:$0xff]
    %v1383 = vld [vmem:[#allocation5 + $0x28d8] sm:$0xff]
    %v1384 = vld [vmem:[#allocation5 + $0x28e0] sm:$0xff]
    %v1385 = vld [vmem:[#allocation5 + $0x28e8] sm:$0xff]
    %v1386 = vld [vmem:[#allocation5 + $0x28f0] sm:$0xff]
    %v1387 = vld [vmem:[#allocation5 + $0x28f8] sm:$0xff]
    %v1388 = vld [vmem:[#allocation5 + $0x2900] sm:$0xff]
    %v1389 = vld [vmem:[#allocation5 + $0x2908] sm:$0xff]
    %v1390 = vld [vmem:[#allocation5 + $0x2910] sm:$0xff]
    %v1391 = vld [vmem:[#allocation5 + $0x2918] sm:$0xff]
    %v1392 = vld [vmem:[#allocation5 + $0x2920] sm:$0xff]
    %v1393 = vld [vmem:[#allocation5 + $0x2928] sm:$0xff]
    %v1394 = vld [vmem:[#allocation5 + $0x2930] sm:$0xff]
    %v1395 = vld [vmem:[#allocation5 + $0x2938] sm:$0xff]
    %v1396 = vld [vmem:[#allocation5 + $0x2940] sm:$0xff]
    %v1397 = vld [vmem:[#allocation5 + $0x2948] sm:$0xff]
    %v1398 = vld [vmem:[#allocation5 + $0x2950] sm:$0xff]
    %v1399 = vld [vmem:[#allocation5 + $0x2958] sm:$0xff]
    %v1400 = vld [vmem:[#allocation5 + $0x2960] sm:$0xff]
    %v1401 = vld [vmem:[#allocation5 + $0x2968] sm:$0xff]
    %v1402 = vld [vmem:[#allocation5 + $0x2970] sm:$0xff]
    %v1403 = vld [vmem:[#allocation5 + $0x2978] sm:$0xff]
    %v1404 = vld [vmem:[#allocation5 + $0x2980] sm:$0xff]
    %v1405 = vld [vmem:[#allocation5 + $0x2988] sm:$0xff]
    %v1406 = vld [vmem:[#allocation5 + $0x2990] sm:$0xff]
    %v1407 = vld [vmem:[#allocation5 + $0x2998] sm:$0xff]
    %v1408 = vld [vmem:[#allocation5 + $0x29a0] sm:$0xff]
    %v1409 = vld [vmem:[#allocation5 + $0x29a8] sm:$0xff]
    %v1410 = vld [vmem:[#allocation5 + $0x29b0] sm:$0xff]
    %v1411 = vld [vmem:[#allocation5 + $0x29b8] sm:$0xff]
    %v1412 = vld [vmem:[#allocation5 + $0x29c0] sm:$0xff]
    %v1413 = vld [vmem:[#allocation5 + $0x29c8] sm:$0xff]
    %v1414 = vld [vmem:[#allocation5 + $0x29d0] sm:$0xff]
    %v1415 = vld [vmem:[#allocation5 + $0x29d8] sm:$0xff]
    %v1416 = vld [vmem:[#allocation5 + $0x29e0] sm:$0xff]
    %v1417 = vld [vmem:[#allocation5 + $0x29e8] sm:$0xff]
    %v1418 = vld [vmem:[#allocation5 + $0x29f0] sm:$0xff]
    %v1419 = vld [vmem:[#allocation5 + $0x29f8] sm:$0xff]
    %v1420 = vld [vmem:[#allocation5 + $0x2a00] sm:$0xff]
    %v1421 = vld [vmem:[#allocation5 + $0x2a08] sm:$0xff]
    %v1422 = vld [vmem:[#allocation5 + $0x2a10] sm:$0xff]
    %v1423 = vld [vmem:[#allocation5 + $0x2a18] sm:$0xff]
    %v1424 = vld [vmem:[#allocation5 + $0x2a20] sm:$0xff]
    %v1425 = vld [vmem:[#allocation5 + $0x2a28] sm:$0xff]
    %v1426 = vld [vmem:[#allocation5 + $0x2a30] sm:$0xff]
    %v1427 = vld [vmem:[#allocation5 + $0x2a38] sm:$0xff]
    %v1428 = vld [vmem:[#allocation5 + $0x2a40] sm:$0xff]
    %v1429 = vld [vmem:[#allocation5 + $0x2a48] sm:$0xff]
    %v1430 = vld [vmem:[#allocation5 + $0x2a50] sm:$0xff]
    %v1431 = vld [vmem:[#allocation5 + $0x2a58] sm:$0xff]
    %v1432 = vld [vmem:[#allocation5 + $0x2a60] sm:$0xff]
    %v1433 = vld [vmem:[#allocation5 + $0x2a68] sm:$0xff]
    %v1434 = vld [vmem:[#allocation5 + $0x2a70] sm:$0xff]
    %v1435 = vld [vmem:[#allocation5 + $0x2a78] sm:$0xff]
    %v1436 = vld [vmem:[#allocation5 + $0x2a80] sm:$0xff]
    %v1437 = vld [vmem:[#allocation5 + $0x2a88] sm:$0xff]
    %v1438 = vld [vmem:[#allocation5 + $0x2a90] sm:$0xff]
    %v1439 = vld [vmem:[#allocation5 + $0x2a98] sm:$0xff]
    %v1440 = vld [vmem:[#allocation5 + $0x2aa0] sm:$0xff]
    %v1441 = vld [vmem:[#allocation5 + $0x2aa8] sm:$0xff]
    %v1442 = vld [vmem:[#allocation5 + $0x2ab0] sm:$0xff]
    %v1443 = vld [vmem:[#allocation5 + $0x2ab8] sm:$0xff]
    %v1444 = vld [vmem:[#allocation5 + $0x2ac0] sm:$0xff]
    %v1445 = vld [vmem:[#allocation5 + $0x2ac8] sm:$0xff]
    %v1446 = vld [vmem:[#allocation5 + $0x2ad0] sm:$0xff]
    %v1447 = vld [vmem:[#allocation5 + $0x2ad8] sm:$0xff]
    %v1448 = vld [vmem:[#allocation5 + $0x2ae0] sm:$0xff]
    %v1449 = vld [vmem:[#allocation5 + $0x2ae8] sm:$0xff]
    %v1450 = vld [vmem:[#allocation5 + $0x2af0] sm:$0xff]
    %v1451 = vld [vmem:[#allocation5 + $0x2af8] sm:$0xff]
    %v1452 = vld [vmem:[#allocation5 + $0x2b00] sm:$0xff]
    %v1453 = vld [vmem:[#allocation5 + $0x2b08] sm:$0xff]
    %v1454 = vld [vmem:[#allocation5 + $0x2b10] sm:$0xff]
    %v1455 = vld [vmem:[#allocation5 + $0x2b18] sm:$0xff]
    %v1456 = vld [vmem:[#allocation5 + $0x2b20] sm:$0xff]
    %v1457 = vld [vmem:[#allocation5 + $0x2b28] sm:$0xff]
    %v1458 = vld [vmem:[#allocation5 + $0x2b30] sm:$0xff]
    %v1459 = vld [vmem:[#allocation5 + $0x2b38] sm:$0xff]
    %v1460 = vld [vmem:[#allocation5 + $0x2b40] sm:$0xff]
    %v1461 = vld [vmem:[#allocation5 + $0x2b48] sm:$0xff]
    %v1462 = vld [vmem:[#allocation5 + $0x2b50] sm:$0xff]
    %v1463 = vld [vmem:[#allocation5 + $0x2b58] sm:$0xff]
    %v1464 = vld [vmem:[#allocation5 + $0x2b60] sm:$0xff]
    %v1465 = vld [vmem:[#allocation5 + $0x2b68] sm:$0xff]
    %v1466 = vld [vmem:[#allocation5 + $0x2b70] sm:$0xff]
    %v1467 = vld [vmem:[#allocation5 + $0x2b78] sm:$0xff]
    %v1468 = vld [vmem:[#allocation5 + $0x2b80] sm:$0xff]
    %v1469 = vld [vmem:[#allocation5 + $0x2b88] sm:$0xff]
    %v1470 = vld [vmem:[#allocation5 + $0x2b90] sm:$0xff]
    %v1471 = vld [vmem:[#allocation5 + $0x2b98] sm:$0xff]
    %v1472 = vld [vmem:[#allocation5 + $0x2ba0] sm:$0xff]
    %v1473 = vld [vmem:[#allocation5 + $0x2ba8] sm:$0xff]
    %v1474 = vld [vmem:[#allocation5 + $0x2bb0] sm:$0xff]
    %v1475 = vld [vmem:[#allocation5 + $0x2bb8] sm:$0xff]
    %v1476 = vld [vmem:[#allocation5 + $0x2bc0] sm:$0xff]
    %v1477 = vld [vmem:[#allocation5 + $0x2bc8] sm:$0xff]
    %v1478 = vld [vmem:[#allocation5 + $0x2bd0] sm:$0xff]
    %v1479 = vld [vmem:[#allocation5 + $0x2bd8] sm:$0xff]
    %v1480 = vld [vmem:[#allocation5 + $0x2be0] sm:$0xff]
    %v1481 = vld [vmem:[#allocation5 + $0x2be8] sm:$0xff]
    %v1482 = vld [vmem:[#allocation5 + $0x2bf0] sm:$0xff]
    %v1483 = vld [vmem:[#allocation5 + $0x2bf8] sm:$0xff]
    %v1484 = vld [vmem:[#allocation5 + $0x2c00] sm:$0xff]
    %v1485 = vld [vmem:[#allocation5 + $0x2c08] sm:$0xff]
    %v1486 = vld [vmem:[#allocation5 + $0x2c10] sm:$0xff]
    %v1487 = vld [vmem:[#allocation5 + $0x2c18] sm:$0xff]
    %v1488 = vld [vmem:[#allocation5 + $0x2c20] sm:$0xff]
    %v1489 = vld [vmem:[#allocation5 + $0x2c28] sm:$0xff]
    %v1490 = vld [vmem:[#allocation5 + $0x2c30] sm:$0xff]
    %v1491 = vld [vmem:[#allocation5 + $0x2c38] sm:$0xff]
    %v1492 = vld [vmem:[#allocation5 + $0x2c40] sm:$0xff]
    %v1493 = vld [vmem:[#allocation5 + $0x2c48] sm:$0xff]
    %v1494 = vld [vmem:[#allocation5 + $0x2c50] sm:$0xff]
    %v1495 = vld [vmem:[#allocation5 + $0x2c58] sm:$0xff]
    %v1496 = vld [vmem:[#allocation5 + $0x2c60] sm:$0xff]
    %v1497 = vld [vmem:[#allocation5 + $0x2c68] sm:$0xff]
    %v1498 = vld [vmem:[#allocation5 + $0x2c70] sm:$0xff]
    %v1499 = vld [vmem:[#allocation5 + $0x2c78] sm:$0xff]
    %v1500 = vld [vmem:[#allocation5 + $0x2c80] sm:$0xff]
    %v1501 = vld [vmem:[#allocation5 + $0x2c88] sm:$0xff]
    %v1502 = vld [vmem:[#allocation5 + $0x2c90] sm:$0xff]
    %v1503 = vld [vmem:[#allocation5 + $0x2c98] sm:$0xff]
    %v1504 = vld [vmem:[#allocation5 + $0x2ca0] sm:$0xff]
    %v1505 = vld [vmem:[#allocation5 + $0x2ca8] sm:$0xff]
    %v1506 = vld [vmem:[#allocation5 + $0x2cb0] sm:$0xff]
    %v1507 = vld [vmem:[#allocation5 + $0x2cb8] sm:$0xff]
    %v1508 = vld [vmem:[#allocation5 + $0x2cc0] sm:$0xff]
    %v1509 = vld [vmem:[#allocation5 + $0x2cc8] sm:$0xff]
    %v1510 = vld [vmem:[#allocation5 + $0x2cd0] sm:$0xff]
    %v1511 = vld [vmem:[#allocation5 + $0x2cd8] sm:$0xff]
    %v1512 = vld [vmem:[#allocation5 + $0x2ce0] sm:$0xff]
    %v1513 = vld [vmem:[#allocation5 + $0x2ce8] sm:$0xff]
    %v1514 = vld [vmem:[#allocation5 + $0x2cf0] sm:$0xff]
    %v1515 = vld [vmem:[#allocation5 + $0x2cf8] sm:$0xff]
    %v1516 = vld [vmem:[#allocation5 + $0x2d00] sm:$0xff]
    %v1517 = vld [vmem:[#allocation5 + $0x2d08] sm:$0xff]
    %v1518 = vld [vmem:[#allocation5 + $0x2d10] sm:$0xff]
    %v1519 = vld [vmem:[#allocation5 + $0x2d18] sm:$0xff]
    %v1520 = vld [vmem:[#allocation5 + $0x2d20] sm:$0xff]
    %v1521 = vld [vmem:[#allocation5 + $0x2d28] sm:$0xff]
    %v1522 = vld [vmem:[#allocation5 + $0x2d30] sm:$0xff]
    %v1523 = vld [vmem:[#allocation5 + $0x2d38] sm:$0xff]
    %v1524 = vld [vmem:[#allocation5 + $0x2d40] sm:$0xff]
    %v1525 = vld [vmem:[#allocation5 + $0x2d48] sm:$0xff]
    %v1526 = vld [vmem:[#allocation5 + $0x2d50] sm:$0xff]
    %v1527 = vld [vmem:[#allocation5 + $0x2d58] sm:$0xff]
    %v1528 = vld [vmem:[#allocation5 + $0x2d60] sm:$0xff]
    %v1529 = vld [vmem:[#allocation5 + $0x2d68] sm:$0xff]
    %v1530 = vld [vmem:[#allocation5 + $0x2d70] sm:$0xff]
    %v1531 = vld [vmem:[#allocation5 + $0x2d78] sm:$0xff]
    %v1532 = vld [vmem:[#allocation5 + $0x2d80] sm:$0xff]
    %v1533 = vld [vmem:[#allocation5 + $0x2d88] sm:$0xff]
    %v1534 = vld [vmem:[#allocation5 + $0x2d90] sm:$0xff]
    %v1535 = vld [vmem:[#allocation5 + $0x2d98] sm:$0xff]
    %v1536 = vld [vmem:[#allocation5 + $0x2da0] sm:$0xff]
    %v1537 = vld [vmem:[#allocation5 + $0x2da8] sm:$0xff]
    %v1538 = vld [vmem:[#allocation5 + $0x2db0] sm:$0xff]
    %v1539 = vld [vmem:[#allocation5 + $0x2db8] sm:$0xff]
    %v1540 = vld [vmem:[#allocation5 + $0x2dc0] sm:$0xff]
    %v1541 = vld [vmem:[#allocation5 + $0x2dc8] sm:$0xff]
    %v1542 = vld [vmem:[#allocation5 + $0x2dd0] sm:$0xff]
    %v1543 = vld [vmem:[#allocation5 + $0x2dd8] sm:$0xff]
    %v1544 = vld [vmem:[#allocation5 + $0x2de0] sm:$0xff]
    %v1545 = vld [vmem:[#allocation5 + $0x2de8] sm:$0xff]
    %v1546 = vld [vmem:[#allocation5 + $0x2df0] sm:$0xff]
    %v1547 = vld [vmem:[#allocation5 + $0x2df8] sm:$0xff]
    %v1548 = vld [vmem:[#allocation5 + $0x2e00] sm:$0xff]
    %v1549 = vld [vmem:[#allocation5 + $0x2e08] sm:$0xff]
    %v1550 = vld [vmem:[#allocation5 + $0x2e10] sm:$0xff]
    %v1551 = vld [vmem:[#allocation5 + $0x2e18] sm:$0xff]
    %v1552 = vld [vmem:[#allocation5 + $0x2e20] sm:$0xff]
    %v1553 = vld [vmem:[#allocation5 + $0x2e28] sm:$0xff]
    %v1554 = vld [vmem:[#allocation5 + $0x2e30] sm:$0xff]
    %v1555 = vld [vmem:[#allocation5 + $0x2e38] sm:$0xff]
    %v1556 = vld [vmem:[#allocation5 + $0x2e40] sm:$0xff]
    %v1557 = vld [vmem:[#allocation5 + $0x2e48] sm:$0xff]
    %v1558 = vld [vmem:[#allocation5 + $0x2e50] sm:$0xff]
    %v1559 = vld [vmem:[#allocation5 + $0x2e58] sm:$0xff]
    %v1560 = vld [vmem:[#allocation5 + $0x2e60] sm:$0xff]
    %v1561 = vld [vmem:[#allocation5 + $0x2e68] sm:$0xff]
    %v1562 = vld [vmem:[#allocation5 + $0x2e70] sm:$0xff]
    %v1563 = vld [vmem:[#allocation5 + $0x2e78] sm:$0xff]
    %v1564 = vld [vmem:[#allocation5 + $0x2e80] sm:$0xff]
    %v1565 = vld [vmem:[#allocation5 + $0x2e88] sm:$0xff]
    %v1566 = vld [vmem:[#allocation5 + $0x2e90] sm:$0xff]
    %v1567 = vld [vmem:[#allocation5 + $0x2e98] sm:$0xff]
    %v1568 = vld [vmem:[#allocation5 + $0x2ea0] sm:$0xff]
    %v1569 = vld [vmem:[#allocation5 + $0x2ea8] sm:$0xff]
    %v1570 = vld [vmem:[#allocation5 + $0x2eb0] sm:$0xff]
    %v1571 = vld [vmem:[#allocation5 + $0x2eb8] sm:$0xff]
    %v1572 = vld [vmem:[#allocation5 + $0x2ec0] sm:$0xff]
    %v1573 = vld [vmem:[#allocation5 + $0x2ec8] sm:$0xff]
    %v1574 = vld [vmem:[#allocation5 + $0x2ed0] sm:$0xff]
    %v1575 = vld [vmem:[#allocation5 + $0x2ed8] sm:$0xff]
    %v1576 = vld [vmem:[#allocation5 + $0x2ee0] sm:$0xff]
    %v1577 = vld [vmem:[#allocation5 + $0x2ee8] sm:$0xff]
    %v1578 = vld [vmem:[#allocation5 + $0x2ef0] sm:$0xff]
    %v1579 = vld [vmem:[#allocation5 + $0x2ef8] sm:$0xff]
    %v1580 = vld [vmem:[#allocation5 + $0x2f00] sm:$0xff]
    %v1581 = vld [vmem:[#allocation5 + $0x2f08] sm:$0xff]
    %v1582 = vld [vmem:[#allocation5 + $0x2f10] sm:$0xff]
    %v1583 = vld [vmem:[#allocation5 + $0x2f18] sm:$0xff]
    %v1584 = vld [vmem:[#allocation5 + $0x2f20] sm:$0xff]
    %v1585 = vld [vmem:[#allocation5 + $0x2f28] sm:$0xff]
    %v1586 = vld [vmem:[#allocation5 + $0x2f30] sm:$0xff]
    %v1587 = vld [vmem:[#allocation5 + $0x2f38] sm:$0xff]
    %v1588 = vld [vmem:[#allocation5 + $0x2f40] sm:$0xff]
    %v1589 = vld [vmem:[#allocation5 + $0x2f48] sm:$0xff]
    %v1590 = vld [vmem:[#allocation5 + $0x2f50] sm:$0xff]
    %v1591 = vld [vmem:[#allocation5 + $0x2f58] sm:$0xff]
    %v1592 = vld [vmem:[#allocation5 + $0x2f60] sm:$0xff]
    %v1593 = vld [vmem:[#allocation5 + $0x2f68] sm:$0xff]
    %v1594 = vld [vmem:[#allocation5 + $0x2f70] sm:$0xff]
    %v1595 = vld [vmem:[#allocation5 + $0x2f78] sm:$0xff]
    %v1596 = vld [vmem:[#allocation5 + $0x2f80] sm:$0xff]
    %v1597 = vld [vmem:[#allocation5 + $0x2f88] sm:$0xff]
    %v1598 = vld [vmem:[#allocation5 + $0x2f90] sm:$0xff]
    %v1599 = vld [vmem:[#allocation5 + $0x2f98] sm:$0xff]
    %v1600 = vld [vmem:[#allocation5 + $0x2fa0] sm:$0xff]
    %v1601 = vld [vmem:[#allocation5 + $0x2fa8] sm:$0xff]
    %v1602 = vld [vmem:[#allocation5 + $0x2fb0] sm:$0xff]
    %v1603 = vld [vmem:[#allocation5 + $0x2fb8] sm:$0xff]
    %v1604 = vld [vmem:[#allocation5 + $0x2fc0] sm:$0xff]
    %v1605 = vld [vmem:[#allocation5 + $0x2fc8] sm:$0xff]
    %v1606 = vld [vmem:[#allocation5 + $0x2fd0] sm:$0xff]
    %v1607 = vld [vmem:[#allocation5 + $0x2fd8] sm:$0xff]
    %v1608 = vld [vmem:[#allocation5 + $0x2fe0] sm:$0xff]
    %v1609 = vld [vmem:[#allocation5 + $0x2fe8] sm:$0xff]
    %v1610 = vld [vmem:[#allocation5 + $0x2ff0] sm:$0xff]
    %v1611 = vld [vmem:[#allocation5 + $0x2ff8] sm:$0xff]
    %v1612 = vld [vmem:[#allocation5 + $0x3000] sm:$0xff]
    %v1613 = vld [vmem:[#allocation5 + $0x3008] sm:$0xff]
    %v1614 = vld [vmem:[#allocation5 + $0x3010] sm:$0xff]
    %v1615 = vld [vmem:[#allocation5 + $0x3018] sm:$0xff]
    %v1616 = vld [vmem:[#allocation5 + $0x3020] sm:$0xff]
    %v1617 = vld [vmem:[#allocation5 + $0x3028] sm:$0xff]
    %v1618 = vld [vmem:[#allocation5 + $0x3030] sm:$0xff]
    %v1619 = vld [vmem:[#allocation5 + $0x3038] sm:$0xff]
    %v1620 = vld [vmem:[#allocation5 + $0x3040] sm:$0xff]
    %v1621 = vld [vmem:[#allocation5 + $0x3048] sm:$0xff]
    %v1622 = vld [vmem:[#allocation5 + $0x3050] sm:$0xff]
    %v1623 = vld [vmem:[#allocation5 + $0x3058] sm:$0xff]
    %v1624 = vld [vmem:[#allocation5 + $0x3060] sm:$0xff]
    %v1625 = vld [vmem:[#allocation5 + $0x3068] sm:$0xff]
    %v1626 = vld [vmem:[#allocation5 + $0x3070] sm:$0xff]
    %v1627 = vld [vmem:[#allocation5 + $0x3078] sm:$0xff]
    %v1628 = vld [vmem:[#allocation5 + $0x3080] sm:$0xff]
    %v1629 = vld [vmem:[#allocation5 + $0x3088] sm:$0xff]
    %v1630 = vld [vmem:[#allocation5 + $0x3090] sm:$0xff]
    %v1631 = vld [vmem:[#allocation5 + $0x3098] sm:$0xff]
    %v1632 = vld [vmem:[#allocation5 + $0x30a0] sm:$0xff]
    %v1633 = vld [vmem:[#allocation5 + $0x30a8] sm:$0xff]
    %v1634 = vld [vmem:[#allocation5 + $0x30b0] sm:$0xff]
    %v1635 = vld [vmem:[#allocation5 + $0x30b8] sm:$0xff]
    %v1636 = vld [vmem:[#allocation5 + $0x30c0] sm:$0xff]
    %v1637 = vld [vmem:[#allocation5 + $0x30c8] sm:$0xff]
    %v1638 = vld [vmem:[#allocation5 + $0x30d0] sm:$0xff]
    %v1639 = vld [vmem:[#allocation5 + $0x30d8] sm:$0xff]
    %v1640 = vld [vmem:[#allocation5 + $0x30e0] sm:$0xff]
    %v1641 = vld [vmem:[#allocation5 + $0x30e8] sm:$0xff]
    %v1642 = vld [vmem:[#allocation5 + $0x30f0] sm:$0xff]
    %v1643 = vld [vmem:[#allocation5 + $0x30f8] sm:$0xff]
    %v1644 = vld [vmem:[#allocation5 + $0x3100] sm:$0xff]
    %v1645 = vld [vmem:[#allocation5 + $0x3108] sm:$0xff]
    %v1646 = vld [vmem:[#allocation5 + $0x3110] sm:$0xff]
    %v1647 = vld [vmem:[#allocation5 + $0x3118] sm:$0xff]
    %v1648 = vld [vmem:[#allocation5 + $0x3120] sm:$0xff]
    %v1649 = vld [vmem:[#allocation5 + $0x3128] sm:$0xff]
    %v1650 = vld [vmem:[#allocation5 + $0x3130] sm:$0xff]
    %v1651 = vld [vmem:[#allocation5 + $0x3138] sm:$0xff]
    %v1652 = vld [vmem:[#allocation5 + $0x3140] sm:$0xff]
    %v1653 = vld [vmem:[#allocation5 + $0x3148] sm:$0xff]
    %v1654 = vld [vmem:[#allocation5 + $0x3150] sm:$0xff]
    %v1655 = vld [vmem:[#allocation5 + $0x3158] sm:$0xff]
    %v1656 = vld [vmem:[#allocation5 + $0x3160] sm:$0xff]
    %v1657 = vld [vmem:[#allocation5 + $0x3168] sm:$0xff]
    %v1658 = vld [vmem:[#allocation5 + $0x3170] sm:$0xff]
    %v1659 = vld [vmem:[#allocation5 + $0x3178] sm:$0xff]
    %v1660 = vld [vmem:[#allocation5 + $0x3180] sm:$0xff]
    %v1661 = vld [vmem:[#allocation5 + $0x3188] sm:$0xff]
    %v1662 = vld [vmem:[#allocation5 + $0x3190] sm:$0xff]
    %v1663 = vld [vmem:[#allocation5 + $0x3198] sm:$0xff]
    %v1664 = vld [vmem:[#allocation5 + $0x31a0] sm:$0xff]
    %v1665 = vld [vmem:[#allocation5 + $0x31a8] sm:$0xff]
    %v1666 = vld [vmem:[#allocation5 + $0x31b0] sm:$0xff]
    %v1667 = vld [vmem:[#allocation5 + $0x31b8] sm:$0xff]
    %v1668 = vld [vmem:[#allocation5 + $0x31c0] sm:$0xff]
    %v1669 = vld [vmem:[#allocation5 + $0x31c8] sm:$0xff]
    %v1670 = vld [vmem:[#allocation5 + $0x31d0] sm:$0xff]
    %v1671 = vld [vmem:[#allocation5 + $0x31d8] sm:$0xff]
    %v1672 = vld [vmem:[#allocation5 + $0x31e0] sm:$0xff]
    %v1673 = vld [vmem:[#allocation5 + $0x31e8] sm:$0xff]
    %v1674 = vld [vmem:[#allocation5 + $0x31f0] sm:$0xff]
    %v1675 = vld [vmem:[#allocation5 + $0x31f8] sm:$0xff]
    %v1676 = vld [vmem:[#allocation5 + $0x3200] sm:$0xff]
    %v1677 = vld [vmem:[#allocation5 + $0x3208] sm:$0xff]
    %v1678 = vld [vmem:[#allocation5 + $0x3210] sm:$0xff]
    %v1679 = vld [vmem:[#allocation5 + $0x3218] sm:$0xff]
    %v1680 = vld [vmem:[#allocation5 + $0x3220] sm:$0xff]
    %v1681 = vld [vmem:[#allocation5 + $0x3228] sm:$0xff]
    %v1682 = vld [vmem:[#allocation5 + $0x3230] sm:$0xff]
    %v1683 = vld [vmem:[#allocation5 + $0x3238] sm:$0xff]
    %v1684 = vld [vmem:[#allocation5 + $0x3240] sm:$0xff]
    %v1685 = vld [vmem:[#allocation5 + $0x3248] sm:$0xff]
    %v1686 = vld [vmem:[#allocation5 + $0x3250] sm:$0xff]
    %v1687 = vld [vmem:[#allocation5 + $0x3258] sm:$0xff]
    %v1688 = vld [vmem:[#allocation5 + $0x3260] sm:$0xff]
    %v1689 = vld [vmem:[#allocation5 + $0x3268] sm:$0xff]
    %v1690 = vld [vmem:[#allocation5 + $0x3270] sm:$0xff]
    %v1691 = vld [vmem:[#allocation5 + $0x3278] sm:$0xff]
    %v1692 = vld [vmem:[#allocation5 + $0x3280] sm:$0xff]
    %v1693 = vld [vmem:[#allocation5 + $0x3288] sm:$0xff]
    %v1694 = vld [vmem:[#allocation5 + $0x3290] sm:$0xff]
    %v1695 = vld [vmem:[#allocation5 + $0x3298] sm:$0xff]
    %v1696 = vld [vmem:[#allocation5 + $0x32a0] sm:$0xff]
    %v1697 = vld [vmem:[#allocation5 + $0x32a8] sm:$0xff]
    %v1698 = vld [vmem:[#allocation5 + $0x32b0] sm:$0xff]
    %v1699 = vld [vmem:[#allocation5 + $0x32b8] sm:$0xff]
    %v1700 = vld [vmem:[#allocation5 + $0x32c0] sm:$0xff]
    %v1701 = vld [vmem:[#allocation5 + $0x32c8] sm:$0xff]
    %v1702 = vld [vmem:[#allocation5 + $0x32d0] sm:$0xff]
    %v1703 = vld [vmem:[#allocation5 + $0x32d8] sm:$0xff]
    %v1704 = vld [vmem:[#allocation5 + $0x32e0] sm:$0xff]
    %v1705 = vld [vmem:[#allocation5 + $0x32e8] sm:$0xff]
    %v1706 = vld [vmem:[#allocation5 + $0x32f0] sm:$0xff]
    %v1707 = vld [vmem:[#allocation5 + $0x32f8] sm:$0xff]
    %v1708 = vld [vmem:[#allocation5 + $0x3300] sm:$0xff]
    %v1709 = vld [vmem:[#allocation5 + $0x3308] sm:$0xff]
    %v1710 = vld [vmem:[#allocation5 + $0x3310] sm:$0xff]
    %v1711 = vld [vmem:[#allocation5 + $0x3318] sm:$0xff]
    %v1712 = vld [vmem:[#allocation5 + $0x3320] sm:$0xff]
    %v1713 = vld [vmem:[#allocation5 + $0x3328] sm:$0xff]
    %v1714 = vld [vmem:[#allocation5 + $0x3330] sm:$0xff]
    %v1715 = vld [vmem:[#allocation5 + $0x3338] sm:$0xff]
    %v1716 = vld [vmem:[#allocation5 + $0x3340] sm:$0xff]
    %v1717 = vld [vmem:[#allocation5 + $0x3348] sm:$0xff]
    %v1718 = vld [vmem:[#allocation5 + $0x3350] sm:$0xff]
    %v1719 = vld [vmem:[#allocation5 + $0x3358] sm:$0xff]
    %v1720 = vld [vmem:[#allocation5 + $0x3360] sm:$0xff]
    %v1721 = vld [vmem:[#allocation5 + $0x3368] sm:$0xff]
    %v1722 = vld [vmem:[#allocation5 + $0x3370] sm:$0xff]
    %v1723 = vld [vmem:[#allocation5 + $0x3378] sm:$0xff]
    %v1724 = vld [vmem:[#allocation5 + $0x3380] sm:$0xff]
    %v1725 = vld [vmem:[#allocation5 + $0x3388] sm:$0xff]
    %v1726 = vld [vmem:[#allocation5 + $0x3390] sm:$0xff]
    %v1727 = vld [vmem:[#allocation5 + $0x3398] sm:$0xff]
    %v1728 = vld [vmem:[#allocation5 + $0x33a0] sm:$0xff]
    %v1729 = vld [vmem:[#allocation5 + $0x33a8] sm:$0xff]
    %v1730 = vld [vmem:[#allocation5 + $0x33b0] sm:$0xff]
    %v1731 = vld [vmem:[#allocation5 + $0x33b8] sm:$0xff]
    %v1732 = vld [vmem:[#allocation5 + $0x33c0] sm:$0xff]
    %v1733 = vld [vmem:[#allocation5 + $0x33c8] sm:$0xff]
    %v1734 = vld [vmem:[#allocation5 + $0x33d0] sm:$0xff]
    %v1735 = vld [vmem:[#allocation5 + $0x33d8] sm:$0xff]
    %v1736 = vld [vmem:[#allocation5 + $0x33e0] sm:$0xff]
    %v1737 = vld [vmem:[#allocation5 + $0x33e8] sm:$0xff]
    %v1738 = vld [vmem:[#allocation5 + $0x33f0] sm:$0xff]
    %v1739 = vld [vmem:[#allocation5 + $0x33f8] sm:$0xff]
    %v1740 = vld [vmem:[#allocation5 + $0x3400] sm:$0xff]
    %v1741 = vld [vmem:[#allocation5 + $0x3408] sm:$0xff]
    %v1742 = vld [vmem:[#allocation5 + $0x3410] sm:$0xff]
    %v1743 = vld [vmem:[#allocation5 + $0x3418] sm:$0xff]
    %v1744 = vld [vmem:[#allocation5 + $0x3420] sm:$0xff]
    %v1745 = vld [vmem:[#allocation5 + $0x3428] sm:$0xff]
    %v1746 = vld [vmem:[#allocation5 + $0x3430] sm:$0xff]
    %v1747 = vld [vmem:[#allocation5 + $0x3438] sm:$0xff]
    %v1748 = vld [vmem:[#allocation5 + $0x3440] sm:$0xff]
    %v1749 = vld [vmem:[#allocation5 + $0x3448] sm:$0xff]
    %v1750 = vld [vmem:[#allocation5 + $0x3450] sm:$0xff]
    %v1751 = vld [vmem:[#allocation5 + $0x3458] sm:$0xff]
    %v1752 = vld [vmem:[#allocation5 + $0x3460] sm:$0xff]
    %v1753 = vld [vmem:[#allocation5 + $0x3468] sm:$0xff]
    %v1754 = vld [vmem:[#allocation5 + $0x3470] sm:$0xff]
    %v1755 = vld [vmem:[#allocation5 + $0x3478] sm:$0xff]
    %v1756 = vld [vmem:[#allocation5 + $0x3480] sm:$0xff]
    %v1757 = vld [vmem:[#allocation5 + $0x3488] sm:$0xff]
    %v1758 = vld [vmem:[#allocation5 + $0x3490] sm:$0xff]
    %v1759 = vld [vmem:[#allocation5 + $0x3498] sm:$0xff]
    %v1760 = vld [vmem:[#allocation5 + $0x34a0] sm:$0xff]
    %v1761 = vld [vmem:[#allocation5 + $0x34a8] sm:$0xff]
    %v1762 = vld [vmem:[#allocation5 + $0x34b0] sm:$0xff]
    %v1763 = vld [vmem:[#allocation5 + $0x34b8] sm:$0xff]
    %v1764 = vld [vmem:[#allocation5 + $0x34c0] sm:$0xff]
    %v1765 = vld [vmem:[#allocation5 + $0x34c8] sm:$0xff]
    %v1766 = vld [vmem:[#allocation5 + $0x34d0] sm:$0xff]
    %v1767 = vld [vmem:[#allocation5 + $0x34d8] sm:$0xff]
    %v1768 = vld [vmem:[#allocation5 + $0x34e0] sm:$0xff]
    %v1769 = vld [vmem:[#allocation5 + $0x34e8] sm:$0xff]
    %v1770 = vld [vmem:[#allocation5 + $0x34f0] sm:$0xff]
    %v1771 = vld [vmem:[#allocation5 + $0x34f8] sm:$0xff]
    %v1772 = vld [vmem:[#allocation5 + $0x3500] sm:$0xff]
    %v1773 = vld [vmem:[#allocation5 + $0x3508] sm:$0xff]
    %v1774 = vld [vmem:[#allocation5 + $0x3510] sm:$0xff]
    %v1775 = vld [vmem:[#allocation5 + $0x3518] sm:$0xff]
    %v1776 = vld [vmem:[#allocation5 + $0x3520] sm:$0xff]
    %v1777 = vld [vmem:[#allocation5 + $0x3528] sm:$0xff]
    %v1778 = vld [vmem:[#allocation5 + $0x3530] sm:$0xff]
    %v1779 = vld [vmem:[#allocation5 + $0x3538] sm:$0xff]
    %v1780 = vld [vmem:[#allocation5 + $0x3540] sm:$0xff]
    %v1781 = vld [vmem:[#allocation5 + $0x3548] sm:$0xff]
    %v1782 = vld [vmem:[#allocation5 + $0x3550] sm:$0xff]
    %v1783 = vld [vmem:[#allocation5 + $0x3558] sm:$0xff]
    %v1784 = vld [vmem:[#allocation5 + $0x3560] sm:$0xff]
    %v1785 = vld [vmem:[#allocation5 + $0x3568] sm:$0xff]
    %v1786 = vld [vmem:[#allocation5 + $0x3570] sm:$0xff]
    %v1787 = vld [vmem:[#allocation5 + $0x3578] sm:$0xff]
    %v1788 = vld [vmem:[#allocation5 + $0x3580] sm:$0xff]
    %v1789 = vld [vmem:[#allocation5 + $0x3588] sm:$0xff]
    %v1790 = vld [vmem:[#allocation5 + $0x3590] sm:$0xff]
    %v1791 = vld [vmem:[#allocation5 + $0x3598] sm:$0xff]
    %v1792 = vld [vmem:[#allocation5 + $0x35a0] sm:$0xff]
    %v1793 = vld [vmem:[#allocation5 + $0x35a8] sm:$0xff]
    %v1794 = vld [vmem:[#allocation5 + $0x35b0] sm:$0xff]
    %v1795 = vld [vmem:[#allocation5 + $0x35b8] sm:$0xff]
    %v1796 = vld [vmem:[#allocation5 + $0x35c0] sm:$0xff]
    %v1797 = vld [vmem:[#allocation5 + $0x35c8] sm:$0xff]
    %v1798 = vld [vmem:[#allocation5 + $0x35d0] sm:$0xff]
    %v1799 = vld [vmem:[#allocation5 + $0x35d8] sm:$0xff]
    %v1800 = vld [vmem:[#allocation5 + $0x35e0] sm:$0xff]
    %v1801 = vld [vmem:[#allocation5 + $0x35e8] sm:$0xff]
    %v1802 = vld [vmem:[#allocation5 + $0x35f0] sm:$0xff]
    %v1803 = vld [vmem:[#allocation5 + $0x35f8] sm:$0xff]
    %v1804 = vld [vmem:[#allocation5 + $0x3600] sm:$0xff]
    %v1805 = vld [vmem:[#allocation5 + $0x3608] sm:$0xff]
    %v1806 = vld [vmem:[#allocation5 + $0x3610] sm:$0xff]
    %v1807 = vld [vmem:[#allocation5 + $0x3618] sm:$0xff]
    %v1808 = vld [vmem:[#allocation5 + $0x3620] sm:$0xff]
    %v1809 = vld [vmem:[#allocation5 + $0x3628] sm:$0xff]
    %v1810 = vld [vmem:[#allocation5 + $0x3630] sm:$0xff]
    %v1811 = vld [vmem:[#allocation5 + $0x3638] sm:$0xff]
    %v1812 = vld [vmem:[#allocation5 + $0x3640] sm:$0xff]
    %v1813 = vld [vmem:[#allocation5 + $0x3648] sm:$0xff]
    %v1814 = vld [vmem:[#allocation5 + $0x3650] sm:$0xff]
    %v1815 = vld [vmem:[#allocation5 + $0x3658] sm:$0xff]
    %v1816 = vld [vmem:[#allocation5 + $0x3660] sm:$0xff]
    %v1817 = vld [vmem:[#allocation5 + $0x3668] sm:$0xff]
    %v1818 = vld [vmem:[#allocation5 + $0x3670] sm:$0xff]
    %v1819 = vld [vmem:[#allocation5 + $0x3678] sm:$0xff]
    %v1820 = vld [vmem:[#allocation5 + $0x3680] sm:$0xff]
    %v1821 = vld [vmem:[#allocation5 + $0x3688] sm:$0xff]
    %v1822 = vld [vmem:[#allocation5 + $0x3690] sm:$0xff]
    %v1823 = vld [vmem:[#allocation5 + $0x3698] sm:$0xff]
    %v1824 = vld [vmem:[#allocation5 + $0x36a0] sm:$0xff]
    %v1825 = vld [vmem:[#allocation5 + $0x36a8] sm:$0xff]
    %v1826 = vld [vmem:[#allocation5 + $0x36b0] sm:$0xff]
    %v1827 = vld [vmem:[#allocation5 + $0x36b8] sm:$0xff]
    %v1828 = vld [vmem:[#allocation5 + $0x36c0] sm:$0xff]
    %v1829 = vld [vmem:[#allocation5 + $0x36c8] sm:$0xff]
    %v1830 = vld [vmem:[#allocation5 + $0x36d0] sm:$0xff]
    %v1831 = vld [vmem:[#allocation5 + $0x36d8] sm:$0xff]
    %v1832 = vld [vmem:[#allocation5 + $0x36e0] sm:$0xff]
    %v1833 = vld [vmem:[#allocation5 + $0x36e8] sm:$0xff]
    %v1834 = vld [vmem:[#allocation5 + $0x36f0] sm:$0xff]
    %v1835 = vld [vmem:[#allocation5 + $0x36f8] sm:$0xff]
    %v1836 = vld [vmem:[#allocation5 + $0x3700] sm:$0xff]
    %v1837 = vld [vmem:[#allocation5 + $0x3708] sm:$0xff]
    %v1838 = vld [vmem:[#allocation5 + $0x3710] sm:$0xff]
    %v1839 = vld [vmem:[#allocation5 + $0x3718] sm:$0xff]
    %v1840 = vld [vmem:[#allocation5 + $0x3720] sm:$0xff]
    %v1841 = vld [vmem:[#allocation5 + $0x3728] sm:$0xff]
    %v1842 = vld [vmem:[#allocation5 + $0x3730] sm:$0xff]
    %v1843 = vld [vmem:[#allocation5 + $0x3738] sm:$0xff]
    %v1844 = vld [vmem:[#allocation5 + $0x3740] sm:$0xff]
    %v1845 = vld [vmem:[#allocation5 + $0x3748] sm:$0xff]
    %v1846 = vld [vmem:[#allocation5 + $0x3750] sm:$0xff]
    %v1847 = vld [vmem:[#allocation5 + $0x3758] sm:$0xff]
    %v1848 = vld [vmem:[#allocation5 + $0x3760] sm:$0xff]
    %v1849 = vld [vmem:[#allocation5 + $0x3768] sm:$0xff]
    %v1850 = vld [vmem:[#allocation5 + $0x3770] sm:$0xff]
    %v1851 = vld [vmem:[#allocation5 + $0x3778] sm:$0xff]
    %v1852 = vld [vmem:[#allocation5 + $0x3780] sm:$0xff]
    %v1853 = vld [vmem:[#allocation5 + $0x3788] sm:$0xff]
    %v1854 = vld [vmem:[#allocation5 + $0x3790] sm:$0xff]
    %v1855 = vld [vmem:[#allocation5 + $0x3798] sm:$0xff]
    %v1856 = vld [vmem:[#allocation5 + $0x37a0] sm:$0xff]
    %v1857 = vld [vmem:[#allocation5 + $0x37a8] sm:$0xff]
    %v1858 = vld [vmem:[#allocation5 + $0x37b0] sm:$0xff]
    %v1859 = vld [vmem:[#allocation5 + $0x37b8] sm:$0xff]
    %v1860 = vld [vmem:[#allocation5 + $0x37c0] sm:$0xff]
    %v1861 = vld [vmem:[#allocation5 + $0x37c8] sm:$0xff]
    %v1862 = vld [vmem:[#allocation5 + $0x37d0] sm:$0xff]
    %v1863 = vld [vmem:[#allocation5 + $0x37d8] sm:$0xff]
    %v1864 = vld [vmem:[#allocation5 + $0x37e0] sm:$0xff]
    %v1865 = vld [vmem:[#allocation5 + $0x37e8] sm:$0xff]
    %v1866 = vld [vmem:[#allocation5 + $0x37f0] sm:$0xff]
    %v1867 = vld [vmem:[#allocation5 + $0x37f8] sm:$0xff]
    %v1868 = vld [vmem:[#allocation5 + $0x3800] sm:$0xff]
    %v1869 = vld [vmem:[#allocation5 + $0x3808] sm:$0xff]
    %v1870 = vld [vmem:[#allocation5 + $0x3810] sm:$0xff]
    %v1871 = vld [vmem:[#allocation5 + $0x3818] sm:$0xff]
    %v1872 = vld [vmem:[#allocation5 + $0x3820] sm:$0xff]
    %v1873 = vld [vmem:[#allocation5 + $0x3828] sm:$0xff]
    %v1874 = vld [vmem:[#allocation5 + $0x3830] sm:$0xff]
    %v1875 = vld [vmem:[#allocation5 + $0x3838] sm:$0xff]
    %v1876 = vld [vmem:[#allocation5 + $0x3840] sm:$0xff]
    %v1877 = vld [vmem:[#allocation5 + $0x3848] sm:$0xff]
    %v1878 = vld [vmem:[#allocation5 + $0x3850] sm:$0xff]
    %v1879 = vld [vmem:[#allocation5 + $0x3858] sm:$0xff]
    %v1880 = vld [vmem:[#allocation5 + $0x3860] sm:$0xff]
    %v1881 = vld [vmem:[#allocation5 + $0x3868] sm:$0xff]
    %v1882 = vld [vmem:[#allocation5 + $0x3870] sm:$0xff]
    %v1883 = vld [vmem:[#allocation5 + $0x3878] sm:$0xff]
    %v1884 = vld [vmem:[#allocation5 + $0x3880] sm:$0xff]
    %v1885 = vld [vmem:[#allocation5 + $0x3888] sm:$0xff]
    %v1886 = vld [vmem:[#allocation5 + $0x3890] sm:$0xff]
    %v1887 = vld [vmem:[#allocation5 + $0x3898] sm:$0xff]
    %v1888 = vld [vmem:[#allocation5 + $0x38a0] sm:$0xff]
    %v1889 = vld [vmem:[#allocation5 + $0x38a8] sm:$0xff]
    %v1890 = vld [vmem:[#allocation5 + $0x38b0] sm:$0xff]
    %v1891 = vld [vmem:[#allocation5 + $0x38b8] sm:$0xff]
    %v1892 = vld [vmem:[#allocation5 + $0x38c0] sm:$0xff]
    %v1893 = vld [vmem:[#allocation5 + $0x38c8] sm:$0xff]
    %v1894 = vld [vmem:[#allocation5 + $0x38d0] sm:$0xff]
    %v1895 = vld [vmem:[#allocation5 + $0x38d8] sm:$0xff]
    %v1896 = vld [vmem:[#allocation5 + $0x38e0] sm:$0xff]
    %v1897 = vld [vmem:[#allocation5 + $0x38e8] sm:$0xff]
    %v1898 = vld [vmem:[#allocation5 + $0x38f0] sm:$0xff]
    %v1899 = vld [vmem:[#allocation5 + $0x38f8] sm:$0xff]
    %v1900 = vld [vmem:[#allocation5 + $0x3900] sm:$0xff]
    %v1901 = vld [vmem:[#allocation5 + $0x3908] sm:$0xff]
    %v1902 = vld [vmem:[#allocation5 + $0x3910] sm:$0xff]
    %v1903 = vld [vmem:[#allocation5 + $0x3918] sm:$0xff]
    %v1904 = vld [vmem:[#allocation5 + $0x3920] sm:$0xff]
    %v1905 = vld [vmem:[#allocation5 + $0x3928] sm:$0xff]
    %v1906 = vld [vmem:[#allocation5 + $0x3930] sm:$0xff]
    %v1907 = vld [vmem:[#allocation5 + $0x3938] sm:$0xff]
    %v1908 = vld [vmem:[#allocation5 + $0x3940] sm:$0xff]
    %v1909 = vld [vmem:[#allocation5 + $0x3948] sm:$0xff]
    %v1910 = vld [vmem:[#allocation5 + $0x3950] sm:$0xff]
    %v1911 = vld [vmem:[#allocation5 + $0x3958] sm:$0xff]
    %v1912 = vld [vmem:[#allocation5 + $0x3960] sm:$0xff]
    %v1913 = vld [vmem:[#allocation5 + $0x3968] sm:$0xff]
    %v1914 = vld [vmem:[#allocation5 + $0x3970] sm:$0xff]
    %v1915 = vld [vmem:[#allocation5 + $0x3978] sm:$0xff]
    %v1916 = vld [vmem:[#allocation5 + $0x3980] sm:$0xff]
    %v1917 = vld [vmem:[#allocation5 + $0x3988] sm:$0xff]
    %v1918 = vld [vmem:[#allocation5 + $0x3990] sm:$0xff]
    %v1919 = vld [vmem:[#allocation5 + $0x3998] sm:$0xff]
    %v1920 = vld [vmem:[#allocation5 + $0x39a0] sm:$0xff]
    %v1921 = vld [vmem:[#allocation5 + $0x39a8] sm:$0xff]
    %v1922 = vld [vmem:[#allocation5 + $0x39b0] sm:$0xff]
    %v1923 = vld [vmem:[#allocation5 + $0x39b8] sm:$0xff]
    %v1924 = vld [vmem:[#allocation5 + $0x39c0] sm:$0xff]
    %v1925 = vld [vmem:[#allocation5 + $0x39c8] sm:$0xff]
    %v1926 = vld [vmem:[#allocation5 + $0x39d0] sm:$0xff]
    %v1927 = vld [vmem:[#allocation5 + $0x39d8] sm:$0xff]
    %v1928 = vld [vmem:[#allocation5 + $0x39e0] sm:$0xff]
    %v1929 = vld [vmem:[#allocation5 + $0x39e8] sm:$0xff]
    %v1930 = vld [vmem:[#allocation5 + $0x39f0] sm:$0xff]
    %v1931 = vld [vmem:[#allocation5 + $0x39f8] sm:$0xff]
    %v1932 = vld [vmem:[#allocation5 + $0x3a00] sm:$0xff]
    %v1933 = vld [vmem:[#allocation5 + $0x3a08] sm:$0xff]
    %v1934 = vld [vmem:[#allocation5 + $0x3a10] sm:$0xff]
    %v1935 = vld [vmem:[#allocation5 + $0x3a18] sm:$0xff]
    %v1936 = vld [vmem:[#allocation5 + $0x3a20] sm:$0xff]
    %v1937 = vld [vmem:[#allocation5 + $0x3a28] sm:$0xff]
    %v1938 = vld [vmem:[#allocation5 + $0x3a30] sm:$0xff]
    %v1939 = vld [vmem:[#allocation5 + $0x3a38] sm:$0xff]
    %v1940 = vld [vmem:[#allocation5 + $0x3a40] sm:$0xff]
    %v1941 = vld [vmem:[#allocation5 + $0x3a48] sm:$0xff]
    %v1942 = vld [vmem:[#allocation5 + $0x3a50] sm:$0xff]
    %v1943 = vld [vmem:[#allocation5 + $0x3a58] sm:$0xff]
    %v1944 = vld [vmem:[#allocation5 + $0x3a60] sm:$0xff]
    %v1945 = vld [vmem:[#allocation5 + $0x3a68] sm:$0xff]
    %v1946 = vld [vmem:[#allocation5 + $0x3a70] sm:$0xff]
    %v1947 = vld [vmem:[#allocation5 + $0x3a78] sm:$0xff]
    %v1948 = vld [vmem:[#allocation5 + $0x3a80] sm:$0xff]
    %v1949 = vld [vmem:[#allocation5 + $0x3a88] sm:$0xff]
    %v1950 = vld [vmem:[#allocation5 + $0x3a90] sm:$0xff]
    %v1951 = vld [vmem:[#allocation5 + $0x3a98] sm:$0xff]
    %v1952 = vld [vmem:[#allocation5 + $0x3aa0] sm:$0xff]
    %v1953 = vld [vmem:[#allocation5 + $0x3aa8] sm:$0xff]
    %v1954 = vld [vmem:[#allocation5 + $0x3ab0] sm:$0xff]
    %v1955 = vld [vmem:[#allocation5 + $0x3ab8] sm:$0xff]
    %v1956 = vld [vmem:[#allocation5 + $0x3ac0] sm:$0xff]
    %v1957 = vld [vmem:[#allocation5 + $0x3ac8] sm:$0xff]
    %v1958 = vld [vmem:[#allocation5 + $0x3ad0] sm:$0xff]
    %v1959 = vld [vmem:[#allocation5 + $0x3ad8] sm:$0xff]
    %v1960 = vld [vmem:[#allocation5 + $0x3ae0] sm:$0xff]
    %v1961 = vld [vmem:[#allocation5 + $0x3ae8] sm:$0xff]
    %v1962 = vld [vmem:[#allocation5 + $0x3af0] sm:$0xff]
    %v1963 = vld [vmem:[#allocation5 + $0x3af8] sm:$0xff]
    %v1964 = vld [vmem:[#allocation5 + $0x3b00] sm:$0xff]
    %v1965 = vld [vmem:[#allocation5 + $0x3b08] sm:$0xff]
    %v1966 = vld [vmem:[#allocation5 + $0x3b10] sm:$0xff]
    %v1967 = vld [vmem:[#allocation5 + $0x3b18] sm:$0xff]
    %v1968 = vld [vmem:[#allocation5 + $0x3b20] sm:$0xff]
    %v1969 = vld [vmem:[#allocation5 + $0x3b28] sm:$0xff]
    %v1970 = vld [vmem:[#allocation5 + $0x3b30] sm:$0xff]
    %v1971 = vld [vmem:[#allocation5 + $0x3b38] sm:$0xff]
    %v1972 = vld [vmem:[#allocation5 + $0x3b40] sm:$0xff]
    %v1973 = vld [vmem:[#allocation5 + $0x3b48] sm:$0xff]
    %v1974 = vld [vmem:[#allocation5 + $0x3b50] sm:$0xff]
    %v1975 = vld [vmem:[#allocation5 + $0x3b58] sm:$0xff]
    %v1976 = vld [vmem:[#allocation5 + $0x3b60] sm:$0xff]
    %v1977 = vld [vmem:[#allocation5 + $0x3b68] sm:$0xff]
    %v1978 = vld [vmem:[#allocation5 + $0x3b70] sm:$0xff]
    %v1979 = vld [vmem:[#allocation5 + $0x3b78] sm:$0xff]
    %v1980 = vld [vmem:[#allocation5 + $0x3b80] sm:$0xff]
    %v1981 = vld [vmem:[#allocation5 + $0x3b88] sm:$0xff]
    %v1982 = vld [vmem:[#allocation5 + $0x3b90] sm:$0xff]
    %v1983 = vld [vmem:[#allocation5 + $0x3b98] sm:$0xff]
    %v1984 = vld [vmem:[#allocation5 + $0x3ba0] sm:$0xff]
    %v1985 = vld [vmem:[#allocation5 + $0x3ba8] sm:$0xff]
    %v1986 = vld [vmem:[#allocation5 + $0x3bb0] sm:$0xff]
    %v1987 = vld [vmem:[#allocation5 + $0x3bb8] sm:$0xff]
    %v1988 = vld [vmem:[#allocation5 + $0x3bc0] sm:$0xff]
    %v1989 = vld [vmem:[#allocation5 + $0x3bc8] sm:$0xff]
    %v1990 = vld [vmem:[#allocation5 + $0x3bd0] sm:$0xff]
    %v1991 = vld [vmem:[#allocation5 + $0x3bd8] sm:$0xff]
    %v1992 = vld [vmem:[#allocation5 + $0x3be0] sm:$0xff]
    %v1993 = vld [vmem:[#allocation5 + $0x3be8] sm:$0xff]
    %v1994 = vld [vmem:[#allocation5 + $0x3bf0] sm:$0xff]
    %v1995 = vld [vmem:[#allocation5 + $0x3bf8] sm:$0xff]
    %v1996 = vld [vmem:[#allocation5 + $0x3c00] sm:$0xff]
    %v1997 = vld [vmem:[#allocation5 + $0x3c08] sm:$0xff]
    %v1998 = vld [vmem:[#allocation5 + $0x3c10] sm:$0xff]
    %v1999 = vld [vmem:[#allocation5 + $0x3c18] sm:$0xff]
    %v2000 = vld [vmem:[#allocation5 + $0x3c20] sm:$0xff]
    %v2001 = vld [vmem:[#allocation5 + $0x3c28] sm:$0xff]
    %v2002 = vld [vmem:[#allocation5 + $0x3c30] sm:$0xff]
    %v2003 = vld [vmem:[#allocation5 + $0x3c38] sm:$0xff]
    %v2004 = vld [vmem:[#allocation5 + $0x3c40] sm:$0xff]
    %v2005 = vld [vmem:[#allocation5 + $0x3c48] sm:$0xff]
    %v2006 = vld [vmem:[#allocation5 + $0x3c50] sm:$0xff]
    %v2007 = vld [vmem:[#allocation5 + $0x3c58] sm:$0xff]
    %v2008 = vld [vmem:[#allocation5 + $0x3c60] sm:$0xff]
    %v2009 = vld [vmem:[#allocation5 + $0x3c68] sm:$0xff]
    %v2010 = vld [vmem:[#allocation5 + $0x3c70] sm:$0xff]
    %v2011 = vld [vmem:[#allocation5 + $0x3c78] sm:$0xff]
    %v2012 = vld [vmem:[#allocation5 + $0x3c80] sm:$0xff]
    %v2013 = vld [vmem:[#allocation5 + $0x3c88] sm:$0xff]
    %v2014 = vld [vmem:[#allocation5 + $0x3c90] sm:$0xff]
    %v2015 = vld [vmem:[#allocation5 + $0x3c98] sm:$0xff]
    %v2016 = vld [vmem:[#allocation5 + $0x3ca0] sm:$0xff]
    %v2017 = vld [vmem:[#allocation5 + $0x3ca8] sm:$0xff]
    %v2018 = vld [vmem:[#allocation5 + $0x3cb0] sm:$0xff]
    %v2019 = vld [vmem:[#allocation5 + $0x3cb8] sm:$0xff]
    %v2020 = vld [vmem:[#allocation5 + $0x3cc0] sm:$0xff]
    %v2021 = vld [vmem:[#allocation5 + $0x3cc8] sm:$0xff]
    %v2022 = vld [vmem:[#allocation5 + $0x3cd0] sm:$0xff]
    %v2023 = vld [vmem:[#allocation5 + $0x3cd8] sm:$0xff]
    %v2024 = vld [vmem:[#allocation5 + $0x3ce0] sm:$0xff]
    %v2025 = vld [vmem:[#allocation5 + $0x3ce8] sm:$0xff]
    %v2026 = vld [vmem:[#allocation5 + $0x3cf0] sm:$0xff]
    %v2027 = vld [vmem:[#allocation5 + $0x3cf8] sm:$0xff]
    %v2028 = vld [vmem:[#allocation5 + $0x3d00] sm:$0xff]
    %v2029 = vld [vmem:[#allocation5 + $0x3d08] sm:$0xff]
    %v2030 = vld [vmem:[#allocation5 + $0x3d10] sm:$0xff]
    %v2031 = vld [vmem:[#allocation5 + $0x3d18] sm:$0xff]
    %v2032 = vld [vmem:[#allocation5 + $0x3d20] sm:$0xff]
    %v2033 = vld [vmem:[#allocation5 + $0x3d28] sm:$0xff]
    %v2034 = vld [vmem:[#allocation5 + $0x3d30] sm:$0xff]
    %v2035 = vld [vmem:[#allocation5 + $0x3d38] sm:$0xff]
    %v2036 = vld [vmem:[#allocation5 + $0x3d40] sm:$0xff]
    %v2037 = vld [vmem:[#allocation5 + $0x3d48] sm:$0xff]
    %v2038 = vld [vmem:[#allocation5 + $0x3d50] sm:$0xff]
    %v2039 = vld [vmem:[#allocation5 + $0x3d58] sm:$0xff]
    %v2040 = vld [vmem:[#allocation5 + $0x3d60] sm:$0xff]
    %v2041 = vld [vmem:[#allocation5 + $0x3d68] sm:$0xff]
    %v2042 = vld [vmem:[#allocation5 + $0x3d70] sm:$0xff]
    %v2043 = vld [vmem:[#allocation5 + $0x3d78] sm:$0xff]
    %v2044 = vld [vmem:[#allocation5 + $0x3d80] sm:$0xff]
    %v2045 = vld [vmem:[#allocation5 + $0x3d88] sm:$0xff]
    %v2046 = vld [vmem:[#allocation5 + $0x3d90] sm:$0xff]
    %v2047 = vld [vmem:[#allocation5 + $0x3d98] sm:$0xff]
    %v2048 = vld [vmem:[#allocation5 + $0x3da0] sm:$0xff]
    %v2049 = vld [vmem:[#allocation5 + $0x3da8] sm:$0xff]
    %v2050 = vld [vmem:[#allocation5 + $0x3db0] sm:$0xff]
    %v2051 = vld [vmem:[#allocation5 + $0x3db8] sm:$0xff]
    %v2052 = vld [vmem:[#allocation5 + $0x3dc0] sm:$0xff]
    %v2053 = vld [vmem:[#allocation5 + $0x3dc8] sm:$0xff]
    %v2054 = vld [vmem:[#allocation5 + $0x3dd0] sm:$0xff]
    %v2055 = vld [vmem:[#allocation5 + $0x3dd8] sm:$0xff]
    %v2056 = vld [vmem:[#allocation5 + $0x3de0] sm:$0xff]
    %v2057 = vld [vmem:[#allocation5 + $0x3de8] sm:$0xff]
    %v2058 = vld [vmem:[#allocation5 + $0x3df0] sm:$0xff]
    %v2059 = vld [vmem:[#allocation5 + $0x3df8] sm:$0xff]
    %v2060 = vld [vmem:[#allocation5 + $0x3e00] sm:$0xff]
    %v2061 = vld [vmem:[#allocation5 + $0x3e08] sm:$0xff]
    %v2062 = vld [vmem:[#allocation5 + $0x3e10] sm:$0xff]
    %v2063 = vld [vmem:[#allocation5 + $0x3e18] sm:$0xff]
    %v2064 = vld [vmem:[#allocation5 + $0x3e20] sm:$0xff]
    %v2065 = vld [vmem:[#allocation5 + $0x3e28] sm:$0xff]
    %v2066 = vld [vmem:[#allocation5 + $0x3e30] sm:$0xff]
    %v2067 = vld [vmem:[#allocation5 + $0x3e38] sm:$0xff]
    %v2068 = vld [vmem:[#allocation5 + $0x3e40] sm:$0xff]
    %v2069 = vld [vmem:[#allocation5 + $0x3e48] sm:$0xff]
    %v2070 = vld [vmem:[#allocation5 + $0x3e50] sm:$0xff]
    %v2071 = vld [vmem:[#allocation5 + $0x3e58] sm:$0xff]
    %v2072 = vld [vmem:[#allocation5 + $0x3e60] sm:$0xff]
    %v2073 = vld [vmem:[#allocation5 + $0x3e68] sm:$0xff]
    %v2074 = vld [vmem:[#allocation5 + $0x3e70] sm:$0xff]
    %v2075 = vld [vmem:[#allocation5 + $0x3e78] sm:$0xff]
    %v2076 = vld [vmem:[#allocation5 + $0x3e80] sm:$0xff]
    %v2077 = vld [vmem:[#allocation5 + $0x3e88] sm:$0xff]
    %v2078 = vld [vmem:[#allocation5 + $0x3e90] sm:$0xff]
    %v2079 = vld [vmem:[#allocation5 + $0x3e98] sm:$0xff]
    %v2080 = vld [vmem:[#allocation5 + $0x3ea0] sm:$0xff]
    %v2081 = vld [vmem:[#allocation5 + $0x3ea8] sm:$0xff]
    %v2082 = vld [vmem:[#allocation5 + $0x3eb0] sm:$0xff]
    %v2083 = vld [vmem:[#allocation5 + $0x3eb8] sm:$0xff]
    %v2084 = vld [vmem:[#allocation5 + $0x3ec0] sm:$0xff]
    %v2085 = vld [vmem:[#allocation5 + $0x3ec8] sm:$0xff]
    %v2086 = vld [vmem:[#allocation5 + $0x3ed0] sm:$0xff]
    %v2087 = vld [vmem:[#allocation5 + $0x3ed8] sm:$0xff]
    %v2088 = vld [vmem:[#allocation5 + $0x3ee0] sm:$0xff]
    %v2089 = vld [vmem:[#allocation5 + $0x3ee8] sm:$0xff]
    %v2090 = vld [vmem:[#allocation5 + $0x3ef0] sm:$0xff]
    %v2091 = vld [vmem:[#allocation5 + $0x3ef8] sm:$0xff]
    %v2092 = vld [vmem:[#allocation5 + $0x3f00] sm:$0xff]
    %v2093 = vld [vmem:[#allocation5 + $0x3f08] sm:$0xff]
    %v2094 = vld [vmem:[#allocation5 + $0x3f10] sm:$0xff]
    %v2095 = vld [vmem:[#allocation5 + $0x3f18] sm:$0xff]
    %v2096 = vld [vmem:[#allocation5 + $0x3f20] sm:$0xff]
    %v2097 = vld [vmem:[#allocation5 + $0x3f28] sm:$0xff]
    %v2098 = vld [vmem:[#allocation5 + $0x3f30] sm:$0xff]
    %v2099 = vld [vmem:[#allocation5 + $0x3f38] sm:$0xff]
    %v2100 = vld [vmem:[#allocation5 + $0x3f40] sm:$0xff]
    %v2101 = vld [vmem:[#allocation5 + $0x3f48] sm:$0xff]
    %v2102 = vld [vmem:[#allocation5 + $0x3f50] sm:$0xff]
    %v2103 = vld [vmem:[#allocation5 + $0x3f58] sm:$0xff]
    %v2104 = vld [vmem:[#allocation5 + $0x3f60] sm:$0xff]
    %v2105 = vld [vmem:[#allocation5 + $0x3f68] sm:$0xff]
    %v2106 = vld [vmem:[#allocation5 + $0x3f70] sm:$0xff]
    %v2107 = vld [vmem:[#allocation5 + $0x3f78] sm:$0xff]
    %v2108 = vld [vmem:[#allocation5 + $0x3f80] sm:$0xff]
    %v2109 = vld [vmem:[#allocation5 + $0x3f88] sm:$0xff]
    %v2110 = vld [vmem:[#allocation5 + $0x3f90] sm:$0xff]
    %v2111 = vld [vmem:[#allocation5 + $0x3f98] sm:$0xff]
    %v2112 = vld [vmem:[#allocation5 + $0x3fa0] sm:$0xff]
    %v2113 = vld [vmem:[#allocation5 + $0x3fa8] sm:$0xff]
    %v2114 = vld [vmem:[#allocation5 + $0x3fb0] sm:$0xff]
    %v2115 = vld [vmem:[#allocation5 + $0x3fb8] sm:$0xff]
    %v2116 = vld [vmem:[#allocation5 + $0x3fc0] sm:$0xff]
    %v2117 = vld [vmem:[#allocation5 + $0x3fc8] sm:$0xff]
    %v2118 = vld [vmem:[#allocation5 + $0x3fd0] sm:$0xff]
    %v2119 = vld [vmem:[#allocation5 + $0x3fd8] sm:$0xff]
    %v2120 = vld [vmem:[#allocation5 + $0x3fe0] sm:$0xff]
    %v2121 = vld [vmem:[#allocation5 + $0x3fe8] sm:$0xff]
    %v2122 = vld [vmem:[#allocation5 + $0x3ff0] sm:$0xff]
    %v2123 = vld [vmem:[#allocation5 + $0x3ff8] sm:$0xff]
    %s2124 = scalar_lea.vmem [#allocation5], 16384
    %v2125 = vld [vmem:[%s2124] ss:$8 sm:$0xf]
    %v2126 = vld [vmem:[%s2124] ss:$8 sm:$0xf0]
    %v2127 = vor.u32 %v2125, %v2126
    %v2128 = vld [vmem:[#allocation7] sm:$0xff]
    %v2129 = vld [vmem:[#allocation7 + $0x8] sm:$0xff]
    %v2130 = vld [vmem:[#allocation7 + $0x10] sm:$0xff]
    %v2131 = vld [vmem:[#allocation7 + $0x18] sm:$0xff]
    %v2132 = vld [vmem:[#allocation7 + $0x20] sm:$0xff]
    %v2133 = vld [vmem:[#allocation7 + $0x28] sm:$0xff]
    %v2134 = vld [vmem:[#allocation7 + $0x30] sm:$0xff]
    %v2135 = vld [vmem:[#allocation7 + $0x38] sm:$0xff]
    %v2136 = vld [vmem:[#allocation7 + $0x40] sm:$0xff]
    %v2137 = vld [vmem:[#allocation7 + $0x48] sm:$0xff]
    %v2138 = vld [vmem:[#allocation7 + $0x50] sm:$0xff]
    %v2139 = vld [vmem:[#allocation7 + $0x58] sm:$0xff]
    %v2140 = vld [vmem:[#allocation7 + $0x60] sm:$0xff]
    %v2141 = vld [vmem:[#allocation7 + $0x68] sm:$0xff]
    %v2142 = vld [vmem:[#allocation7 + $0x70] sm:$0xff]
    %v2143 = vld [vmem:[#allocation7 + $0x78] sm:$0xff]
    %v2144 = vld [vmem:[#allocation7 + $0x80] sm:$0xff]
    %v2145 = vld [vmem:[#allocation7 + $0x88] sm:$0xff]
    %v2146 = vld [vmem:[#allocation7 + $0x90] sm:$0xff]
    %v2147 = vld [vmem:[#allocation7 + $0x98] sm:$0xff]
    %v2148 = vld [vmem:[#allocation7 + $0xa0] sm:$0xff]
    %v2149 = vld [vmem:[#allocation7 + $0xa8] sm:$0xff]
    %v2150 = vld [vmem:[#allocation7 + $0xb0] sm:$0xff]
    %v2151 = vld [vmem:[#allocation7 + $0xb8] sm:$0xff]
    %v2152 = vld [vmem:[#allocation7 + $0xc0] sm:$0xff]
    %v2153 = vld [vmem:[#allocation7 + $0xc8] sm:$0xff]
    %v2154 = vld [vmem:[#allocation7 + $0xd0] sm:$0xff]
    %v2155 = vld [vmem:[#allocation7 + $0xd8] sm:$0xff]
    %v2156 = vld [vmem:[#allocation7 + $0xe0] sm:$0xff]
    %v2157 = vld [vmem:[#allocation7 + $0xe8] sm:$0xff]
    %v2158 = vld [vmem:[#allocation7 + $0xf0] sm:$0xff]
    %v2159 = vld [vmem:[#allocation7 + $0xf8] sm:$0xff]
    %v2160 = vld [vmem:[#allocation7 + $0x100] sm:$0xff]
    %v2161 = vld [vmem:[#allocation7 + $0x108] sm:$0xff]
    %v2162 = vld [vmem:[#allocation7 + $0x110] sm:$0xff]
    %v2163 = vld [vmem:[#allocation7 + $0x118] sm:$0xff]
    %v2164 = vld [vmem:[#allocation7 + $0x120] sm:$0xff]
    %v2165 = vld [vmem:[#allocation7 + $0x128] sm:$0xff]
    %v2166 = vld [vmem:[#allocation7 + $0x130] sm:$0xff]
    %v2167 = vld [vmem:[#allocation7 + $0x138] sm:$0xff]
    %v2168 = vld [vmem:[#allocation7 + $0x140] sm:$0xff]
    %v2169 = vld [vmem:[#allocation7 + $0x148] sm:$0xff]
    %v2170 = vld [vmem:[#allocation7 + $0x150] sm:$0xff]
    %v2171 = vld [vmem:[#allocation7 + $0x158] sm:$0xff]
    %v2172 = vld [vmem:[#allocation7 + $0x160] sm:$0xff]
    %v2173 = vld [vmem:[#allocation7 + $0x168] sm:$0xff]
    %v2174 = vld [vmem:[#allocation7 + $0x170] sm:$0xff]
    %v2175 = vld [vmem:[#allocation7 + $0x178] sm:$0xff]
    %v2176 = vld [vmem:[#allocation7 + $0x180] sm:$0xff]
    %v2177 = vld [vmem:[#allocation7 + $0x188] sm:$0xff]
    %v2178 = vld [vmem:[#allocation7 + $0x190] sm:$0xff]
    %v2179 = vld [vmem:[#allocation7 + $0x198] sm:$0xff]
    %v2180 = vld [vmem:[#allocation7 + $0x1a0] sm:$0xff]
    %v2181 = vld [vmem:[#allocation7 + $0x1a8] sm:$0xff]
    %v2182 = vld [vmem:[#allocation7 + $0x1b0] sm:$0xff]
    %v2183 = vld [vmem:[#allocation7 + $0x1b8] sm:$0xff]
    %v2184 = vld [vmem:[#allocation7 + $0x1c0] sm:$0xff]
    %v2185 = vld [vmem:[#allocation7 + $0x1c8] sm:$0xff]
    %v2186 = vld [vmem:[#allocation7 + $0x1d0] sm:$0xff]
    %v2187 = vld [vmem:[#allocation7 + $0x1d8] sm:$0xff]
    %v2188 = vld [vmem:[#allocation7 + $0x1e0] sm:$0xff]
    %v2189 = vld [vmem:[#allocation7 + $0x1e8] sm:$0xff]
    %v2190 = vld [vmem:[#allocation7 + $0x1f0] sm:$0xff]
    %v2191 = vld [vmem:[#allocation7 + $0x1f8] sm:$0xff]
    %v2192 = vld [vmem:[#allocation7 + $0x200] sm:$0xff]
    %v2193 = vld [vmem:[#allocation7 + $0x208] sm:$0xff]
    %v2194 = vld [vmem:[#allocation7 + $0x210] sm:$0xff]
    %v2195 = vld [vmem:[#allocation7 + $0x218] sm:$0xff]
    %v2196 = vld [vmem:[#allocation7 + $0x220] sm:$0xff]
    %v2197 = vld [vmem:[#allocation7 + $0x228] sm:$0xff]
    %v2198 = vld [vmem:[#allocation7 + $0x230] sm:$0xff]
    %v2199 = vld [vmem:[#allocation7 + $0x238] sm:$0xff]
    %v2200 = vld [vmem:[#allocation7 + $0x240] sm:$0xff]
    %v2201 = vld [vmem:[#allocation7 + $0x248] sm:$0xff]
    %v2202 = vld [vmem:[#allocation7 + $0x250] sm:$0xff]
    %v2203 = vld [vmem:[#allocation7 + $0x258] sm:$0xff]
    %v2204 = vld [vmem:[#allocation7 + $0x260] sm:$0xff]
    %v2205 = vld [vmem:[#allocation7 + $0x268] sm:$0xff]
    %v2206 = vld [vmem:[#allocation7 + $0x270] sm:$0xff]
    %v2207 = vld [vmem:[#allocation7 + $0x278] sm:$0xff]
    %v2208 = vld [vmem:[#allocation7 + $0x280] sm:$0xff]
    %v2209 = vld [vmem:[#allocation7 + $0x288] sm:$0xff]
    %v2210 = vld [vmem:[#allocation7 + $0x290] sm:$0xff]
    %v2211 = vld [vmem:[#allocation7 + $0x298] sm:$0xff]
    %v2212 = vld [vmem:[#allocation7 + $0x2a0] sm:$0xff]
    %v2213 = vld [vmem:[#allocation7 + $0x2a8] sm:$0xff]
    %v2214 = vld [vmem:[#allocation7 + $0x2b0] sm:$0xff]
    %v2215 = vld [vmem:[#allocation7 + $0x2b8] sm:$0xff]
    %v2216 = vld [vmem:[#allocation7 + $0x2c0] sm:$0xff]
    %v2217 = vld [vmem:[#allocation7 + $0x2c8] sm:$0xff]
    %v2218 = vld [vmem:[#allocation7 + $0x2d0] sm:$0xff]
    %v2219 = vld [vmem:[#allocation7 + $0x2d8] sm:$0xff]
    %v2220 = vld [vmem:[#allocation7 + $0x2e0] sm:$0xff]
    %v2221 = vld [vmem:[#allocation7 + $0x2e8] sm:$0xff]
    %v2222 = vld [vmem:[#allocation7 + $0x2f0] sm:$0xff]
    %v2223 = vld [vmem:[#allocation7 + $0x2f8] sm:$0xff]
    %v2224 = vld [vmem:[#allocation7 + $0x300] sm:$0xff]
    %v2225 = vld [vmem:[#allocation7 + $0x308] sm:$0xff]
    %v2226 = vld [vmem:[#allocation7 + $0x310] sm:$0xff]
    %v2227 = vld [vmem:[#allocation7 + $0x318] sm:$0xff]
    %v2228 = vld [vmem:[#allocation7 + $0x320] sm:$0xff]
    %v2229 = vld [vmem:[#allocation7 + $0x328] sm:$0xff]
    %v2230 = vld [vmem:[#allocation7 + $0x330] sm:$0xff]
    %v2231 = vld [vmem:[#allocation7 + $0x338] sm:$0xff]
    %v2232 = vld [vmem:[#allocation7 + $0x340] sm:$0xff]
    %v2233 = vld [vmem:[#allocation7 + $0x348] sm:$0xff]
    %v2234 = vld [vmem:[#allocation7 + $0x350] sm:$0xff]
    %v2235 = vld [vmem:[#allocation7 + $0x358] sm:$0xff]
    %v2236 = vld [vmem:[#allocation7 + $0x360] sm:$0xff]
    %v2237 = vld [vmem:[#allocation7 + $0x368] sm:$0xff]
    %v2238 = vld [vmem:[#allocation7 + $0x370] sm:$0xff]
    %v2239 = vld [vmem:[#allocation7 + $0x378] sm:$0xff]
    %v2240 = vld [vmem:[#allocation7 + $0x380] sm:$0xff]
    %v2241 = vld [vmem:[#allocation7 + $0x388] sm:$0xff]
    %v2242 = vld [vmem:[#allocation7 + $0x390] sm:$0xff]
    %v2243 = vld [vmem:[#allocation7 + $0x398] sm:$0xff]
    %v2244 = vld [vmem:[#allocation7 + $0x3a0] sm:$0xff]
    %v2245 = vld [vmem:[#allocation7 + $0x3a8] sm:$0xff]
    %v2246 = vld [vmem:[#allocation7 + $0x3b0] sm:$0xff]
    %v2247 = vld [vmem:[#allocation7 + $0x3b8] sm:$0xff]
    %v2248 = vld [vmem:[#allocation7 + $0x3c0] sm:$0xff]
    %v2249 = vld [vmem:[#allocation7 + $0x3c8] sm:$0xff]
    %v2250 = vld [vmem:[#allocation7 + $0x3d0] sm:$0xff]
    %v2251 = vld [vmem:[#allocation7 + $0x3d8] sm:$0xff]
    %v2252 = vld [vmem:[#allocation7 + $0x3e0] sm:$0xff]
    %v2253 = vld [vmem:[#allocation7 + $0x3e8] sm:$0xff]
    %v2254 = vld [vmem:[#allocation7 + $0x3f0] sm:$0xff]
    %v2255 = vld [vmem:[#allocation7 + $0x3f8] sm:$0xff]
    %v2256 = vld [vmem:[#allocation7 + $0x400] sm:$0x1]
    %v2258 = vperm.slane %v2127, 0
    %v2259 = vperm.slane %v2127, 1
    %v2260 = vperm.slane %v2127, 2
    %v2261 = vperm.slane %v2127, 3
    %v2262 = vperm.slane %v2127, 4
    %v2263 = vperm.slane %v2127, 5
    %v2264 = vperm.slane %v2127, 6
    %v2265 = vperm.slane %v2127, 7
    %2274 = vmatpush.msra.mxu0 %v196
    %2275 = vmatpush.msra.mxu0 %v188
    %2276 = vmatpush.msra.mxu0 %v180
    %2277 = vmatpush.msra.mxu0 %v172
    %2278 = vmatpush.msra.mxu0 %v164
    %2279 = vmatpush.msra.mxu0 %v156
    %2280 = vmatpush.msra.mxu0 %v148
    %2281 = vmatpush.msra.mxu0 %v140
    %2282 = vmatpush.msra.mxu0 %v132
    %2283 = vmatpush.msra.mxu0 %v124
    %2284 = vmatpush.msra.mxu0 %v116
    %2285 = vmatpush.msra.mxu0 %v108
    %2286 = vmatpush.msra.mxu0 %v100
    %2287 = vmatpush.msra.mxu0 %v92
    %2288 = vmatpush.msra.mxu0 %v84
    %2289 = vmatpush.msra.mxu0 %v76
    %2290 = vmatmul.f32.gmra.mxu0 %v60
    %v2291 = vpop.f32.mrf.mxu0
    %v2292 = vadd.f32 %v2258, %v2291
    %2293 = vdwg.mxu0
    %2294 = vmatpush.msra.mxu0 %v324
    %2295 = vmatpush.msra.mxu0 %v316
    %2296 = vmatpush.msra.mxu0 %v308
    %2297 = vmatpush.msra.mxu0 %v300
    %2298 = vmatpush.msra.mxu0 %v292
    %2299 = vmatpush.msra.mxu0 %v284
    %2300 = vmatpush.msra.mxu0 %v276
    %2301 = vmatpush.msra.mxu0 %v268
    %2302 = vmatpush.msra.mxu0 %v260
    %2303 = vmatpush.msra.mxu0 %v252
    %2304 = vmatpush.msra.mxu0 %v244
    %2305 = vmatpush.msra.mxu0 %v236
    %2306 = vmatpush.msra.mxu0 %v228
    %2307 = vmatpush.msra.mxu0 %v220
    %2308 = vmatpush.msra.mxu0 %v212
    %2309 = vmatpush.msra.mxu0 %v204
    %2310 = vmatmul.f32.gmra.mxu0 %v61
    %v2311 = vpop.f32.mrf.mxu0
    %v2312 = vadd.f32 %v2292, %v2311
    %2313 = vdwg.mxu0
    %2314 = vmatpush.msra.mxu0 %v452
    %2315 = vmatpush.msra.mxu0 %v444
    %2316 = vmatpush.msra.mxu0 %v436
    %2317 = vmatpush.msra.mxu0 %v428
    %2318 = vmatpush.msra.mxu0 %v420
    %2319 = vmatpush.msra.mxu0 %v412
    %2320 = vmatpush.msra.mxu0 %v404
    %2321 = vmatpush.msra.mxu0 %v396
    %2322 = vmatpush.msra.mxu0 %v388
    %2323 = vmatpush.msra.mxu0 %v380
    %2324 = vmatpush.msra.mxu0 %v372
    %2325 = vmatpush.msra.mxu0 %v364
    %2326 = vmatpush.msra.mxu0 %v356
    %2327 = vmatpush.msra.mxu0 %v348
    %2328 = vmatpush.msra.mxu0 %v340
    %2329 = vmatpush.msra.mxu0 %v332
    %2330 = vmatmul.f32.gmra.mxu0 %v62
    %v2331 = vpop.f32.mrf.mxu0
    %v2332 = vadd.f32 %v2312, %v2331
    %2333 = vdwg.mxu0
    %2334 = vmatpush.msra.mxu0 %v580
    %2335 = vmatpush.msra.mxu0 %v572
    %2336 = vmatpush.msra.mxu0 %v564
    %2337 = vmatpush.msra.mxu0 %v556
    %2338 = vmatpush.msra.mxu0 %v548
    %2339 = vmatpush.msra.mxu0 %v540
    %2340 = vmatpush.msra.mxu0 %v532
    %2341 = vmatpush.msra.mxu0 %v524
    %2342 = vmatpush.msra.mxu0 %v516
    %2343 = vmatpush.msra.mxu0 %v508
    %2344 = vmatpush.msra.mxu0 %v500
    %2345 = vmatpush.msra.mxu0 %v492
    %2346 = vmatpush.msra.mxu0 %v484
    %2347 = vmatpush.msra.mxu0 %v476
    %2348 = vmatpush.msra.mxu0 %v468
    %2349 = vmatpush.msra.mxu0 %v460
    %2350 = vmatmul.f32.gmra.mxu0 %v63
    %v2351 = vpop.f32.mrf.mxu0
    %v2352 = vadd.f32 %v2332, %v2351
    %2353 = vdwg.mxu0
    %2354 = vmatpush.msra.mxu0 %v708
    %2355 = vmatpush.msra.mxu0 %v700
    %2356 = vmatpush.msra.mxu0 %v692
    %2357 = vmatpush.msra.mxu0 %v684
    %2358 = vmatpush.msra.mxu0 %v676
    %2359 = vmatpush.msra.mxu0 %v668
    %2360 = vmatpush.msra.mxu0 %v660
    %2361 = vmatpush.msra.mxu0 %v652
    %2362 = vmatpush.msra.mxu0 %v644
    %2363 = vmatpush.msra.mxu0 %v636
    %2364 = vmatpush.msra.mxu0 %v628
    %2365 = vmatpush.msra.mxu0 %v620
    %2366 = vmatpush.msra.mxu0 %v612
    %2367 = vmatpush.msra.mxu0 %v604
    %2368 = vmatpush.msra.mxu0 %v596
    %2369 = vmatpush.msra.mxu0 %v588
    %2370 = vmatmul.f32.gmra.mxu0 %v64
    %v2371 = vpop.f32.mrf.mxu0
    %v2372 = vadd.f32 %v2352, %v2371
    %2373 = vdwg.mxu0
    %2374 = vmatpush.msra.mxu0 %v836
    %2375 = vmatpush.msra.mxu0 %v828
    %2376 = vmatpush.msra.mxu0 %v820
    %2377 = vmatpush.msra.mxu0 %v812
    %2378 = vmatpush.msra.mxu0 %v804
    %2379 = vmatpush.msra.mxu0 %v796
    %2380 = vmatpush.msra.mxu0 %v788
    %2381 = vmatpush.msra.mxu0 %v780
    %2382 = vmatpush.msra.mxu0 %v772
    %2383 = vmatpush.msra.mxu0 %v764
    %2384 = vmatpush.msra.mxu0 %v756
    %2385 = vmatpush.msra.mxu0 %v748
    %2386 = vmatpush.msra.mxu0 %v740
    %2387 = vmatpush.msra.mxu0 %v732
    %2388 = vmatpush.msra.mxu0 %v724
    %2389 = vmatpush.msra.mxu0 %v716
    %2390 = vmatmul.f32.gmra.mxu0 %v65
    %v2391 = vpop.f32.mrf.mxu0
    %v2392 = vadd.f32 %v2372, %v2391
    %2393 = vdwg.mxu0
    %2394 = vmatpush.msra.mxu0 %v964
    %2395 = vmatpush.msra.mxu0 %v956
    %2396 = vmatpush.msra.mxu0 %v948
    %2397 = vmatpush.msra.mxu0 %v940
    %2398 = vmatpush.msra.mxu0 %v932
    %2399 = vmatpush.msra.mxu0 %v924
    %2400 = vmatpush.msra.mxu0 %v916
    %2401 = vmatpush.msra.mxu0 %v908
    %2402 = vmatpush.msra.mxu0 %v900
    %2403 = vmatpush.msra.mxu0 %v892
    %2404 = vmatpush.msra.mxu0 %v884
    %2405 = vmatpush.msra.mxu0 %v876
    %2406 = vmatpush.msra.mxu0 %v868
    %2407 = vmatpush.msra.mxu0 %v860
    %2408 = vmatpush.msra.mxu0 %v852
    %2409 = vmatpush.msra.mxu0 %v844
    %2410 = vmatmul.f32.gmra.mxu0 %v66
    %v2411 = vpop.f32.mrf.mxu0
    %v2412 = vadd.f32 %v2392, %v2411
    %2413 = vdwg.mxu0
    %2414 = vmatpush.msra.mxu0 %v1092
    %2415 = vmatpush.msra.mxu0 %v1084
    %2416 = vmatpush.msra.mxu0 %v1076
    %2417 = vmatpush.msra.mxu0 %v1068
    %2418 = vmatpush.msra.mxu0 %v1060
    %2419 = vmatpush.msra.mxu0 %v1052
    %2420 = vmatpush.msra.mxu0 %v1044
    %2421 = vmatpush.msra.mxu0 %v1036
    %2422 = vmatpush.msra.mxu0 %v1028
    %2423 = vmatpush.msra.mxu0 %v1020
    %2424 = vmatpush.msra.mxu0 %v1012
    %2425 = vmatpush.msra.mxu0 %v1004
    %2426 = vmatpush.msra.mxu0 %v996
    %2427 = vmatpush.msra.mxu0 %v988
    %2428 = vmatpush.msra.mxu0 %v980
    %2429 = vmatpush.msra.mxu0 %v972
    %2430 = vmatmul.f32.gmra.mxu0 %v67
    %v2431 = vpop.f32.mrf.mxu0
    %v2432 = vadd.f32 %v2412, %v2431
    %2433 = vdwg.mxu0
    %2434 = vmatpush.msra.mxu0 %v1220
    %2435 = vmatpush.msra.mxu0 %v1212
    %2436 = vmatpush.msra.mxu0 %v1204
    %2437 = vmatpush.msra.mxu0 %v1196
    %2438 = vmatpush.msra.mxu0 %v1188
    %2439 = vmatpush.msra.mxu0 %v1180
    %2440 = vmatpush.msra.mxu0 %v1172
    %2441 = vmatpush.msra.mxu0 %v1164
    %2442 = vmatpush.msra.mxu0 %v1156
    %2443 = vmatpush.msra.mxu0 %v1148
    %2444 = vmatpush.msra.mxu0 %v1140
    %2445 = vmatpush.msra.mxu0 %v1132
    %2446 = vmatpush.msra.mxu0 %v1124
    %2447 = vmatpush.msra.mxu0 %v1116
    %2448 = vmatpush.msra.mxu0 %v1108
    %2449 = vmatpush.msra.mxu0 %v1100
    %2450 = vmatmul.f32.gmra.mxu0 %v68
    %v2451 = vpop.f32.mrf.mxu0
    %v2452 = vadd.f32 %v2432, %v2451
    %2453 = vdwg.mxu0
    %2454 = vmatpush.msra.mxu0 %v1348
    %2455 = vmatpush.msra.mxu0 %v1340
    %2456 = vmatpush.msra.mxu0 %v1332
    %2457 = vmatpush.msra.mxu0 %v1324
    %2458 = vmatpush.msra.mxu0 %v1316
    %2459 = vmatpush.msra.mxu0 %v1308
    %2460 = vmatpush.msra.mxu0 %v1300
    %2461 = vmatpush.msra.mxu0 %v1292
    %2462 = vmatpush.msra.mxu0 %v1284
    %2463 = vmatpush.msra.mxu0 %v1276
    %2464 = vmatpush.msra.mxu0 %v1268
    %2465 = vmatpush.msra.mxu0 %v1260
    %2466 = vmatpush.msra.mxu0 %v1252
    %2467 = vmatpush.msra.mxu0 %v1244
    %2468 = vmatpush.msra.mxu0 %v1236
    %2469 = vmatpush.msra.mxu0 %v1228
    %2470 = vmatmul.f32.gmra.mxu0 %v69
    %v2471 = vpop.f32.mrf.mxu0
    %v2472 = vadd.f32 %v2452, %v2471
    %2473 = vdwg.mxu0
    %2474 = vmatpush.msra.mxu0 %v1476
    %2475 = vmatpush.msra.mxu0 %v1468
    %2476 = vmatpush.msra.mxu0 %v1460
    %2477 = vmatpush.msra.mxu0 %v1452
    %2478 = vmatpush.msra.mxu0 %v1444
    %2479 = vmatpush.msra.mxu0 %v1436
    %2480 = vmatpush.msra.mxu0 %v1428
    %2481 = vmatpush.msra.mxu0 %v1420
    %2482 = vmatpush.msra.mxu0 %v1412
    %2483 = vmatpush.msra.mxu0 %v1404
    %2484 = vmatpush.msra.mxu0 %v1396
    %2485 = vmatpush.msra.mxu0 %v1388
    %2486 = vmatpush.msra.mxu0 %v1380
    %2487 = vmatpush.msra.mxu0 %v1372
    %2488 = vmatpush.msra.mxu0 %v1364
    %2489 = vmatpush.msra.mxu0 %v1356
    %2490 = vmatmul.f32.gmra.mxu0 %v70
    %v2491 = vpop.f32.mrf.mxu0
    %v2492 = vadd.f32 %v2472, %v2491
    %2493 = vdwg.mxu0
    %2494 = vmatpush.msra.mxu0 %v1604
    %2495 = vmatpush.msra.mxu0 %v1596
    %2496 = vmatpush.msra.mxu0 %v1588
    %2497 = vmatpush.msra.mxu0 %v1580
    %2498 = vmatpush.msra.mxu0 %v1572
    %2499 = vmatpush.msra.mxu0 %v1564
    %2500 = vmatpush.msra.mxu0 %v1556
    %2501 = vmatpush.msra.mxu0 %v1548
    %2502 = vmatpush.msra.mxu0 %v1540
    %2503 = vmatpush.msra.mxu0 %v1532
    %2504 = vmatpush.msra.mxu0 %v1524
    %2505 = vmatpush.msra.mxu0 %v1516
    %2506 = vmatpush.msra.mxu0 %v1508
    %2507 = vmatpush.msra.mxu0 %v1500
    %2508 = vmatpush.msra.mxu0 %v1492
    %2509 = vmatpush.msra.mxu0 %v1484
    %2510 = vmatmul.f32.gmra.mxu0 %v71
    %v2511 = vpop.f32.mrf.mxu0
    %v2512 = vadd.f32 %v2492, %v2511
    %2513 = vdwg.mxu0
    %2514 = vmatpush.msra.mxu0 %v1732
    %2515 = vmatpush.msra.mxu0 %v1724
    %2516 = vmatpush.msra.mxu0 %v1716
    %2517 = vmatpush.msra.mxu0 %v1708
    %2518 = vmatpush.msra.mxu0 %v1700
    %2519 = vmatpush.msra.mxu0 %v1692
    %2520 = vmatpush.msra.mxu0 %v1684
    %2521 = vmatpush.msra.mxu0 %v1676
    %2522 = vmatpush.msra.mxu0 %v1668
    %2523 = vmatpush.msra.mxu0 %v1660
    %2524 = vmatpush.msra.mxu0 %v1652
    %2525 = vmatpush.msra.mxu0 %v1644
    %2526 = vmatpush.msra.mxu0 %v1636
    %2527 = vmatpush.msra.mxu0 %v1628
    %2528 = vmatpush.msra.mxu0 %v1620
    %2529 = vmatpush.msra.mxu0 %v1612
    %2530 = vmatmul.f32.gmra.mxu0 %v72
    %v2531 = vpop.f32.mrf.mxu0
    %v2532 = vadd.f32 %v2512, %v2531
    %2533 = vdwg.mxu0
    %2534 = vmatpush.msra.mxu0 %v1860
    %2535 = vmatpush.msra.mxu0 %v1852
    %2536 = vmatpush.msra.mxu0 %v1844
    %2537 = vmatpush.msra.mxu0 %v1836
    %2538 = vmatpush.msra.mxu0 %v1828
    %2539 = vmatpush.msra.mxu0 %v1820
    %2540 = vmatpush.msra.mxu0 %v1812
    %2541 = vmatpush.msra.mxu0 %v1804
    %2542 = vmatpush.msra.mxu0 %v1796
    %2543 = vmatpush.msra.mxu0 %v1788
    %2544 = vmatpush.msra.mxu0 %v1780
    %2545 = vmatpush.msra.mxu0 %v1772
    %2546 = vmatpush.msra.mxu0 %v1764
    %2547 = vmatpush.msra.mxu0 %v1756
    %2548 = vmatpush.msra.mxu0 %v1748
    %2549 = vmatpush.msra.mxu0 %v1740
    %2550 = vmatmul.f32.gmra.mxu0 %v73
    %v2551 = vpop.f32.mrf.mxu0
    %v2552 = vadd.f32 %v2532, %v2551
    %2553 = vdwg.mxu0
    %2554 = vmatpush.msra.mxu0 %v1988
    %2555 = vmatpush.msra.mxu0 %v1980
    %2556 = vmatpush.msra.mxu0 %v1972
    %2557 = vmatpush.msra.mxu0 %v1964
    %2558 = vmatpush.msra.mxu0 %v1956
    %2559 = vmatpush.msra.mxu0 %v1948
    %2560 = vmatpush.msra.mxu0 %v1940
    %2561 = vmatpush.msra.mxu0 %v1932
    %2562 = vmatpush.msra.mxu0 %v1924
    %2563 = vmatpush.msra.mxu0 %v1916
    %2564 = vmatpush.msra.mxu0 %v1908
    %2565 = vmatpush.msra.mxu0 %v1900
    %2566 = vmatpush.msra.mxu0 %v1892
    %2567 = vmatpush.msra.mxu0 %v1884
    %2568 = vmatpush.msra.mxu0 %v1876
    %2569 = vmatpush.msra.mxu0 %v1868
    %2570 = vmatmul.f32.gmra.mxu0 %v74
    %v2571 = vpop.f32.mrf.mxu0
    %v2572 = vadd.f32 %v2552, %v2571
    %2573 = vdwg.mxu0
    %2574 = vmatpush.msra.mxu0 %v2116
    %2575 = vmatpush.msra.mxu0 %v2108
    %2576 = vmatpush.msra.mxu0 %v2100
    %2577 = vmatpush.msra.mxu0 %v2092
    %2578 = vmatpush.msra.mxu0 %v2084
    %2579 = vmatpush.msra.mxu0 %v2076
    %2580 = vmatpush.msra.mxu0 %v2068
    %2581 = vmatpush.msra.mxu0 %v2060
    %2582 = vmatpush.msra.mxu0 %v2052
    %2583 = vmatpush.msra.mxu0 %v2044
    %2584 = vmatpush.msra.mxu0 %v2036
    %2585 = vmatpush.msra.mxu0 %v2028
    %2586 = vmatpush.msra.mxu0 %v2020
    %2587 = vmatpush.msra.mxu0 %v2012
    %2588 = vmatpush.msra.mxu0 %v2004
    %2589 = vmatpush.msra.mxu0 %v1996
    %2590 = vmatmul.f32.gmra.mxu0 %v75
    %v2591 = vpop.f32.mrf.mxu0
    %v2592 = vadd.f32 %v2572, %v2591
    %2593 = vdwg.mxu0
    %2594 = vmatpush.msra.mxu0 %v197
    %2595 = vmatpush.msra.mxu0 %v189
    %2596 = vmatpush.msra.mxu0 %v181
    %2597 = vmatpush.msra.mxu0 %v173
    %2598 = vmatpush.msra.mxu0 %v165
    %2599 = vmatpush.msra.mxu0 %v157
    %2600 = vmatpush.msra.mxu0 %v149
    %2601 = vmatpush.msra.mxu0 %v141
    %2602 = vmatpush.msra.mxu0 %v133
    %2603 = vmatpush.msra.mxu0 %v125
    %2604 = vmatpush.msra.mxu0 %v117
    %2605 = vmatpush.msra.mxu0 %v109
    %2606 = vmatpush.msra.mxu0 %v101
    %2607 = vmatpush.msra.mxu0 %v93
    %2608 = vmatpush.msra.mxu0 %v85
    %2609 = vmatpush.msra.mxu0 %v77
    %2610 = vmatmul.f32.gmra.mxu0 %v60
    %v2611 = vpop.f32.mrf.mxu0
    %v2612 = vadd.f32 %v2259, %v2611
    %2613 = vdwg.mxu0
    %2614 = vmatpush.msra.mxu0 %v325
    %2615 = vmatpush.msra.mxu0 %v317
    %2616 = vmatpush.msra.mxu0 %v309
    %2617 = vmatpush.msra.mxu0 %v301
    %2618 = vmatpush.msra.mxu0 %v293
    %2619 = vmatpush.msra.mxu0 %v285
    %2620 = vmatpush.msra.mxu0 %v277
    %2621 = vmatpush.msra.mxu0 %v269
    %2622 = vmatpush.msra.mxu0 %v261
    %2623 = vmatpush.msra.mxu0 %v253
    %2624 = vmatpush.msra.mxu0 %v245
    %2625 = vmatpush.msra.mxu0 %v237
    %2626 = vmatpush.msra.mxu0 %v229
    %2627 = vmatpush.msra.mxu0 %v221
    %2628 = vmatpush.msra.mxu0 %v213
    %2629 = vmatpush.msra.mxu0 %v205
    %2630 = vmatmul.f32.gmra.mxu0 %v61
    %v2631 = vpop.f32.mrf.mxu0
    %v2632 = vadd.f32 %v2612, %v2631
    %2633 = vdwg.mxu0
    %2634 = vmatpush.msra.mxu0 %v453
    %2635 = vmatpush.msra.mxu0 %v445
    %2636 = vmatpush.msra.mxu0 %v437
    %2637 = vmatpush.msra.mxu0 %v429
    %2638 = vmatpush.msra.mxu0 %v421
    %2639 = vmatpush.msra.mxu0 %v413
    %2640 = vmatpush.msra.mxu0 %v405
    %2641 = vmatpush.msra.mxu0 %v397
    %2642 = vmatpush.msra.mxu0 %v389
    %2643 = vmatpush.msra.mxu0 %v381
    %2644 = vmatpush.msra.mxu0 %v373
    %2645 = vmatpush.msra.mxu0 %v365
    %2646 = vmatpush.msra.mxu0 %v357
    %2647 = vmatpush.msra.mxu0 %v349
    %2648 = vmatpush.msra.mxu0 %v341
    %2649 = vmatpush.msra.mxu0 %v333
    %2650 = vmatmul.f32.gmra.mxu0 %v62
    %v2651 = vpop.f32.mrf.mxu0
    %v2652 = vadd.f32 %v2632, %v2651
    %2653 = vdwg.mxu0
    %2654 = vmatpush.msra.mxu0 %v581
    %2655 = vmatpush.msra.mxu0 %v573
    %2656 = vmatpush.msra.mxu0 %v565
    %2657 = vmatpush.msra.mxu0 %v557
    %2658 = vmatpush.msra.mxu0 %v549
    %2659 = vmatpush.msra.mxu0 %v541
    %2660 = vmatpush.msra.mxu0 %v533
    %2661 = vmatpush.msra.mxu0 %v525
    %2662 = vmatpush.msra.mxu0 %v517
    %2663 = vmatpush.msra.mxu0 %v509
    %2664 = vmatpush.msra.mxu0 %v501
    %2665 = vmatpush.msra.mxu0 %v493
    %2666 = vmatpush.msra.mxu0 %v485
    %2667 = vmatpush.msra.mxu0 %v477
    %2668 = vmatpush.msra.mxu0 %v469
    %2669 = vmatpush.msra.mxu0 %v461
    %2670 = vmatmul.f32.gmra.mxu0 %v63
    %v2671 = vpop.f32.mrf.mxu0
    %v2672 = vadd.f32 %v2652, %v2671
    %2673 = vdwg.mxu0
    %2674 = vmatpush.msra.mxu0 %v709
    %2675 = vmatpush.msra.mxu0 %v701
    %2676 = vmatpush.msra.mxu0 %v693
    %2677 = vmatpush.msra.mxu0 %v685
    %2678 = vmatpush.msra.mxu0 %v677
    %2679 = vmatpush.msra.mxu0 %v669
    %2680 = vmatpush.msra.mxu0 %v661
    %2681 = vmatpush.msra.mxu0 %v653
    %2682 = vmatpush.msra.mxu0 %v645
    %2683 = vmatpush.msra.mxu0 %v637
    %2684 = vmatpush.msra.mxu0 %v629
    %2685 = vmatpush.msra.mxu0 %v621
    %2686 = vmatpush.msra.mxu0 %v613
    %2687 = vmatpush.msra.mxu0 %v605
    %2688 = vmatpush.msra.mxu0 %v597
    %2689 = vmatpush.msra.mxu0 %v589
    %2690 = vmatmul.f32.gmra.mxu0 %v64
    %v2691 = vpop.f32.mrf.mxu0
    %v2692 = vadd.f32 %v2672, %v2691
    %2693 = vdwg.mxu0
    %2694 = vmatpush.msra.mxu0 %v837
    %2695 = vmatpush.msra.mxu0 %v829
    %2696 = vmatpush.msra.mxu0 %v821
    %2697 = vmatpush.msra.mxu0 %v813
    %2698 = vmatpush.msra.mxu0 %v805
    %2699 = vmatpush.msra.mxu0 %v797
    %2700 = vmatpush.msra.mxu0 %v789
    %2701 = vmatpush.msra.mxu0 %v781
    %2702 = vmatpush.msra.mxu0 %v773
    %2703 = vmatpush.msra.mxu0 %v765
    %2704 = vmatpush.msra.mxu0 %v757
    %2705 = vmatpush.msra.mxu0 %v749
    %2706 = vmatpush.msra.mxu0 %v741
    %2707 = vmatpush.msra.mxu0 %v733
    %2708 = vmatpush.msra.mxu0 %v725
    %2709 = vmatpush.msra.mxu0 %v717
    %2710 = vmatmul.f32.gmra.mxu0 %v65
    %v2711 = vpop.f32.mrf.mxu0
    %v2712 = vadd.f32 %v2692, %v2711
    %2713 = vdwg.mxu0
    %2714 = vmatpush.msra.mxu0 %v965
    %2715 = vmatpush.msra.mxu0 %v957
    %2716 = vmatpush.msra.mxu0 %v949
    %2717 = vmatpush.msra.mxu0 %v941
    %2718 = vmatpush.msra.mxu0 %v933
    %2719 = vmatpush.msra.mxu0 %v925
    %2720 = vmatpush.msra.mxu0 %v917
    %2721 = vmatpush.msra.mxu0 %v909
    %2722 = vmatpush.msra.mxu0 %v901
    %2723 = vmatpush.msra.mxu0 %v893
    %2724 = vmatpush.msra.mxu0 %v885
    %2725 = vmatpush.msra.mxu0 %v877
    %2726 = vmatpush.msra.mxu0 %v869
    %2727 = vmatpush.msra.mxu0 %v861
    %2728 = vmatpush.msra.mxu0 %v853
    %2729 = vmatpush.msra.mxu0 %v845
    %2730 = vmatmul.f32.gmra.mxu0 %v66
    %v2731 = vpop.f32.mrf.mxu0
    %v2732 = vadd.f32 %v2712, %v2731
    %2733 = vdwg.mxu0
    %2734 = vmatpush.msra.mxu0 %v1093
    %2735 = vmatpush.msra.mxu0 %v1085
    %2736 = vmatpush.msra.mxu0 %v1077
    %2737 = vmatpush.msra.mxu0 %v1069
    %2738 = vmatpush.msra.mxu0 %v1061
    %2739 = vmatpush.msra.mxu0 %v1053
    %2740 = vmatpush.msra.mxu0 %v1045
    %2741 = vmatpush.msra.mxu0 %v1037
    %2742 = vmatpush.msra.mxu0 %v1029
    %2743 = vmatpush.msra.mxu0 %v1021
    %2744 = vmatpush.msra.mxu0 %v1013
    %2745 = vmatpush.msra.mxu0 %v1005
    %2746 = vmatpush.msra.mxu0 %v997
    %2747 = vmatpush.msra.mxu0 %v989
    %2748 = vmatpush.msra.mxu0 %v981
    %2749 = vmatpush.msra.mxu0 %v973
    %2750 = vmatmul.f32.gmra.mxu0 %v67
    %v2751 = vpop.f32.mrf.mxu0
    %v2752 = vadd.f32 %v2732, %v2751
    %2753 = vdwg.mxu0
    %2754 = vmatpush.msra.mxu0 %v1221
    %2755 = vmatpush.msra.mxu0 %v1213
    %2756 = vmatpush.msra.mxu0 %v1205
    %2757 = vmatpush.msra.mxu0 %v1197
    %2758 = vmatpush.msra.mxu0 %v1189
    %2759 = vmatpush.msra.mxu0 %v1181
    %2760 = vmatpush.msra.mxu0 %v1173
    %2761 = vmatpush.msra.mxu0 %v1165
    %2762 = vmatpush.msra.mxu0 %v1157
    %2763 = vmatpush.msra.mxu0 %v1149
    %2764 = vmatpush.msra.mxu0 %v1141
    %2765 = vmatpush.msra.mxu0 %v1133
    %2766 = vmatpush.msra.mxu0 %v1125
    %2767 = vmatpush.msra.mxu0 %v1117
    %2768 = vmatpush.msra.mxu0 %v1109
    %2769 = vmatpush.msra.mxu0 %v1101
    %2770 = vmatmul.f32.gmra.mxu0 %v68
    %v2771 = vpop.f32.mrf.mxu0
    %v2772 = vadd.f32 %v2752, %v2771
    %2773 = vdwg.mxu0
    %2774 = vmatpush.msra.mxu0 %v1349
    %2775 = vmatpush.msra.mxu0 %v1341
    %2776 = vmatpush.msra.mxu0 %v1333
    %2777 = vmatpush.msra.mxu0 %v1325
    %2778 = vmatpush.msra.mxu0 %v1317
    %2779 = vmatpush.msra.mxu0 %v1309
    %2780 = vmatpush.msra.mxu0 %v1301
    %2781 = vmatpush.msra.mxu0 %v1293
    %2782 = vmatpush.msra.mxu0 %v1285
    %2783 = vmatpush.msra.mxu0 %v1277
    %2784 = vmatpush.msra.mxu0 %v1269
    %2785 = vmatpush.msra.mxu0 %v1261
    %2786 = vmatpush.msra.mxu0 %v1253
    %2787 = vmatpush.msra.mxu0 %v1245
    %2788 = vmatpush.msra.mxu0 %v1237
    %2789 = vmatpush.msra.mxu0 %v1229
    %2790 = vmatmul.f32.gmra.mxu0 %v69
    %v2791 = vpop.f32.mrf.mxu0
    %v2792 = vadd.f32 %v2772, %v2791
    %2793 = vdwg.mxu0
    %2794 = vmatpush.msra.mxu0 %v1477
    %2795 = vmatpush.msra.mxu0 %v1469
    %2796 = vmatpush.msra.mxu0 %v1461
    %2797 = vmatpush.msra.mxu0 %v1453
    %2798 = vmatpush.msra.mxu0 %v1445
    %2799 = vmatpush.msra.mxu0 %v1437
    %2800 = vmatpush.msra.mxu0 %v1429
    %2801 = vmatpush.msra.mxu0 %v1421
    %2802 = vmatpush.msra.mxu0 %v1413
    %2803 = vmatpush.msra.mxu0 %v1405
    %2804 = vmatpush.msra.mxu0 %v1397
    %2805 = vmatpush.msra.mxu0 %v1389
    %2806 = vmatpush.msra.mxu0 %v1381
    %2807 = vmatpush.msra.mxu0 %v1373
    %2808 = vmatpush.msra.mxu0 %v1365
    %2809 = vmatpush.msra.mxu0 %v1357
    %2810 = vmatmul.f32.gmra.mxu0 %v70
    %v2811 = vpop.f32.mrf.mxu0
    %v2812 = vadd.f32 %v2792, %v2811
    %2813 = vdwg.mxu0
    %2814 = vmatpush.msra.mxu0 %v1605
    %2815 = vmatpush.msra.mxu0 %v1597
    %2816 = vmatpush.msra.mxu0 %v1589
    %2817 = vmatpush.msra.mxu0 %v1581
    %2818 = vmatpush.msra.mxu0 %v1573
    %2819 = vmatpush.msra.mxu0 %v1565
    %2820 = vmatpush.msra.mxu0 %v1557
    %2821 = vmatpush.msra.mxu0 %v1549
    %2822 = vmatpush.msra.mxu0 %v1541
    %2823 = vmatpush.msra.mxu0 %v1533
    %2824 = vmatpush.msra.mxu0 %v1525
    %2825 = vmatpush.msra.mxu0 %v1517
    %2826 = vmatpush.msra.mxu0 %v1509
    %2827 = vmatpush.msra.mxu0 %v1501
    %2828 = vmatpush.msra.mxu0 %v1493
    %2829 = vmatpush.msra.mxu0 %v1485
    %2830 = vmatmul.f32.gmra.mxu0 %v71
    %v2831 = vpop.f32.mrf.mxu0
    %v2832 = vadd.f32 %v2812, %v2831
    %2833 = vdwg.mxu0
    %2834 = vmatpush.msra.mxu0 %v1733
    %2835 = vmatpush.msra.mxu0 %v1725
    %2836 = vmatpush.msra.mxu0 %v1717
    %2837 = vmatpush.msra.mxu0 %v1709
    %2838 = vmatpush.msra.mxu0 %v1701
    %2839 = vmatpush.msra.mxu0 %v1693
    %2840 = vmatpush.msra.mxu0 %v1685
    %2841 = vmatpush.msra.mxu0 %v1677
    %2842 = vmatpush.msra.mxu0 %v1669
    %2843 = vmatpush.msra.mxu0 %v1661
    %2844 = vmatpush.msra.mxu0 %v1653
    %2845 = vmatpush.msra.mxu0 %v1645
    %2846 = vmatpush.msra.mxu0 %v1637
    %2847 = vmatpush.msra.mxu0 %v1629
    %2848 = vmatpush.msra.mxu0 %v1621
    %2849 = vmatpush.msra.mxu0 %v1613
    %2850 = vmatmul.f32.gmra.mxu0 %v72
    %v2851 = vpop.f32.mrf.mxu0
    %v2852 = vadd.f32 %v2832, %v2851
    %2853 = vdwg.mxu0
    %2854 = vmatpush.msra.mxu0 %v1861
    %2855 = vmatpush.msra.mxu0 %v1853
    %2856 = vmatpush.msra.mxu0 %v1845
    %2857 = vmatpush.msra.mxu0 %v1837
    %2858 = vmatpush.msra.mxu0 %v1829
    %2859 = vmatpush.msra.mxu0 %v1821
    %2860 = vmatpush.msra.mxu0 %v1813
    %2861 = vmatpush.msra.mxu0 %v1805
    %2862 = vmatpush.msra.mxu0 %v1797
    %2863 = vmatpush.msra.mxu0 %v1789
    %2864 = vmatpush.msra.mxu0 %v1781
    %2865 = vmatpush.msra.mxu0 %v1773
    %2866 = vmatpush.msra.mxu0 %v1765
    %2867 = vmatpush.msra.mxu0 %v1757
    %2868 = vmatpush.msra.mxu0 %v1749
    %2869 = vmatpush.msra.mxu0 %v1741
    %2870 = vmatmul.f32.gmra.mxu0 %v73
    %v2871 = vpop.f32.mrf.mxu0
    %v2872 = vadd.f32 %v2852, %v2871
    %2873 = vdwg.mxu0
    %2874 = vmatpush.msra.mxu0 %v1989
    %2875 = vmatpush.msra.mxu0 %v1981
    %2876 = vmatpush.msra.mxu0 %v1973
    %2877 = vmatpush.msra.mxu0 %v1965
    %2878 = vmatpush.msra.mxu0 %v1957
    %2879 = vmatpush.msra.mxu0 %v1949
    %2880 = vmatpush.msra.mxu0 %v1941
    %2881 = vmatpush.msra.mxu0 %v1933
    %2882 = vmatpush.msra.mxu0 %v1925
    %2883 = vmatpush.msra.mxu0 %v1917
    %2884 = vmatpush.msra.mxu0 %v1909
    %2885 = vmatpush.msra.mxu0 %v1901
    %2886 = vmatpush.msra.mxu0 %v1893
    %2887 = vmatpush.msra.mxu0 %v1885
    %2888 = vmatpush.msra.mxu0 %v1877
    %2889 = vmatpush.msra.mxu0 %v1869
    %2890 = vmatmul.f32.gmra.mxu0 %v74
    %v2891 = vpop.f32.mrf.mxu0
    %v2892 = vadd.f32 %v2872, %v2891
    %2893 = vdwg.mxu0
    %2894 = vmatpush.msra.mxu0 %v2117
    %2895 = vmatpush.msra.mxu0 %v2109
    %2896 = vmatpush.msra.mxu0 %v2101
    %2897 = vmatpush.msra.mxu0 %v2093
    %2898 = vmatpush.msra.mxu0 %v2085
    %2899 = vmatpush.msra.mxu0 %v2077
    %2900 = vmatpush.msra.mxu0 %v2069
    %2901 = vmatpush.msra.mxu0 %v2061
    %2902 = vmatpush.msra.mxu0 %v2053
    %2903 = vmatpush.msra.mxu0 %v2045
    %2904 = vmatpush.msra.mxu0 %v2037
    %2905 = vmatpush.msra.mxu0 %v2029
    %2906 = vmatpush.msra.mxu0 %v2021
    %2907 = vmatpush.msra.mxu0 %v2013
    %2908 = vmatpush.msra.mxu0 %v2005
    %2909 = vmatpush.msra.mxu0 %v1997
    %2910 = vmatmul.f32.gmra.mxu0 %v75
    %v2911 = vpop.f32.mrf.mxu0
    %v2912 = vadd.f32 %v2892, %v2911
    %2913 = vdwg.mxu0
    %2914 = vmatpush.msra.mxu0 %v198
    %2915 = vmatpush.msra.mxu0 %v190
    %2916 = vmatpush.msra.mxu0 %v182
    %2917 = vmatpush.msra.mxu0 %v174
    %2918 = vmatpush.msra.mxu0 %v166
    %2919 = vmatpush.msra.mxu0 %v158
    %2920 = vmatpush.msra.mxu0 %v150
    %2921 = vmatpush.msra.mxu0 %v142
    %2922 = vmatpush.msra.mxu0 %v134
    %2923 = vmatpush.msra.mxu0 %v126
    %2924 = vmatpush.msra.mxu0 %v118
    %2925 = vmatpush.msra.mxu0 %v110
    %2926 = vmatpush.msra.mxu0 %v102
    %2927 = vmatpush.msra.mxu0 %v94
    %2928 = vmatpush.msra.mxu0 %v86
    %2929 = vmatpush.msra.mxu0 %v78
    %2930 = vmatmul.f32.gmra.mxu0 %v60
    %v2931 = vpop.f32.mrf.mxu0
    %v2932 = vadd.f32 %v2260, %v2931
    %2933 = vdwg.mxu0
    %2934 = vmatpush.msra.mxu0 %v326
    %2935 = vmatpush.msra.mxu0 %v318
    %2936 = vmatpush.msra.mxu0 %v310
    %2937 = vmatpush.msra.mxu0 %v302
    %2938 = vmatpush.msra.mxu0 %v294
    %2939 = vmatpush.msra.mxu0 %v286
    %2940 = vmatpush.msra.mxu0 %v278
    %2941 = vmatpush.msra.mxu0 %v270
    %2942 = vmatpush.msra.mxu0 %v262
    %2943 = vmatpush.msra.mxu0 %v254
    %2944 = vmatpush.msra.mxu0 %v246
    %2945 = vmatpush.msra.mxu0 %v238
    %2946 = vmatpush.msra.mxu0 %v230
    %2947 = vmatpush.msra.mxu0 %v222
    %2948 = vmatpush.msra.mxu0 %v214
    %2949 = vmatpush.msra.mxu0 %v206
    %2950 = vmatmul.f32.gmra.mxu0 %v61
    %v2951 = vpop.f32.mrf.mxu0
    %v2952 = vadd.f32 %v2932, %v2951
    %2953 = vdwg.mxu0
    %2954 = vmatpush.msra.mxu0 %v454
    %2955 = vmatpush.msra.mxu0 %v446
    %2956 = vmatpush.msra.mxu0 %v438
    %2957 = vmatpush.msra.mxu0 %v430
    %2958 = vmatpush.msra.mxu0 %v422
    %2959 = vmatpush.msra.mxu0 %v414
    %2960 = vmatpush.msra.mxu0 %v406
    %2961 = vmatpush.msra.mxu0 %v398
    %2962 = vmatpush.msra.mxu0 %v390
    %2963 = vmatpush.msra.mxu0 %v382
    %2964 = vmatpush.msra.mxu0 %v374
    %2965 = vmatpush.msra.mxu0 %v366
    %2966 = vmatpush.msra.mxu0 %v358
    %2967 = vmatpush.msra.mxu0 %v350
    %2968 = vmatpush.msra.mxu0 %v342
    %2969 = vmatpush.msra.mxu0 %v334
    %2970 = vmatmul.f32.gmra.mxu0 %v62
    %v2971 = vpop.f32.mrf.mxu0
    %v2972 = vadd.f32 %v2952, %v2971
    %2973 = vdwg.mxu0
    %2974 = vmatpush.msra.mxu0 %v582
    %2975 = vmatpush.msra.mxu0 %v574
    %2976 = vmatpush.msra.mxu0 %v566
    %2977 = vmatpush.msra.mxu0 %v558
    %2978 = vmatpush.msra.mxu0 %v550
    %2979 = vmatpush.msra.mxu0 %v542
    %2980 = vmatpush.msra.mxu0 %v534
    %2981 = vmatpush.msra.mxu0 %v526
    %2982 = vmatpush.msra.mxu0 %v518
    %2983 = vmatpush.msra.mxu0 %v510
    %2984 = vmatpush.msra.mxu0 %v502
    %2985 = vmatpush.msra.mxu0 %v494
    %2986 = vmatpush.msra.mxu0 %v486
    %2987 = vmatpush.msra.mxu0 %v478
    %2988 = vmatpush.msra.mxu0 %v470
    %2989 = vmatpush.msra.mxu0 %v462
    %2990 = vmatmul.f32.gmra.mxu0 %v63
    %v2991 = vpop.f32.mrf.mxu0
    %v2992 = vadd.f32 %v2972, %v2991
    %2993 = vdwg.mxu0
    %2994 = vmatpush.msra.mxu0 %v710
    %2995 = vmatpush.msra.mxu0 %v702
    %2996 = vmatpush.msra.mxu0 %v694
    %2997 = vmatpush.msra.mxu0 %v686
    %2998 = vmatpush.msra.mxu0 %v678
    %2999 = vmatpush.msra.mxu0 %v670
    %3000 = vmatpush.msra.mxu0 %v662
    %3001 = vmatpush.msra.mxu0 %v654
    %3002 = vmatpush.msra.mxu0 %v646
    %3003 = vmatpush.msra.mxu0 %v638
    %3004 = vmatpush.msra.mxu0 %v630
    %3005 = vmatpush.msra.mxu0 %v622
    %3006 = vmatpush.msra.mxu0 %v614
    %3007 = vmatpush.msra.mxu0 %v606
    %3008 = vmatpush.msra.mxu0 %v598
    %3009 = vmatpush.msra.mxu0 %v590
    %3010 = vmatmul.f32.gmra.mxu0 %v64
    %v3011 = vpop.f32.mrf.mxu0
    %v3012 = vadd.f32 %v2992, %v3011
    %3013 = vdwg.mxu0
    %3014 = vmatpush.msra.mxu0 %v838
    %3015 = vmatpush.msra.mxu0 %v830
    %3016 = vmatpush.msra.mxu0 %v822
    %3017 = vmatpush.msra.mxu0 %v814
    %3018 = vmatpush.msra.mxu0 %v806
    %3019 = vmatpush.msra.mxu0 %v798
    %3020 = vmatpush.msra.mxu0 %v790
    %3021 = vmatpush.msra.mxu0 %v782
    %3022 = vmatpush.msra.mxu0 %v774
    %3023 = vmatpush.msra.mxu0 %v766
    %3024 = vmatpush.msra.mxu0 %v758
    %3025 = vmatpush.msra.mxu0 %v750
    %3026 = vmatpush.msra.mxu0 %v742
    %3027 = vmatpush.msra.mxu0 %v734
    %3028 = vmatpush.msra.mxu0 %v726
    %3029 = vmatpush.msra.mxu0 %v718
    %3030 = vmatmul.f32.gmra.mxu0 %v65
    %v3031 = vpop.f32.mrf.mxu0
    %v3032 = vadd.f32 %v3012, %v3031
    %3033 = vdwg.mxu0
    %3034 = vmatpush.msra.mxu0 %v966
    %3035 = vmatpush.msra.mxu0 %v958
    %3036 = vmatpush.msra.mxu0 %v950
    %3037 = vmatpush.msra.mxu0 %v942
    %3038 = vmatpush.msra.mxu0 %v934
    %3039 = vmatpush.msra.mxu0 %v926
    %3040 = vmatpush.msra.mxu0 %v918
    %3041 = vmatpush.msra.mxu0 %v910
    %3042 = vmatpush.msra.mxu0 %v902
    %3043 = vmatpush.msra.mxu0 %v894
    %3044 = vmatpush.msra.mxu0 %v886
    %3045 = vmatpush.msra.mxu0 %v878
    %3046 = vmatpush.msra.mxu0 %v870
    %3047 = vmatpush.msra.mxu0 %v862
    %3048 = vmatpush.msra.mxu0 %v854
    %3049 = vmatpush.msra.mxu0 %v846
    %3050 = vmatmul.f32.gmra.mxu0 %v66
    %v3051 = vpop.f32.mrf.mxu0
    %v3052 = vadd.f32 %v3032, %v3051
    %3053 = vdwg.mxu0
    %3054 = vmatpush.msra.mxu0 %v1094
    %3055 = vmatpush.msra.mxu0 %v1086
    %3056 = vmatpush.msra.mxu0 %v1078
    %3057 = vmatpush.msra.mxu0 %v1070
    %3058 = vmatpush.msra.mxu0 %v1062
    %3059 = vmatpush.msra.mxu0 %v1054
    %3060 = vmatpush.msra.mxu0 %v1046
    %3061 = vmatpush.msra.mxu0 %v1038
    %3062 = vmatpush.msra.mxu0 %v1030
    %3063 = vmatpush.msra.mxu0 %v1022
    %3064 = vmatpush.msra.mxu0 %v1014
    %3065 = vmatpush.msra.mxu0 %v1006
    %3066 = vmatpush.msra.mxu0 %v998
    %3067 = vmatpush.msra.mxu0 %v990
    %3068 = vmatpush.msra.mxu0 %v982
    %3069 = vmatpush.msra.mxu0 %v974
    %3070 = vmatmul.f32.gmra.mxu0 %v67
    %v3071 = vpop.f32.mrf.mxu0
    %v3072 = vadd.f32 %v3052, %v3071
    %3073 = vdwg.mxu0
    %3074 = vmatpush.msra.mxu0 %v1222
    %3075 = vmatpush.msra.mxu0 %v1214
    %3076 = vmatpush.msra.mxu0 %v1206
    %3077 = vmatpush.msra.mxu0 %v1198
    %3078 = vmatpush.msra.mxu0 %v1190
    %3079 = vmatpush.msra.mxu0 %v1182
    %3080 = vmatpush.msra.mxu0 %v1174
    %3081 = vmatpush.msra.mxu0 %v1166
    %3082 = vmatpush.msra.mxu0 %v1158
    %3083 = vmatpush.msra.mxu0 %v1150
    %3084 = vmatpush.msra.mxu0 %v1142
    %3085 = vmatpush.msra.mxu0 %v1134
    %3086 = vmatpush.msra.mxu0 %v1126
    %3087 = vmatpush.msra.mxu0 %v1118
    %3088 = vmatpush.msra.mxu0 %v1110
    %3089 = vmatpush.msra.mxu0 %v1102
    %3090 = vmatmul.f32.gmra.mxu0 %v68
    %v3091 = vpop.f32.mrf.mxu0
    %v3092 = vadd.f32 %v3072, %v3091
    %3093 = vdwg.mxu0
    %3094 = vmatpush.msra.mxu0 %v1350
    %3095 = vmatpush.msra.mxu0 %v1342
    %3096 = vmatpush.msra.mxu0 %v1334
    %3097 = vmatpush.msra.mxu0 %v1326
    %3098 = vmatpush.msra.mxu0 %v1318
    %3099 = vmatpush.msra.mxu0 %v1310
    %3100 = vmatpush.msra.mxu0 %v1302
    %3101 = vmatpush.msra.mxu0 %v1294
    %3102 = vmatpush.msra.mxu0 %v1286
    %3103 = vmatpush.msra.mxu0 %v1278
    %3104 = vmatpush.msra.mxu0 %v1270
    %3105 = vmatpush.msra.mxu0 %v1262
    %3106 = vmatpush.msra.mxu0 %v1254
    %3107 = vmatpush.msra.mxu0 %v1246
    %3108 = vmatpush.msra.mxu0 %v1238
    %3109 = vmatpush.msra.mxu0 %v1230
    %3110 = vmatmul.f32.gmra.mxu0 %v69
    %v3111 = vpop.f32.mrf.mxu0
    %v3112 = vadd.f32 %v3092, %v3111
    %3113 = vdwg.mxu0
    %3114 = vmatpush.msra.mxu0 %v1478
    %3115 = vmatpush.msra.mxu0 %v1470
    %3116 = vmatpush.msra.mxu0 %v1462
    %3117 = vmatpush.msra.mxu0 %v1454
    %3118 = vmatpush.msra.mxu0 %v1446
    %3119 = vmatpush.msra.mxu0 %v1438
    %3120 = vmatpush.msra.mxu0 %v1430
    %3121 = vmatpush.msra.mxu0 %v1422
    %3122 = vmatpush.msra.mxu0 %v1414
    %3123 = vmatpush.msra.mxu0 %v1406
    %3124 = vmatpush.msra.mxu0 %v1398
    %3125 = vmatpush.msra.mxu0 %v1390
    %3126 = vmatpush.msra.mxu0 %v1382
    %3127 = vmatpush.msra.mxu0 %v1374
    %3128 = vmatpush.msra.mxu0 %v1366
    %3129 = vmatpush.msra.mxu0 %v1358
    %3130 = vmatmul.f32.gmra.mxu0 %v70
    %v3131 = vpop.f32.mrf.mxu0
    %v3132 = vadd.f32 %v3112, %v3131
    %3133 = vdwg.mxu0
    %3134 = vmatpush.msra.mxu0 %v1606
    %3135 = vmatpush.msra.mxu0 %v1598
    %3136 = vmatpush.msra.mxu0 %v1590
    %3137 = vmatpush.msra.mxu0 %v1582
    %3138 = vmatpush.msra.mxu0 %v1574
    %3139 = vmatpush.msra.mxu0 %v1566
    %3140 = vmatpush.msra.mxu0 %v1558
    %3141 = vmatpush.msra.mxu0 %v1550
    %3142 = vmatpush.msra.mxu0 %v1542
    %3143 = vmatpush.msra.mxu0 %v1534
    %3144 = vmatpush.msra.mxu0 %v1526
    %3145 = vmatpush.msra.mxu0 %v1518
    %3146 = vmatpush.msra.mxu0 %v1510
    %3147 = vmatpush.msra.mxu0 %v1502
    %3148 = vmatpush.msra.mxu0 %v1494
    %3149 = vmatpush.msra.mxu0 %v1486
    %3150 = vmatmul.f32.gmra.mxu0 %v71
    %v3151 = vpop.f32.mrf.mxu0
    %v3152 = vadd.f32 %v3132, %v3151
    %3153 = vdwg.mxu0
    %3154 = vmatpush.msra.mxu0 %v1734
    %3155 = vmatpush.msra.mxu0 %v1726
    %3156 = vmatpush.msra.mxu0 %v1718
    %3157 = vmatpush.msra.mxu0 %v1710
    %3158 = vmatpush.msra.mxu0 %v1702
    %3159 = vmatpush.msra.mxu0 %v1694
    %3160 = vmatpush.msra.mxu0 %v1686
    %3161 = vmatpush.msra.mxu0 %v1678
    %3162 = vmatpush.msra.mxu0 %v1670
    %3163 = vmatpush.msra.mxu0 %v1662
    %3164 = vmatpush.msra.mxu0 %v1654
    %3165 = vmatpush.msra.mxu0 %v1646
    %3166 = vmatpush.msra.mxu0 %v1638
    %3167 = vmatpush.msra.mxu0 %v1630
    %3168 = vmatpush.msra.mxu0 %v1622
    %3169 = vmatpush.msra.mxu0 %v1614
    %3170 = vmatmul.f32.gmra.mxu0 %v72
    %v3171 = vpop.f32.mrf.mxu0
    %v3172 = vadd.f32 %v3152, %v3171
    %3173 = vdwg.mxu0
    %3174 = vmatpush.msra.mxu0 %v1862
    %3175 = vmatpush.msra.mxu0 %v1854
    %3176 = vmatpush.msra.mxu0 %v1846
    %3177 = vmatpush.msra.mxu0 %v1838
    %3178 = vmatpush.msra.mxu0 %v1830
    %3179 = vmatpush.msra.mxu0 %v1822
    %3180 = vmatpush.msra.mxu0 %v1814
    %3181 = vmatpush.msra.mxu0 %v1806
    %3182 = vmatpush.msra.mxu0 %v1798
    %3183 = vmatpush.msra.mxu0 %v1790
    %3184 = vmatpush.msra.mxu0 %v1782
    %3185 = vmatpush.msra.mxu0 %v1774
    %3186 = vmatpush.msra.mxu0 %v1766
    %3187 = vmatpush.msra.mxu0 %v1758
    %3188 = vmatpush.msra.mxu0 %v1750
    %3189 = vmatpush.msra.mxu0 %v1742
    %3190 = vmatmul.f32.gmra.mxu0 %v73
    %v3191 = vpop.f32.mrf.mxu0
    %v3192 = vadd.f32 %v3172, %v3191
    %3193 = vdwg.mxu0
    %3194 = vmatpush.msra.mxu0 %v1990
    %3195 = vmatpush.msra.mxu0 %v1982
    %3196 = vmatpush.msra.mxu0 %v1974
    %3197 = vmatpush.msra.mxu0 %v1966
    %3198 = vmatpush.msra.mxu0 %v1958
    %3199 = vmatpush.msra.mxu0 %v1950
    %3200 = vmatpush.msra.mxu0 %v1942
    %3201 = vmatpush.msra.mxu0 %v1934
    %3202 = vmatpush.msra.mxu0 %v1926
    %3203 = vmatpush.msra.mxu0 %v1918
    %3204 = vmatpush.msra.mxu0 %v1910
    %3205 = vmatpush.msra.mxu0 %v1902
    %3206 = vmatpush.msra.mxu0 %v1894
    %3207 = vmatpush.msra.mxu0 %v1886
    %3208 = vmatpush.msra.mxu0 %v1878
    %3209 = vmatpush.msra.mxu0 %v1870
    %3210 = vmatmul.f32.gmra.mxu0 %v74
    %v3211 = vpop.f32.mrf.mxu0
    %v3212 = vadd.f32 %v3192, %v3211
    %3213 = vdwg.mxu0
    %3214 = vmatpush.msra.mxu0 %v2118
    %3215 = vmatpush.msra.mxu0 %v2110
    %3216 = vmatpush.msra.mxu0 %v2102
    %3217 = vmatpush.msra.mxu0 %v2094
    %3218 = vmatpush.msra.mxu0 %v2086
    %3219 = vmatpush.msra.mxu0 %v2078
    %3220 = vmatpush.msra.mxu0 %v2070
    %3221 = vmatpush.msra.mxu0 %v2062
    %3222 = vmatpush.msra.mxu0 %v2054
    %3223 = vmatpush.msra.mxu0 %v2046
    %3224 = vmatpush.msra.mxu0 %v2038
    %3225 = vmatpush.msra.mxu0 %v2030
    %3226 = vmatpush.msra.mxu0 %v2022
    %3227 = vmatpush.msra.mxu0 %v2014
    %3228 = vmatpush.msra.mxu0 %v2006
    %3229 = vmatpush.msra.mxu0 %v1998
    %3230 = vmatmul.f32.gmra.mxu0 %v75
    %v3231 = vpop.f32.mrf.mxu0
    %v3232 = vadd.f32 %v3212, %v3231
    %3233 = vdwg.mxu0
    %3234 = vmatpush.msra.mxu0 %v199
    %3235 = vmatpush.msra.mxu0 %v191
    %3236 = vmatpush.msra.mxu0 %v183
    %3237 = vmatpush.msra.mxu0 %v175
    %3238 = vmatpush.msra.mxu0 %v167
    %3239 = vmatpush.msra.mxu0 %v159
    %3240 = vmatpush.msra.mxu0 %v151
    %3241 = vmatpush.msra.mxu0 %v143
    %3242 = vmatpush.msra.mxu0 %v135
    %3243 = vmatpush.msra.mxu0 %v127
    %3244 = vmatpush.msra.mxu0 %v119
    %3245 = vmatpush.msra.mxu0 %v111
    %3246 = vmatpush.msra.mxu0 %v103
    %3247 = vmatpush.msra.mxu0 %v95
    %3248 = vmatpush.msra.mxu0 %v87
    %3249 = vmatpush.msra.mxu0 %v79
    %3250 = vmatmul.f32.gmra.mxu0 %v60
    %v3251 = vpop.f32.mrf.mxu0
    %v3252 = vadd.f32 %v2261, %v3251
    %3253 = vdwg.mxu0
    %3254 = vmatpush.msra.mxu0 %v327
    %3255 = vmatpush.msra.mxu0 %v319
    %3256 = vmatpush.msra.mxu0 %v311
    %3257 = vmatpush.msra.mxu0 %v303
    %3258 = vmatpush.msra.mxu0 %v295
    %3259 = vmatpush.msra.mxu0 %v287
    %3260 = vmatpush.msra.mxu0 %v279
    %3261 = vmatpush.msra.mxu0 %v271
    %3262 = vmatpush.msra.mxu0 %v263
    %3263 = vmatpush.msra.mxu0 %v255
    %3264 = vmatpush.msra.mxu0 %v247
    %3265 = vmatpush.msra.mxu0 %v239
    %3266 = vmatpush.msra.mxu0 %v231
    %3267 = vmatpush.msra.mxu0 %v223
    %3268 = vmatpush.msra.mxu0 %v215
    %3269 = vmatpush.msra.mxu0 %v207
    %3270 = vmatmul.f32.gmra.mxu0 %v61
    %v3271 = vpop.f32.mrf.mxu0
    %v3272 = vadd.f32 %v3252, %v3271
    %3273 = vdwg.mxu0
    %3274 = vmatpush.msra.mxu0 %v455
    %3275 = vmatpush.msra.mxu0 %v447
    %3276 = vmatpush.msra.mxu0 %v439
    %3277 = vmatpush.msra.mxu0 %v431
    %3278 = vmatpush.msra.mxu0 %v423
    %3279 = vmatpush.msra.mxu0 %v415
    %3280 = vmatpush.msra.mxu0 %v407
    %3281 = vmatpush.msra.mxu0 %v399
    %3282 = vmatpush.msra.mxu0 %v391
    %3283 = vmatpush.msra.mxu0 %v383
    %3284 = vmatpush.msra.mxu0 %v375
    %3285 = vmatpush.msra.mxu0 %v367
    %3286 = vmatpush.msra.mxu0 %v359
    %3287 = vmatpush.msra.mxu0 %v351
    %3288 = vmatpush.msra.mxu0 %v343
    %3289 = vmatpush.msra.mxu0 %v335
    %3290 = vmatmul.f32.gmra.mxu0 %v62
    %v3291 = vpop.f32.mrf.mxu0
    %v3292 = vadd.f32 %v3272, %v3291
    %3293 = vdwg.mxu0
    %3294 = vmatpush.msra.mxu0 %v583
    %3295 = vmatpush.msra.mxu0 %v575
    %3296 = vmatpush.msra.mxu0 %v567
    %3297 = vmatpush.msra.mxu0 %v559
    %3298 = vmatpush.msra.mxu0 %v551
    %3299 = vmatpush.msra.mxu0 %v543
    %3300 = vmatpush.msra.mxu0 %v535
    %3301 = vmatpush.msra.mxu0 %v527
    %3302 = vmatpush.msra.mxu0 %v519
    %3303 = vmatpush.msra.mxu0 %v511
    %3304 = vmatpush.msra.mxu0 %v503
    %3305 = vmatpush.msra.mxu0 %v495
    %3306 = vmatpush.msra.mxu0 %v487
    %3307 = vmatpush.msra.mxu0 %v479
    %3308 = vmatpush.msra.mxu0 %v471
    %3309 = vmatpush.msra.mxu0 %v463
    %3310 = vmatmul.f32.gmra.mxu0 %v63
    %v3311 = vpop.f32.mrf.mxu0
    %v3312 = vadd.f32 %v3292, %v3311
    %3313 = vdwg.mxu0
    %3314 = vmatpush.msra.mxu0 %v711
    %3315 = vmatpush.msra.mxu0 %v703
    %3316 = vmatpush.msra.mxu0 %v695
    %3317 = vmatpush.msra.mxu0 %v687
    %3318 = vmatpush.msra.mxu0 %v679
    %3319 = vmatpush.msra.mxu0 %v671
    %3320 = vmatpush.msra.mxu0 %v663
    %3321 = vmatpush.msra.mxu0 %v655
    %3322 = vmatpush.msra.mxu0 %v647
    %3323 = vmatpush.msra.mxu0 %v639
    %3324 = vmatpush.msra.mxu0 %v631
    %3325 = vmatpush.msra.mxu0 %v623
    %3326 = vmatpush.msra.mxu0 %v615
    %3327 = vmatpush.msra.mxu0 %v607
    %3328 = vmatpush.msra.mxu0 %v599
    %3329 = vmatpush.msra.mxu0 %v591
    %3330 = vmatmul.f32.gmra.mxu0 %v64
    %v3331 = vpop.f32.mrf.mxu0
    %v3332 = vadd.f32 %v3312, %v3331
    %3333 = vdwg.mxu0
    %3334 = vmatpush.msra.mxu0 %v839
    %3335 = vmatpush.msra.mxu0 %v831
    %3336 = vmatpush.msra.mxu0 %v823
    %3337 = vmatpush.msra.mxu0 %v815
    %3338 = vmatpush.msra.mxu0 %v807
    %3339 = vmatpush.msra.mxu0 %v799
    %3340 = vmatpush.msra.mxu0 %v791
    %3341 = vmatpush.msra.mxu0 %v783
    %3342 = vmatpush.msra.mxu0 %v775
    %3343 = vmatpush.msra.mxu0 %v767
    %3344 = vmatpush.msra.mxu0 %v759
    %3345 = vmatpush.msra.mxu0 %v751
    %3346 = vmatpush.msra.mxu0 %v743
    %3347 = vmatpush.msra.mxu0 %v735
    %3348 = vmatpush.msra.mxu0 %v727
    %3349 = vmatpush.msra.mxu0 %v719
    %3350 = vmatmul.f32.gmra.mxu0 %v65
    %v3351 = vpop.f32.mrf.mxu0
    %v3352 = vadd.f32 %v3332, %v3351
    %3353 = vdwg.mxu0
    %3354 = vmatpush.msra.mxu0 %v967
    %3355 = vmatpush.msra.mxu0 %v959
    %3356 = vmatpush.msra.mxu0 %v951
    %3357 = vmatpush.msra.mxu0 %v943
    %3358 = vmatpush.msra.mxu0 %v935
    %3359 = vmatpush.msra.mxu0 %v927
    %3360 = vmatpush.msra.mxu0 %v919
    %3361 = vmatpush.msra.mxu0 %v911
    %3362 = vmatpush.msra.mxu0 %v903
    %3363 = vmatpush.msra.mxu0 %v895
    %3364 = vmatpush.msra.mxu0 %v887
    %3365 = vmatpush.msra.mxu0 %v879
    %3366 = vmatpush.msra.mxu0 %v871
    %3367 = vmatpush.msra.mxu0 %v863
    %3368 = vmatpush.msra.mxu0 %v855
    %3369 = vmatpush.msra.mxu0 %v847
    %3370 = vmatmul.f32.gmra.mxu0 %v66
    %v3371 = vpop.f32.mrf.mxu0
    %v3372 = vadd.f32 %v3352, %v3371
    %3373 = vdwg.mxu0
    %3374 = vmatpush.msra.mxu0 %v1095
    %3375 = vmatpush.msra.mxu0 %v1087
    %3376 = vmatpush.msra.mxu0 %v1079
    %3377 = vmatpush.msra.mxu0 %v1071
    %3378 = vmatpush.msra.mxu0 %v1063
    %3379 = vmatpush.msra.mxu0 %v1055
    %3380 = vmatpush.msra.mxu0 %v1047
    %3381 = vmatpush.msra.mxu0 %v1039
    %3382 = vmatpush.msra.mxu0 %v1031
    %3383 = vmatpush.msra.mxu0 %v1023
    %3384 = vmatpush.msra.mxu0 %v1015
    %3385 = vmatpush.msra.mxu0 %v1007
    %3386 = vmatpush.msra.mxu0 %v999
    %3387 = vmatpush.msra.mxu0 %v991
    %3388 = vmatpush.msra.mxu0 %v983
    %3389 = vmatpush.msra.mxu0 %v975
    %3390 = vmatmul.f32.gmra.mxu0 %v67
    %v3391 = vpop.f32.mrf.mxu0
    %v3392 = vadd.f32 %v3372, %v3391
    %3393 = vdwg.mxu0
    %3394 = vmatpush.msra.mxu0 %v1223
    %3395 = vmatpush.msra.mxu0 %v1215
    %3396 = vmatpush.msra.mxu0 %v1207
    %3397 = vmatpush.msra.mxu0 %v1199
    %3398 = vmatpush.msra.mxu0 %v1191
    %3399 = vmatpush.msra.mxu0 %v1183
    %3400 = vmatpush.msra.mxu0 %v1175
    %3401 = vmatpush.msra.mxu0 %v1167
    %3402 = vmatpush.msra.mxu0 %v1159
    %3403 = vmatpush.msra.mxu0 %v1151
    %3404 = vmatpush.msra.mxu0 %v1143
    %3405 = vmatpush.msra.mxu0 %v1135
    %3406 = vmatpush.msra.mxu0 %v1127
    %3407 = vmatpush.msra.mxu0 %v1119
    %3408 = vmatpush.msra.mxu0 %v1111
    %3409 = vmatpush.msra.mxu0 %v1103
    %3410 = vmatmul.f32.gmra.mxu0 %v68
    %v3411 = vpop.f32.mrf.mxu0
    %v3412 = vadd.f32 %v3392, %v3411
    %3413 = vdwg.mxu0
    %3414 = vmatpush.msra.mxu0 %v1351
    %3415 = vmatpush.msra.mxu0 %v1343
    %3416 = vmatpush.msra.mxu0 %v1335
    %3417 = vmatpush.msra.mxu0 %v1327
    %3418 = vmatpush.msra.mxu0 %v1319
    %3419 = vmatpush.msra.mxu0 %v1311
    %3420 = vmatpush.msra.mxu0 %v1303
    %3421 = vmatpush.msra.mxu0 %v1295
    %3422 = vmatpush.msra.mxu0 %v1287
    %3423 = vmatpush.msra.mxu0 %v1279
    %3424 = vmatpush.msra.mxu0 %v1271
    %3425 = vmatpush.msra.mxu0 %v1263
    %3426 = vmatpush.msra.mxu0 %v1255
    %3427 = vmatpush.msra.mxu0 %v1247
    %3428 = vmatpush.msra.mxu0 %v1239
    %3429 = vmatpush.msra.mxu0 %v1231
    %3430 = vmatmul.f32.gmra.mxu0 %v69
    %v3431 = vpop.f32.mrf.mxu0
    %v3432 = vadd.f32 %v3412, %v3431
    %3433 = vdwg.mxu0
    %3434 = vmatpush.msra.mxu0 %v1479
    %3435 = vmatpush.msra.mxu0 %v1471
    %3436 = vmatpush.msra.mxu0 %v1463
    %3437 = vmatpush.msra.mxu0 %v1455
    %3438 = vmatpush.msra.mxu0 %v1447
    %3439 = vmatpush.msra.mxu0 %v1439
    %3440 = vmatpush.msra.mxu0 %v1431
    %3441 = vmatpush.msra.mxu0 %v1423
    %3442 = vmatpush.msra.mxu0 %v1415
    %3443 = vmatpush.msra.mxu0 %v1407
    %3444 = vmatpush.msra.mxu0 %v1399
    %3445 = vmatpush.msra.mxu0 %v1391
    %3446 = vmatpush.msra.mxu0 %v1383
    %3447 = vmatpush.msra.mxu0 %v1375
    %3448 = vmatpush.msra.mxu0 %v1367
    %3449 = vmatpush.msra.mxu0 %v1359
    %3450 = vmatmul.f32.gmra.mxu0 %v70
    %v3451 = vpop.f32.mrf.mxu0
    %v3452 = vadd.f32 %v3432, %v3451
    %3453 = vdwg.mxu0
    %3454 = vmatpush.msra.mxu0 %v1607
    %3455 = vmatpush.msra.mxu0 %v1599
    %3456 = vmatpush.msra.mxu0 %v1591
    %3457 = vmatpush.msra.mxu0 %v1583
    %3458 = vmatpush.msra.mxu0 %v1575
    %3459 = vmatpush.msra.mxu0 %v1567
    %3460 = vmatpush.msra.mxu0 %v1559
    %3461 = vmatpush.msra.mxu0 %v1551
    %3462 = vmatpush.msra.mxu0 %v1543
    %3463 = vmatpush.msra.mxu0 %v1535
    %3464 = vmatpush.msra.mxu0 %v1527
    %3465 = vmatpush.msra.mxu0 %v1519
    %3466 = vmatpush.msra.mxu0 %v1511
    %3467 = vmatpush.msra.mxu0 %v1503
    %3468 = vmatpush.msra.mxu0 %v1495
    %3469 = vmatpush.msra.mxu0 %v1487
    %3470 = vmatmul.f32.gmra.mxu0 %v71
    %v3471 = vpop.f32.mrf.mxu0
    %v3472 = vadd.f32 %v3452, %v3471
    %3473 = vdwg.mxu0
    %3474 = vmatpush.msra.mxu0 %v1735
    %3475 = vmatpush.msra.mxu0 %v1727
    %3476 = vmatpush.msra.mxu0 %v1719
    %3477 = vmatpush.msra.mxu0 %v1711
    %3478 = vmatpush.msra.mxu0 %v1703
    %3479 = vmatpush.msra.mxu0 %v1695
    %3480 = vmatpush.msra.mxu0 %v1687
    %3481 = vmatpush.msra.mxu0 %v1679
    %3482 = vmatpush.msra.mxu0 %v1671
    %3483 = vmatpush.msra.mxu0 %v1663
    %3484 = vmatpush.msra.mxu0 %v1655
    %3485 = vmatpush.msra.mxu0 %v1647
    %3486 = vmatpush.msra.mxu0 %v1639
    %3487 = vmatpush.msra.mxu0 %v1631
    %3488 = vmatpush.msra.mxu0 %v1623
    %3489 = vmatpush.msra.mxu0 %v1615
    %3490 = vmatmul.f32.gmra.mxu0 %v72
    %v3491 = vpop.f32.mrf.mxu0
    %v3492 = vadd.f32 %v3472, %v3491
    %3493 = vdwg.mxu0
    %3494 = vmatpush.msra.mxu0 %v1863
    %3495 = vmatpush.msra.mxu0 %v1855
    %3496 = vmatpush.msra.mxu0 %v1847
    %3497 = vmatpush.msra.mxu0 %v1839
    %3498 = vmatpush.msra.mxu0 %v1831
    %3499 = vmatpush.msra.mxu0 %v1823
    %3500 = vmatpush.msra.mxu0 %v1815
    %3501 = vmatpush.msra.mxu0 %v1807
    %3502 = vmatpush.msra.mxu0 %v1799
    %3503 = vmatpush.msra.mxu0 %v1791
    %3504 = vmatpush.msra.mxu0 %v1783
    %3505 = vmatpush.msra.mxu0 %v1775
    %3506 = vmatpush.msra.mxu0 %v1767
    %3507 = vmatpush.msra.mxu0 %v1759
    %3508 = vmatpush.msra.mxu0 %v1751
    %3509 = vmatpush.msra.mxu0 %v1743
    %3510 = vmatmul.f32.gmra.mxu0 %v73
    %v3511 = vpop.f32.mrf.mxu0
    %v3512 = vadd.f32 %v3492, %v3511
    %3513 = vdwg.mxu0
    %3514 = vmatpush.msra.mxu0 %v1991
    %3515 = vmatpush.msra.mxu0 %v1983
    %3516 = vmatpush.msra.mxu0 %v1975
    %3517 = vmatpush.msra.mxu0 %v1967
    %3518 = vmatpush.msra.mxu0 %v1959
    %3519 = vmatpush.msra.mxu0 %v1951
    %3520 = vmatpush.msra.mxu0 %v1943
    %3521 = vmatpush.msra.mxu0 %v1935
    %3522 = vmatpush.msra.mxu0 %v1927
    %3523 = vmatpush.msra.mxu0 %v1919
    %3524 = vmatpush.msra.mxu0 %v1911
    %3525 = vmatpush.msra.mxu0 %v1903
    %3526 = vmatpush.msra.mxu0 %v1895
    %3527 = vmatpush.msra.mxu0 %v1887
    %3528 = vmatpush.msra.mxu0 %v1879
    %3529 = vmatpush.msra.mxu0 %v1871
    %3530 = vmatmul.f32.gmra.mxu0 %v74
    %v3531 = vpop.f32.mrf.mxu0
    %v3532 = vadd.f32 %v3512, %v3531
    %3533 = vdwg.mxu0
    %3534 = vmatpush.msra.mxu0 %v2119
    %3535 = vmatpush.msra.mxu0 %v2111
    %3536 = vmatpush.msra.mxu0 %v2103
    %3537 = vmatpush.msra.mxu0 %v2095
    %3538 = vmatpush.msra.mxu0 %v2087
    %3539 = vmatpush.msra.mxu0 %v2079
    %3540 = vmatpush.msra.mxu0 %v2071
    %3541 = vmatpush.msra.mxu0 %v2063
    %3542 = vmatpush.msra.mxu0 %v2055
    %3543 = vmatpush.msra.mxu0 %v2047
    %3544 = vmatpush.msra.mxu0 %v2039
    %3545 = vmatpush.msra.mxu0 %v2031
    %3546 = vmatpush.msra.mxu0 %v2023
    %3547 = vmatpush.msra.mxu0 %v2015
    %3548 = vmatpush.msra.mxu0 %v2007
    %3549 = vmatpush.msra.mxu0 %v1999
    %3550 = vmatmul.f32.gmra.mxu0 %v75
    %v3551 = vpop.f32.mrf.mxu0
    %v3552 = vadd.f32 %v3532, %v3551
    %3553 = vdwg.mxu0
    %3554 = vmatpush.msra.mxu0 %v200
    %3555 = vmatpush.msra.mxu0 %v192
    %3556 = vmatpush.msra.mxu0 %v184
    %3557 = vmatpush.msra.mxu0 %v176
    %3558 = vmatpush.msra.mxu0 %v168
    %3559 = vmatpush.msra.mxu0 %v160
    %3560 = vmatpush.msra.mxu0 %v152
    %3561 = vmatpush.msra.mxu0 %v144
    %3562 = vmatpush.msra.mxu0 %v136
    %3563 = vmatpush.msra.mxu0 %v128
    %3564 = vmatpush.msra.mxu0 %v120
    %3565 = vmatpush.msra.mxu0 %v112
    %3566 = vmatpush.msra.mxu0 %v104
    %3567 = vmatpush.msra.mxu0 %v96
    %3568 = vmatpush.msra.mxu0 %v88
    %3569 = vmatpush.msra.mxu0 %v80
    %3570 = vmatmul.f32.gmra.mxu0 %v60
    %v3571 = vpop.f32.mrf.mxu0
    %v3572 = vadd.f32 %v2262, %v3571
    %3573 = vdwg.mxu0
    %3574 = vmatpush.msra.mxu0 %v328
    %3575 = vmatpush.msra.mxu0 %v320
    %3576 = vmatpush.msra.mxu0 %v312
    %3577 = vmatpush.msra.mxu0 %v304
    %3578 = vmatpush.msra.mxu0 %v296
    %3579 = vmatpush.msra.mxu0 %v288
    %3580 = vmatpush.msra.mxu0 %v280
    %3581 = vmatpush.msra.mxu0 %v272
    %3582 = vmatpush.msra.mxu0 %v264
    %3583 = vmatpush.msra.mxu0 %v256
    %3584 = vmatpush.msra.mxu0 %v248
    %3585 = vmatpush.msra.mxu0 %v240
    %3586 = vmatpush.msra.mxu0 %v232
    %3587 = vmatpush.msra.mxu0 %v224
    %3588 = vmatpush.msra.mxu0 %v216
    %3589 = vmatpush.msra.mxu0 %v208
    %3590 = vmatmul.f32.gmra.mxu0 %v61
    %v3591 = vpop.f32.mrf.mxu0
    %v3592 = vadd.f32 %v3572, %v3591
    %3593 = vdwg.mxu0
    %3594 = vmatpush.msra.mxu0 %v456
    %3595 = vmatpush.msra.mxu0 %v448
    %3596 = vmatpush.msra.mxu0 %v440
    %3597 = vmatpush.msra.mxu0 %v432
    %3598 = vmatpush.msra.mxu0 %v424
    %3599 = vmatpush.msra.mxu0 %v416
    %3600 = vmatpush.msra.mxu0 %v408
    %3601 = vmatpush.msra.mxu0 %v400
    %3602 = vmatpush.msra.mxu0 %v392
    %3603 = vmatpush.msra.mxu0 %v384
    %3604 = vmatpush.msra.mxu0 %v376
    %3605 = vmatpush.msra.mxu0 %v368
    %3606 = vmatpush.msra.mxu0 %v360
    %3607 = vmatpush.msra.mxu0 %v352
    %3608 = vmatpush.msra.mxu0 %v344
    %3609 = vmatpush.msra.mxu0 %v336
    %3610 = vmatmul.f32.gmra.mxu0 %v62
    %v3611 = vpop.f32.mrf.mxu0
    %v3612 = vadd.f32 %v3592, %v3611
    %3613 = vdwg.mxu0
    %3614 = vmatpush.msra.mxu0 %v584
    %3615 = vmatpush.msra.mxu0 %v576
    %3616 = vmatpush.msra.mxu0 %v568
    %3617 = vmatpush.msra.mxu0 %v560
    %3618 = vmatpush.msra.mxu0 %v552
    %3619 = vmatpush.msra.mxu0 %v544
    %3620 = vmatpush.msra.mxu0 %v536
    %3621 = vmatpush.msra.mxu0 %v528
    %3622 = vmatpush.msra.mxu0 %v520
    %3623 = vmatpush.msra.mxu0 %v512
    %3624 = vmatpush.msra.mxu0 %v504
    %3625 = vmatpush.msra.mxu0 %v496
    %3626 = vmatpush.msra.mxu0 %v488
    %3627 = vmatpush.msra.mxu0 %v480
    %3628 = vmatpush.msra.mxu0 %v472
    %3629 = vmatpush.msra.mxu0 %v464
    %3630 = vmatmul.f32.gmra.mxu0 %v63
    %v3631 = vpop.f32.mrf.mxu0
    %v3632 = vadd.f32 %v3612, %v3631
    %3633 = vdwg.mxu0
    %3634 = vmatpush.msra.mxu0 %v712
    %3635 = vmatpush.msra.mxu0 %v704
    %3636 = vmatpush.msra.mxu0 %v696
    %3637 = vmatpush.msra.mxu0 %v688
    %3638 = vmatpush.msra.mxu0 %v680
    %3639 = vmatpush.msra.mxu0 %v672
    %3640 = vmatpush.msra.mxu0 %v664
    %3641 = vmatpush.msra.mxu0 %v656
    %3642 = vmatpush.msra.mxu0 %v648
    %3643 = vmatpush.msra.mxu0 %v640
    %3644 = vmatpush.msra.mxu0 %v632
    %3645 = vmatpush.msra.mxu0 %v624
    %3646 = vmatpush.msra.mxu0 %v616
    %3647 = vmatpush.msra.mxu0 %v608
    %3648 = vmatpush.msra.mxu0 %v600
    %3649 = vmatpush.msra.mxu0 %v592
    %3650 = vmatmul.f32.gmra.mxu0 %v64
    %v3651 = vpop.f32.mrf.mxu0
    %v3652 = vadd.f32 %v3632, %v3651
    %3653 = vdwg.mxu0
    %3654 = vmatpush.msra.mxu0 %v840
    %3655 = vmatpush.msra.mxu0 %v832
    %3656 = vmatpush.msra.mxu0 %v824
    %3657 = vmatpush.msra.mxu0 %v816
    %3658 = vmatpush.msra.mxu0 %v808
    %3659 = vmatpush.msra.mxu0 %v800
    %3660 = vmatpush.msra.mxu0 %v792
    %3661 = vmatpush.msra.mxu0 %v784
    %3662 = vmatpush.msra.mxu0 %v776
    %3663 = vmatpush.msra.mxu0 %v768
    %3664 = vmatpush.msra.mxu0 %v760
    %3665 = vmatpush.msra.mxu0 %v752
    %3666 = vmatpush.msra.mxu0 %v744
    %3667 = vmatpush.msra.mxu0 %v736
    %3668 = vmatpush.msra.mxu0 %v728
    %3669 = vmatpush.msra.mxu0 %v720
    %3670 = vmatmul.f32.gmra.mxu0 %v65
    %v3671 = vpop.f32.mrf.mxu0
    %v3672 = vadd.f32 %v3652, %v3671
    %3673 = vdwg.mxu0
    %3674 = vmatpush.msra.mxu0 %v968
    %3675 = vmatpush.msra.mxu0 %v960
    %3676 = vmatpush.msra.mxu0 %v952
    %3677 = vmatpush.msra.mxu0 %v944
    %3678 = vmatpush.msra.mxu0 %v936
    %3679 = vmatpush.msra.mxu0 %v928
    %3680 = vmatpush.msra.mxu0 %v920
    %3681 = vmatpush.msra.mxu0 %v912
    %3682 = vmatpush.msra.mxu0 %v904
    %3683 = vmatpush.msra.mxu0 %v896
    %3684 = vmatpush.msra.mxu0 %v888
    %3685 = vmatpush.msra.mxu0 %v880
    %3686 = vmatpush.msra.mxu0 %v872
    %3687 = vmatpush.msra.mxu0 %v864
    %3688 = vmatpush.msra.mxu0 %v856
    %3689 = vmatpush.msra.mxu0 %v848
    %3690 = vmatmul.f32.gmra.mxu0 %v66
    %v3691 = vpop.f32.mrf.mxu0
    %v3692 = vadd.f32 %v3672, %v3691
    %3693 = vdwg.mxu0
    %3694 = vmatpush.msra.mxu0 %v1096
    %3695 = vmatpush.msra.mxu0 %v1088
    %3696 = vmatpush.msra.mxu0 %v1080
    %3697 = vmatpush.msra.mxu0 %v1072
    %3698 = vmatpush.msra.mxu0 %v1064
    %3699 = vmatpush.msra.mxu0 %v1056
    %3700 = vmatpush.msra.mxu0 %v1048
    %3701 = vmatpush.msra.mxu0 %v1040
    %3702 = vmatpush.msra.mxu0 %v1032
    %3703 = vmatpush.msra.mxu0 %v1024
    %3704 = vmatpush.msra.mxu0 %v1016
    %3705 = vmatpush.msra.mxu0 %v1008
    %3706 = vmatpush.msra.mxu0 %v1000
    %3707 = vmatpush.msra.mxu0 %v992
    %3708 = vmatpush.msra.mxu0 %v984
    %3709 = vmatpush.msra.mxu0 %v976
    %3710 = vmatmul.f32.gmra.mxu0 %v67
    %v3711 = vpop.f32.mrf.mxu0
    %v3712 = vadd.f32 %v3692, %v3711
    %3713 = vdwg.mxu0
    %3714 = vmatpush.msra.mxu0 %v1224
    %3715 = vmatpush.msra.mxu0 %v1216
    %3716 = vmatpush.msra.mxu0 %v1208
    %3717 = vmatpush.msra.mxu0 %v1200
    %3718 = vmatpush.msra.mxu0 %v1192
    %3719 = vmatpush.msra.mxu0 %v1184
    %3720 = vmatpush.msra.mxu0 %v1176
    %3721 = vmatpush.msra.mxu0 %v1168
    %3722 = vmatpush.msra.mxu0 %v1160
    %3723 = vmatpush.msra.mxu0 %v1152
    %3724 = vmatpush.msra.mxu0 %v1144
    %3725 = vmatpush.msra.mxu0 %v1136
    %3726 = vmatpush.msra.mxu0 %v1128
    %3727 = vmatpush.msra.mxu0 %v1120
    %3728 = vmatpush.msra.mxu0 %v1112
    %3729 = vmatpush.msra.mxu0 %v1104
    %3730 = vmatmul.f32.gmra.mxu0 %v68
    %v3731 = vpop.f32.mrf.mxu0
    %v3732 = vadd.f32 %v3712, %v3731
    %3733 = vdwg.mxu0
    %3734 = vmatpush.msra.mxu0 %v1352
    %3735 = vmatpush.msra.mxu0 %v1344
    %3736 = vmatpush.msra.mxu0 %v1336
    %3737 = vmatpush.msra.mxu0 %v1328
    %3738 = vmatpush.msra.mxu0 %v1320
    %3739 = vmatpush.msra.mxu0 %v1312
    %3740 = vmatpush.msra.mxu0 %v1304
    %3741 = vmatpush.msra.mxu0 %v1296
    %3742 = vmatpush.msra.mxu0 %v1288
    %3743 = vmatpush.msra.mxu0 %v1280
    %3744 = vmatpush.msra.mxu0 %v1272
    %3745 = vmatpush.msra.mxu0 %v1264
    %3746 = vmatpush.msra.mxu0 %v1256
    %3747 = vmatpush.msra.mxu0 %v1248
    %3748 = vmatpush.msra.mxu0 %v1240
    %3749 = vmatpush.msra.mxu0 %v1232
    %3750 = vmatmul.f32.gmra.mxu0 %v69
    %v3751 = vpop.f32.mrf.mxu0
    %v3752 = vadd.f32 %v3732, %v3751
    %3753 = vdwg.mxu0
    %3754 = vmatpush.msra.mxu0 %v1480
    %3755 = vmatpush.msra.mxu0 %v1472
    %3756 = vmatpush.msra.mxu0 %v1464
    %3757 = vmatpush.msra.mxu0 %v1456
    %3758 = vmatpush.msra.mxu0 %v1448
    %3759 = vmatpush.msra.mxu0 %v1440
    %3760 = vmatpush.msra.mxu0 %v1432
    %3761 = vmatpush.msra.mxu0 %v1424
    %3762 = vmatpush.msra.mxu0 %v1416
    %3763 = vmatpush.msra.mxu0 %v1408
    %3764 = vmatpush.msra.mxu0 %v1400
    %3765 = vmatpush.msra.mxu0 %v1392
    %3766 = vmatpush.msra.mxu0 %v1384
    %3767 = vmatpush.msra.mxu0 %v1376
    %3768 = vmatpush.msra.mxu0 %v1368
    %3769 = vmatpush.msra.mxu0 %v1360
    %3770 = vmatmul.f32.gmra.mxu0 %v70
    %v3771 = vpop.f32.mrf.mxu0
    %v3772 = vadd.f32 %v3752, %v3771
    %3773 = vdwg.mxu0
    %3774 = vmatpush.msra.mxu0 %v1608
    %3775 = vmatpush.msra.mxu0 %v1600
    %3776 = vmatpush.msra.mxu0 %v1592
    %3777 = vmatpush.msra.mxu0 %v1584
    %3778 = vmatpush.msra.mxu0 %v1576
    %3779 = vmatpush.msra.mxu0 %v1568
    %3780 = vmatpush.msra.mxu0 %v1560
    %3781 = vmatpush.msra.mxu0 %v1552
    %3782 = vmatpush.msra.mxu0 %v1544
    %3783 = vmatpush.msra.mxu0 %v1536
    %3784 = vmatpush.msra.mxu0 %v1528
    %3785 = vmatpush.msra.mxu0 %v1520
    %3786 = vmatpush.msra.mxu0 %v1512
    %3787 = vmatpush.msra.mxu0 %v1504
    %3788 = vmatpush.msra.mxu0 %v1496
    %3789 = vmatpush.msra.mxu0 %v1488
    %3790 = vmatmul.f32.gmra.mxu0 %v71
    %v3791 = vpop.f32.mrf.mxu0
    %v3792 = vadd.f32 %v3772, %v3791
    %3793 = vdwg.mxu0
    %3794 = vmatpush.msra.mxu0 %v1736
    %3795 = vmatpush.msra.mxu0 %v1728
    %3796 = vmatpush.msra.mxu0 %v1720
    %3797 = vmatpush.msra.mxu0 %v1712
    %3798 = vmatpush.msra.mxu0 %v1704
    %3799 = vmatpush.msra.mxu0 %v1696
    %3800 = vmatpush.msra.mxu0 %v1688
    %3801 = vmatpush.msra.mxu0 %v1680
    %3802 = vmatpush.msra.mxu0 %v1672
    %3803 = vmatpush.msra.mxu0 %v1664
    %3804 = vmatpush.msra.mxu0 %v1656
    %3805 = vmatpush.msra.mxu0 %v1648
    %3806 = vmatpush.msra.mxu0 %v1640
    %3807 = vmatpush.msra.mxu0 %v1632
    %3808 = vmatpush.msra.mxu0 %v1624
    %3809 = vmatpush.msra.mxu0 %v1616
    %3810 = vmatmul.f32.gmra.mxu0 %v72
    %v3811 = vpop.f32.mrf.mxu0
    %v3812 = vadd.f32 %v3792, %v3811
    %3813 = vdwg.mxu0
    %3814 = vmatpush.msra.mxu0 %v1864
    %3815 = vmatpush.msra.mxu0 %v1856
    %3816 = vmatpush.msra.mxu0 %v1848
    %3817 = vmatpush.msra.mxu0 %v1840
    %3818 = vmatpush.msra.mxu0 %v1832
    %3819 = vmatpush.msra.mxu0 %v1824
    %3820 = vmatpush.msra.mxu0 %v1816
    %3821 = vmatpush.msra.mxu0 %v1808
    %3822 = vmatpush.msra.mxu0 %v1800
    %3823 = vmatpush.msra.mxu0 %v1792
    %3824 = vmatpush.msra.mxu0 %v1784
    %3825 = vmatpush.msra.mxu0 %v1776
    %3826 = vmatpush.msra.mxu0 %v1768
    %3827 = vmatpush.msra.mxu0 %v1760
    %3828 = vmatpush.msra.mxu0 %v1752
    %3829 = vmatpush.msra.mxu0 %v1744
    %3830 = vmatmul.f32.gmra.mxu0 %v73
    %v3831 = vpop.f32.mrf.mxu0
    %v3832 = vadd.f32 %v3812, %v3831
    %3833 = vdwg.mxu0
    %3834 = vmatpush.msra.mxu0 %v1992
    %3835 = vmatpush.msra.mxu0 %v1984
    %3836 = vmatpush.msra.mxu0 %v1976
    %3837 = vmatpush.msra.mxu0 %v1968
    %3838 = vmatpush.msra.mxu0 %v1960
    %3839 = vmatpush.msra.mxu0 %v1952
    %3840 = vmatpush.msra.mxu0 %v1944
    %3841 = vmatpush.msra.mxu0 %v1936
    %3842 = vmatpush.msra.mxu0 %v1928
    %3843 = vmatpush.msra.mxu0 %v1920
    %3844 = vmatpush.msra.mxu0 %v1912
    %3845 = vmatpush.msra.mxu0 %v1904
    %3846 = vmatpush.msra.mxu0 %v1896
    %3847 = vmatpush.msra.mxu0 %v1888
    %3848 = vmatpush.msra.mxu0 %v1880
    %3849 = vmatpush.msra.mxu0 %v1872
    %3850 = vmatmul.f32.gmra.mxu0 %v74
    %v3851 = vpop.f32.mrf.mxu0
    %v3852 = vadd.f32 %v3832, %v3851
    %3853 = vdwg.mxu0
    %3854 = vmatpush.msra.mxu0 %v2120
    %3855 = vmatpush.msra.mxu0 %v2112
    %3856 = vmatpush.msra.mxu0 %v2104
    %3857 = vmatpush.msra.mxu0 %v2096
    %3858 = vmatpush.msra.mxu0 %v2088
    %3859 = vmatpush.msra.mxu0 %v2080
    %3860 = vmatpush.msra.mxu0 %v2072
    %3861 = vmatpush.msra.mxu0 %v2064
    %3862 = vmatpush.msra.mxu0 %v2056
    %3863 = vmatpush.msra.mxu0 %v2048
    %3864 = vmatpush.msra.mxu0 %v2040
    %3865 = vmatpush.msra.mxu0 %v2032
    %3866 = vmatpush.msra.mxu0 %v2024
    %3867 = vmatpush.msra.mxu0 %v2016
    %3868 = vmatpush.msra.mxu0 %v2008
    %3869 = vmatpush.msra.mxu0 %v2000
    %3870 = vmatmul.f32.gmra.mxu0 %v75
    %v3871 = vpop.f32.mrf.mxu0
    %v3872 = vadd.f32 %v3852, %v3871
    %3873 = vdwg.mxu0
    %3874 = vmatpush.msra.mxu0 %v201
    %3875 = vmatpush.msra.mxu0 %v193
    %3876 = vmatpush.msra.mxu0 %v185
    %3877 = vmatpush.msra.mxu0 %v177
    %3878 = vmatpush.msra.mxu0 %v169
    %3879 = vmatpush.msra.mxu0 %v161
    %3880 = vmatpush.msra.mxu0 %v153
    %3881 = vmatpush.msra.mxu0 %v145
    %3882 = vmatpush.msra.mxu0 %v137
    %3883 = vmatpush.msra.mxu0 %v129
    %3884 = vmatpush.msra.mxu0 %v121
    %3885 = vmatpush.msra.mxu0 %v113
    %3886 = vmatpush.msra.mxu0 %v105
    %3887 = vmatpush.msra.mxu0 %v97
    %3888 = vmatpush.msra.mxu0 %v89
    %3889 = vmatpush.msra.mxu0 %v81
    %3890 = vmatmul.f32.gmra.mxu0 %v60
    %v3891 = vpop.f32.mrf.mxu0
    %v3892 = vadd.f32 %v2263, %v3891
    %3893 = vdwg.mxu0
    %3894 = vmatpush.msra.mxu0 %v329
    %3895 = vmatpush.msra.mxu0 %v321
    %3896 = vmatpush.msra.mxu0 %v313
    %3897 = vmatpush.msra.mxu0 %v305
    %3898 = vmatpush.msra.mxu0 %v297
    %3899 = vmatpush.msra.mxu0 %v289
    %3900 = vmatpush.msra.mxu0 %v281
    %3901 = vmatpush.msra.mxu0 %v273
    %3902 = vmatpush.msra.mxu0 %v265
    %3903 = vmatpush.msra.mxu0 %v257
    %3904 = vmatpush.msra.mxu0 %v249
    %3905 = vmatpush.msra.mxu0 %v241
    %3906 = vmatpush.msra.mxu0 %v233
    %3907 = vmatpush.msra.mxu0 %v225
    %3908 = vmatpush.msra.mxu0 %v217
    %3909 = vmatpush.msra.mxu0 %v209
    %3910 = vmatmul.f32.gmra.mxu0 %v61
    %v3911 = vpop.f32.mrf.mxu0
    %v3912 = vadd.f32 %v3892, %v3911
    %3913 = vdwg.mxu0
    %3914 = vmatpush.msra.mxu0 %v457
    %3915 = vmatpush.msra.mxu0 %v449
    %3916 = vmatpush.msra.mxu0 %v441
    %3917 = vmatpush.msra.mxu0 %v433
    %3918 = vmatpush.msra.mxu0 %v425
    %3919 = vmatpush.msra.mxu0 %v417
    %3920 = vmatpush.msra.mxu0 %v409
    %3921 = vmatpush.msra.mxu0 %v401
    %3922 = vmatpush.msra.mxu0 %v393
    %3923 = vmatpush.msra.mxu0 %v385
    %3924 = vmatpush.msra.mxu0 %v377
    %3925 = vmatpush.msra.mxu0 %v369
    %3926 = vmatpush.msra.mxu0 %v361
    %3927 = vmatpush.msra.mxu0 %v353
    %3928 = vmatpush.msra.mxu0 %v345
    %3929 = vmatpush.msra.mxu0 %v337
    %3930 = vmatmul.f32.gmra.mxu0 %v62
    %v3931 = vpop.f32.mrf.mxu0
    %v3932 = vadd.f32 %v3912, %v3931
    %3933 = vdwg.mxu0
    %3934 = vmatpush.msra.mxu0 %v585
    %3935 = vmatpush.msra.mxu0 %v577
    %3936 = vmatpush.msra.mxu0 %v569
    %3937 = vmatpush.msra.mxu0 %v561
    %3938 = vmatpush.msra.mxu0 %v553
    %3939 = vmatpush.msra.mxu0 %v545
    %3940 = vmatpush.msra.mxu0 %v537
    %3941 = vmatpush.msra.mxu0 %v529
    %3942 = vmatpush.msra.mxu0 %v521
    %3943 = vmatpush.msra.mxu0 %v513
    %3944 = vmatpush.msra.mxu0 %v505
    %3945 = vmatpush.msra.mxu0 %v497
    %3946 = vmatpush.msra.mxu0 %v489
    %3947 = vmatpush.msra.mxu0 %v481
    %3948 = vmatpush.msra.mxu0 %v473
    %3949 = vmatpush.msra.mxu0 %v465
    %3950 = vmatmul.f32.gmra.mxu0 %v63
    %v3951 = vpop.f32.mrf.mxu0
    %v3952 = vadd.f32 %v3932, %v3951
    %3953 = vdwg.mxu0
    %3954 = vmatpush.msra.mxu0 %v713
    %3955 = vmatpush.msra.mxu0 %v705
    %3956 = vmatpush.msra.mxu0 %v697
    %3957 = vmatpush.msra.mxu0 %v689
    %3958 = vmatpush.msra.mxu0 %v681
    %3959 = vmatpush.msra.mxu0 %v673
    %3960 = vmatpush.msra.mxu0 %v665
    %3961 = vmatpush.msra.mxu0 %v657
    %3962 = vmatpush.msra.mxu0 %v649
    %3963 = vmatpush.msra.mxu0 %v641
    %3964 = vmatpush.msra.mxu0 %v633
    %3965 = vmatpush.msra.mxu0 %v625
    %3966 = vmatpush.msra.mxu0 %v617
    %3967 = vmatpush.msra.mxu0 %v609
    %3968 = vmatpush.msra.mxu0 %v601
    %3969 = vmatpush.msra.mxu0 %v593
    %3970 = vmatmul.f32.gmra.mxu0 %v64
    %v3971 = vpop.f32.mrf.mxu0
    %v3972 = vadd.f32 %v3952, %v3971
    %3973 = vdwg.mxu0
    %3974 = vmatpush.msra.mxu0 %v841
    %3975 = vmatpush.msra.mxu0 %v833
    %3976 = vmatpush.msra.mxu0 %v825
    %3977 = vmatpush.msra.mxu0 %v817
    %3978 = vmatpush.msra.mxu0 %v809
    %3979 = vmatpush.msra.mxu0 %v801
    %3980 = vmatpush.msra.mxu0 %v793
    %3981 = vmatpush.msra.mxu0 %v785
    %3982 = vmatpush.msra.mxu0 %v777
    %3983 = vmatpush.msra.mxu0 %v769
    %3984 = vmatpush.msra.mxu0 %v761
    %3985 = vmatpush.msra.mxu0 %v753
    %3986 = vmatpush.msra.mxu0 %v745
    %3987 = vmatpush.msra.mxu0 %v737
    %3988 = vmatpush.msra.mxu0 %v729
    %3989 = vmatpush.msra.mxu0 %v721
    %3990 = vmatmul.f32.gmra.mxu0 %v65
    %v3991 = vpop.f32.mrf.mxu0
    %v3992 = vadd.f32 %v3972, %v3991
    %3993 = vdwg.mxu0
    %3994 = vmatpush.msra.mxu0 %v969
    %3995 = vmatpush.msra.mxu0 %v961
    %3996 = vmatpush.msra.mxu0 %v953
    %3997 = vmatpush.msra.mxu0 %v945
    %3998 = vmatpush.msra.mxu0 %v937
    %3999 = vmatpush.msra.mxu0 %v929
    %4000 = vmatpush.msra.mxu0 %v921
    %4001 = vmatpush.msra.mxu0 %v913
    %4002 = vmatpush.msra.mxu0 %v905
    %4003 = vmatpush.msra.mxu0 %v897
    %4004 = vmatpush.msra.mxu0 %v889
    %4005 = vmatpush.msra.mxu0 %v881
    %4006 = vmatpush.msra.mxu0 %v873
    %4007 = vmatpush.msra.mxu0 %v865
    %4008 = vmatpush.msra.mxu0 %v857
    %4009 = vmatpush.msra.mxu0 %v849
    %4010 = vmatmul.f32.gmra.mxu0 %v66
    %v4011 = vpop.f32.mrf.mxu0
    %v4012 = vadd.f32 %v3992, %v4011
    %4013 = vdwg.mxu0
    %4014 = vmatpush.msra.mxu0 %v1097
    %4015 = vmatpush.msra.mxu0 %v1089
    %4016 = vmatpush.msra.mxu0 %v1081
    %4017 = vmatpush.msra.mxu0 %v1073
    %4018 = vmatpush.msra.mxu0 %v1065
    %4019 = vmatpush.msra.mxu0 %v1057
    %4020 = vmatpush.msra.mxu0 %v1049
    %4021 = vmatpush.msra.mxu0 %v1041
    %4022 = vmatpush.msra.mxu0 %v1033
    %4023 = vmatpush.msra.mxu0 %v1025
    %4024 = vmatpush.msra.mxu0 %v1017
    %4025 = vmatpush.msra.mxu0 %v1009
    %4026 = vmatpush.msra.mxu0 %v1001
    %4027 = vmatpush.msra.mxu0 %v993
    %4028 = vmatpush.msra.mxu0 %v985
    %4029 = vmatpush.msra.mxu0 %v977
    %4030 = vmatmul.f32.gmra.mxu0 %v67
    %v4031 = vpop.f32.mrf.mxu0
    %v4032 = vadd.f32 %v4012, %v4031
    %4033 = vdwg.mxu0
    %4034 = vmatpush.msra.mxu0 %v1225
    %4035 = vmatpush.msra.mxu0 %v1217
    %4036 = vmatpush.msra.mxu0 %v1209
    %4037 = vmatpush.msra.mxu0 %v1201
    %4038 = vmatpush.msra.mxu0 %v1193
    %4039 = vmatpush.msra.mxu0 %v1185
    %4040 = vmatpush.msra.mxu0 %v1177
    %4041 = vmatpush.msra.mxu0 %v1169
    %4042 = vmatpush.msra.mxu0 %v1161
    %4043 = vmatpush.msra.mxu0 %v1153
    %4044 = vmatpush.msra.mxu0 %v1145
    %4045 = vmatpush.msra.mxu0 %v1137
    %4046 = vmatpush.msra.mxu0 %v1129
    %4047 = vmatpush.msra.mxu0 %v1121
    %4048 = vmatpush.msra.mxu0 %v1113
    %4049 = vmatpush.msra.mxu0 %v1105
    %4050 = vmatmul.f32.gmra.mxu0 %v68
    %v4051 = vpop.f32.mrf.mxu0
    %v4052 = vadd.f32 %v4032, %v4051
    %4053 = vdwg.mxu0
    %4054 = vmatpush.msra.mxu0 %v1353
    %4055 = vmatpush.msra.mxu0 %v1345
    %4056 = vmatpush.msra.mxu0 %v1337
    %4057 = vmatpush.msra.mxu0 %v1329
    %4058 = vmatpush.msra.mxu0 %v1321
    %4059 = vmatpush.msra.mxu0 %v1313
    %4060 = vmatpush.msra.mxu0 %v1305
    %4061 = vmatpush.msra.mxu0 %v1297
    %4062 = vmatpush.msra.mxu0 %v1289
    %4063 = vmatpush.msra.mxu0 %v1281
    %4064 = vmatpush.msra.mxu0 %v1273
    %4065 = vmatpush.msra.mxu0 %v1265
    %4066 = vmatpush.msra.mxu0 %v1257
    %4067 = vmatpush.msra.mxu0 %v1249
    %4068 = vmatpush.msra.mxu0 %v1241
    %4069 = vmatpush.msra.mxu0 %v1233
    %4070 = vmatmul.f32.gmra.mxu0 %v69
    %v4071 = vpop.f32.mrf.mxu0
    %v4072 = vadd.f32 %v4052, %v4071
    %4073 = vdwg.mxu0
    %4074 = vmatpush.msra.mxu0 %v1481
    %4075 = vmatpush.msra.mxu0 %v1473
    %4076 = vmatpush.msra.mxu0 %v1465
    %4077 = vmatpush.msra.mxu0 %v1457
    %4078 = vmatpush.msra.mxu0 %v1449
    %4079 = vmatpush.msra.mxu0 %v1441
    %4080 = vmatpush.msra.mxu0 %v1433
    %4081 = vmatpush.msra.mxu0 %v1425
    %4082 = vmatpush.msra.mxu0 %v1417
    %4083 = vmatpush.msra.mxu0 %v1409
    %4084 = vmatpush.msra.mxu0 %v1401
    %4085 = vmatpush.msra.mxu0 %v1393
    %4086 = vmatpush.msra.mxu0 %v1385
    %4087 = vmatpush.msra.mxu0 %v1377
    %4088 = vmatpush.msra.mxu0 %v1369
    %4089 = vmatpush.msra.mxu0 %v1361
    %4090 = vmatmul.f32.gmra.mxu0 %v70
    %v4091 = vpop.f32.mrf.mxu0
    %v4092 = vadd.f32 %v4072, %v4091
    %4093 = vdwg.mxu0
    %4094 = vmatpush.msra.mxu0 %v1609
    %4095 = vmatpush.msra.mxu0 %v1601
    %4096 = vmatpush.msra.mxu0 %v1593
    %4097 = vmatpush.msra.mxu0 %v1585
    %4098 = vmatpush.msra.mxu0 %v1577
    %4099 = vmatpush.msra.mxu0 %v1569
    %4100 = vmatpush.msra.mxu0 %v1561
    %4101 = vmatpush.msra.mxu0 %v1553
    %4102 = vmatpush.msra.mxu0 %v1545
    %4103 = vmatpush.msra.mxu0 %v1537
    %4104 = vmatpush.msra.mxu0 %v1529
    %4105 = vmatpush.msra.mxu0 %v1521
    %4106 = vmatpush.msra.mxu0 %v1513
    %4107 = vmatpush.msra.mxu0 %v1505
    %4108 = vmatpush.msra.mxu0 %v1497
    %4109 = vmatpush.msra.mxu0 %v1489
    %4110 = vmatmul.f32.gmra.mxu0 %v71
    %v4111 = vpop.f32.mrf.mxu0
    %v4112 = vadd.f32 %v4092, %v4111
    %4113 = vdwg.mxu0
    %4114 = vmatpush.msra.mxu0 %v1737
    %4115 = vmatpush.msra.mxu0 %v1729
    %4116 = vmatpush.msra.mxu0 %v1721
    %4117 = vmatpush.msra.mxu0 %v1713
    %4118 = vmatpush.msra.mxu0 %v1705
    %4119 = vmatpush.msra.mxu0 %v1697
    %4120 = vmatpush.msra.mxu0 %v1689
    %4121 = vmatpush.msra.mxu0 %v1681
    %4122 = vmatpush.msra.mxu0 %v1673
    %4123 = vmatpush.msra.mxu0 %v1665
    %4124 = vmatpush.msra.mxu0 %v1657
    %4125 = vmatpush.msra.mxu0 %v1649
    %4126 = vmatpush.msra.mxu0 %v1641
    %4127 = vmatpush.msra.mxu0 %v1633
    %4128 = vmatpush.msra.mxu0 %v1625
    %4129 = vmatpush.msra.mxu0 %v1617
    %4130 = vmatmul.f32.gmra.mxu0 %v72
    %v4131 = vpop.f32.mrf.mxu0
    %v4132 = vadd.f32 %v4112, %v4131
    %4133 = vdwg.mxu0
    %4134 = vmatpush.msra.mxu0 %v1865
    %4135 = vmatpush.msra.mxu0 %v1857
    %4136 = vmatpush.msra.mxu0 %v1849
    %4137 = vmatpush.msra.mxu0 %v1841
    %4138 = vmatpush.msra.mxu0 %v1833
    %4139 = vmatpush.msra.mxu0 %v1825
    %4140 = vmatpush.msra.mxu0 %v1817
    %4141 = vmatpush.msra.mxu0 %v1809
    %4142 = vmatpush.msra.mxu0 %v1801
    %4143 = vmatpush.msra.mxu0 %v1793
    %4144 = vmatpush.msra.mxu0 %v1785
    %4145 = vmatpush.msra.mxu0 %v1777
    %4146 = vmatpush.msra.mxu0 %v1769
    %4147 = vmatpush.msra.mxu0 %v1761
    %4148 = vmatpush.msra.mxu0 %v1753
    %4149 = vmatpush.msra.mxu0 %v1745
    %4150 = vmatmul.f32.gmra.mxu0 %v73
    %v4151 = vpop.f32.mrf.mxu0
    %v4152 = vadd.f32 %v4132, %v4151
    %4153 = vdwg.mxu0
    %4154 = vmatpush.msra.mxu0 %v1993
    %4155 = vmatpush.msra.mxu0 %v1985
    %4156 = vmatpush.msra.mxu0 %v1977
    %4157 = vmatpush.msra.mxu0 %v1969
    %4158 = vmatpush.msra.mxu0 %v1961
    %4159 = vmatpush.msra.mxu0 %v1953
    %4160 = vmatpush.msra.mxu0 %v1945
    %4161 = vmatpush.msra.mxu0 %v1937
    %4162 = vmatpush.msra.mxu0 %v1929
    %4163 = vmatpush.msra.mxu0 %v1921
    %4164 = vmatpush.msra.mxu0 %v1913
    %4165 = vmatpush.msra.mxu0 %v1905
    %4166 = vmatpush.msra.mxu0 %v1897
    %4167 = vmatpush.msra.mxu0 %v1889
    %4168 = vmatpush.msra.mxu0 %v1881
    %4169 = vmatpush.msra.mxu0 %v1873
    %4170 = vmatmul.f32.gmra.mxu0 %v74
    %v4171 = vpop.f32.mrf.mxu0
    %v4172 = vadd.f32 %v4152, %v4171
    %4173 = vdwg.mxu0
    %4174 = vmatpush.msra.mxu0 %v2121
    %4175 = vmatpush.msra.mxu0 %v2113
    %4176 = vmatpush.msra.mxu0 %v2105
    %4177 = vmatpush.msra.mxu0 %v2097
    %4178 = vmatpush.msra.mxu0 %v2089
    %4179 = vmatpush.msra.mxu0 %v2081
    %4180 = vmatpush.msra.mxu0 %v2073
    %4181 = vmatpush.msra.mxu0 %v2065
    %4182 = vmatpush.msra.mxu0 %v2057
    %4183 = vmatpush.msra.mxu0 %v2049
    %4184 = vmatpush.msra.mxu0 %v2041
    %4185 = vmatpush.msra.mxu0 %v2033
    %4186 = vmatpush.msra.mxu0 %v2025
    %4187 = vmatpush.msra.mxu0 %v2017
    %4188 = vmatpush.msra.mxu0 %v2009
    %4189 = vmatpush.msra.mxu0 %v2001
    %4190 = vmatmul.f32.gmra.mxu0 %v75
    %v4191 = vpop.f32.mrf.mxu0
    %v4192 = vadd.f32 %v4172, %v4191
    %4193 = vdwg.mxu0
    %4194 = vmatpush.msra.mxu0 %v202
    %4195 = vmatpush.msra.mxu0 %v194
    %4196 = vmatpush.msra.mxu0 %v186
    %4197 = vmatpush.msra.mxu0 %v178
    %4198 = vmatpush.msra.mxu0 %v170
    %4199 = vmatpush.msra.mxu0 %v162
    %4200 = vmatpush.msra.mxu0 %v154
    %4201 = vmatpush.msra.mxu0 %v146
    %4202 = vmatpush.msra.mxu0 %v138
    %4203 = vmatpush.msra.mxu0 %v130
    %4204 = vmatpush.msra.mxu0 %v122
    %4205 = vmatpush.msra.mxu0 %v114
    %4206 = vmatpush.msra.mxu0 %v106
    %4207 = vmatpush.msra.mxu0 %v98
    %4208 = vmatpush.msra.mxu0 %v90
    %4209 = vmatpush.msra.mxu0 %v82
    %4210 = vmatmul.f32.gmra.mxu0 %v60
    %v4211 = vpop.f32.mrf.mxu0
    %v4212 = vadd.f32 %v2264, %v4211
    %4213 = vdwg.mxu0
    %4214 = vmatpush.msra.mxu0 %v330
    %4215 = vmatpush.msra.mxu0 %v322
    %4216 = vmatpush.msra.mxu0 %v314
    %4217 = vmatpush.msra.mxu0 %v306
    %4218 = vmatpush.msra.mxu0 %v298
    %4219 = vmatpush.msra.mxu0 %v290
    %4220 = vmatpush.msra.mxu0 %v282
    %4221 = vmatpush.msra.mxu0 %v274
    %4222 = vmatpush.msra.mxu0 %v266
    %4223 = vmatpush.msra.mxu0 %v258
    %4224 = vmatpush.msra.mxu0 %v250
    %4225 = vmatpush.msra.mxu0 %v242
    %4226 = vmatpush.msra.mxu0 %v234
    %4227 = vmatpush.msra.mxu0 %v226
    %4228 = vmatpush.msra.mxu0 %v218
    %4229 = vmatpush.msra.mxu0 %v210
    %4230 = vmatmul.f32.gmra.mxu0 %v61
    %v4231 = vpop.f32.mrf.mxu0
    %v4232 = vadd.f32 %v4212, %v4231
    %4233 = vdwg.mxu0
    %4234 = vmatpush.msra.mxu0 %v458
    %4235 = vmatpush.msra.mxu0 %v450
    %4236 = vmatpush.msra.mxu0 %v442
    %4237 = vmatpush.msra.mxu0 %v434
    %4238 = vmatpush.msra.mxu0 %v426
    %4239 = vmatpush.msra.mxu0 %v418
    %4240 = vmatpush.msra.mxu0 %v410
    %4241 = vmatpush.msra.mxu0 %v402
    %4242 = vmatpush.msra.mxu0 %v394
    %4243 = vmatpush.msra.mxu0 %v386
    %4244 = vmatpush.msra.mxu0 %v378
    %4245 = vmatpush.msra.mxu0 %v370
    %4246 = vmatpush.msra.mxu0 %v362
    %4247 = vmatpush.msra.mxu0 %v354
    %4248 = vmatpush.msra.mxu0 %v346
    %4249 = vmatpush.msra.mxu0 %v338
    %4250 = vmatmul.f32.gmra.mxu0 %v62
    %v4251 = vpop.f32.mrf.mxu0
    %v4252 = vadd.f32 %v4232, %v4251
    %4253 = vdwg.mxu0
    %4254 = vmatpush.msra.mxu0 %v586
    %4255 = vmatpush.msra.mxu0 %v578
    %4256 = vmatpush.msra.mxu0 %v570
    %4257 = vmatpush.msra.mxu0 %v562
    %4258 = vmatpush.msra.mxu0 %v554
    %4259 = vmatpush.msra.mxu0 %v546
    %4260 = vmatpush.msra.mxu0 %v538
    %4261 = vmatpush.msra.mxu0 %v530
    %4262 = vmatpush.msra.mxu0 %v522
    %4263 = vmatpush.msra.mxu0 %v514
    %4264 = vmatpush.msra.mxu0 %v506
    %4265 = vmatpush.msra.mxu0 %v498
    %4266 = vmatpush.msra.mxu0 %v490
    %4267 = vmatpush.msra.mxu0 %v482
    %4268 = vmatpush.msra.mxu0 %v474
    %4269 = vmatpush.msra.mxu0 %v466
    %4270 = vmatmul.f32.gmra.mxu0 %v63
    %v4271 = vpop.f32.mrf.mxu0
    %v4272 = vadd.f32 %v4252, %v4271
    %4273 = vdwg.mxu0
    %4274 = vmatpush.msra.mxu0 %v714
    %4275 = vmatpush.msra.mxu0 %v706
    %4276 = vmatpush.msra.mxu0 %v698
    %4277 = vmatpush.msra.mxu0 %v690
    %4278 = vmatpush.msra.mxu0 %v682
    %4279 = vmatpush.msra.mxu0 %v674
    %4280 = vmatpush.msra.mxu0 %v666
    %4281 = vmatpush.msra.mxu0 %v658
    %4282 = vmatpush.msra.mxu0 %v650
    %4283 = vmatpush.msra.mxu0 %v642
    %4284 = vmatpush.msra.mxu0 %v634
    %4285 = vmatpush.msra.mxu0 %v626
    %4286 = vmatpush.msra.mxu0 %v618
    %4287 = vmatpush.msra.mxu0 %v610
    %4288 = vmatpush.msra.mxu0 %v602
    %4289 = vmatpush.msra.mxu0 %v594
    %4290 = vmatmul.f32.gmra.mxu0 %v64
    %v4291 = vpop.f32.mrf.mxu0
    %v4292 = vadd.f32 %v4272, %v4291
    %4293 = vdwg.mxu0
    %4294 = vmatpush.msra.mxu0 %v842
    %4295 = vmatpush.msra.mxu0 %v834
    %4296 = vmatpush.msra.mxu0 %v826
    %4297 = vmatpush.msra.mxu0 %v818
    %4298 = vmatpush.msra.mxu0 %v810
    %4299 = vmatpush.msra.mxu0 %v802
    %4300 = vmatpush.msra.mxu0 %v794
    %4301 = vmatpush.msra.mxu0 %v786
    %4302 = vmatpush.msra.mxu0 %v778
    %4303 = vmatpush.msra.mxu0 %v770
    %4304 = vmatpush.msra.mxu0 %v762
    %4305 = vmatpush.msra.mxu0 %v754
    %4306 = vmatpush.msra.mxu0 %v746
    %4307 = vmatpush.msra.mxu0 %v738
    %4308 = vmatpush.msra.mxu0 %v730
    %4309 = vmatpush.msra.mxu0 %v722
    %4310 = vmatmul.f32.gmra.mxu0 %v65
    %v4311 = vpop.f32.mrf.mxu0
    %v4312 = vadd.f32 %v4292, %v4311
    %4313 = vdwg.mxu0
    %4314 = vmatpush.msra.mxu0 %v970
    %4315 = vmatpush.msra.mxu0 %v962
    %4316 = vmatpush.msra.mxu0 %v954
    %4317 = vmatpush.msra.mxu0 %v946
    %4318 = vmatpush.msra.mxu0 %v938
    %4319 = vmatpush.msra.mxu0 %v930
    %4320 = vmatpush.msra.mxu0 %v922
    %4321 = vmatpush.msra.mxu0 %v914
    %4322 = vmatpush.msra.mxu0 %v906
    %4323 = vmatpush.msra.mxu0 %v898
    %4324 = vmatpush.msra.mxu0 %v890
    %4325 = vmatpush.msra.mxu0 %v882
    %4326 = vmatpush.msra.mxu0 %v874
    %4327 = vmatpush.msra.mxu0 %v866
    %4328 = vmatpush.msra.mxu0 %v858
    %4329 = vmatpush.msra.mxu0 %v850
    %4330 = vmatmul.f32.gmra.mxu0 %v66
    %v4331 = vpop.f32.mrf.mxu0
    %v4332 = vadd.f32 %v4312, %v4331
    %4333 = vdwg.mxu0
    %4334 = vmatpush.msra.mxu0 %v1098
    %4335 = vmatpush.msra.mxu0 %v1090
    %4336 = vmatpush.msra.mxu0 %v1082
    %4337 = vmatpush.msra.mxu0 %v1074
    %4338 = vmatpush.msra.mxu0 %v1066
    %4339 = vmatpush.msra.mxu0 %v1058
    %4340 = vmatpush.msra.mxu0 %v1050
    %4341 = vmatpush.msra.mxu0 %v1042
    %4342 = vmatpush.msra.mxu0 %v1034
    %4343 = vmatpush.msra.mxu0 %v1026
    %4344 = vmatpush.msra.mxu0 %v1018
    %4345 = vmatpush.msra.mxu0 %v1010
    %4346 = vmatpush.msra.mxu0 %v1002
    %4347 = vmatpush.msra.mxu0 %v994
    %4348 = vmatpush.msra.mxu0 %v986
    %4349 = vmatpush.msra.mxu0 %v978
    %4350 = vmatmul.f32.gmra.mxu0 %v67
    %v4351 = vpop.f32.mrf.mxu0
    %v4352 = vadd.f32 %v4332, %v4351
    %4353 = vdwg.mxu0
    %4354 = vmatpush.msra.mxu0 %v1226
    %4355 = vmatpush.msra.mxu0 %v1218
    %4356 = vmatpush.msra.mxu0 %v1210
    %4357 = vmatpush.msra.mxu0 %v1202
    %4358 = vmatpush.msra.mxu0 %v1194
    %4359 = vmatpush.msra.mxu0 %v1186
    %4360 = vmatpush.msra.mxu0 %v1178
    %4361 = vmatpush.msra.mxu0 %v1170
    %4362 = vmatpush.msra.mxu0 %v1162
    %4363 = vmatpush.msra.mxu0 %v1154
    %4364 = vmatpush.msra.mxu0 %v1146
    %4365 = vmatpush.msra.mxu0 %v1138
    %4366 = vmatpush.msra.mxu0 %v1130
    %4367 = vmatpush.msra.mxu0 %v1122
    %4368 = vmatpush.msra.mxu0 %v1114
    %4369 = vmatpush.msra.mxu0 %v1106
    %4370 = vmatmul.f32.gmra.mxu0 %v68
    %v4371 = vpop.f32.mrf.mxu0
    %v4372 = vadd.f32 %v4352, %v4371
    %4373 = vdwg.mxu0
    %4374 = vmatpush.msra.mxu0 %v1354
    %4375 = vmatpush.msra.mxu0 %v1346
    %4376 = vmatpush.msra.mxu0 %v1338
    %4377 = vmatpush.msra.mxu0 %v1330
    %4378 = vmatpush.msra.mxu0 %v1322
    %4379 = vmatpush.msra.mxu0 %v1314
    %4380 = vmatpush.msra.mxu0 %v1306
    %4381 = vmatpush.msra.mxu0 %v1298
    %4382 = vmatpush.msra.mxu0 %v1290
    %4383 = vmatpush.msra.mxu0 %v1282
    %4384 = vmatpush.msra.mxu0 %v1274
    %4385 = vmatpush.msra.mxu0 %v1266
    %4386 = vmatpush.msra.mxu0 %v1258
    %4387 = vmatpush.msra.mxu0 %v1250
    %4388 = vmatpush.msra.mxu0 %v1242
    %4389 = vmatpush.msra.mxu0 %v1234
    %4390 = vmatmul.f32.gmra.mxu0 %v69
    %v4391 = vpop.f32.mrf.mxu0
    %v4392 = vadd.f32 %v4372, %v4391
    %4393 = vdwg.mxu0
    %4394 = vmatpush.msra.mxu0 %v1482
    %4395 = vmatpush.msra.mxu0 %v1474
    %4396 = vmatpush.msra.mxu0 %v1466
    %4397 = vmatpush.msra.mxu0 %v1458
    %4398 = vmatpush.msra.mxu0 %v1450
    %4399 = vmatpush.msra.mxu0 %v1442
    %4400 = vmatpush.msra.mxu0 %v1434
    %4401 = vmatpush.msra.mxu0 %v1426
    %4402 = vmatpush.msra.mxu0 %v1418
    %4403 = vmatpush.msra.mxu0 %v1410
    %4404 = vmatpush.msra.mxu0 %v1402
    %4405 = vmatpush.msra.mxu0 %v1394
    %4406 = vmatpush.msra.mxu0 %v1386
    %4407 = vmatpush.msra.mxu0 %v1378
    %4408 = vmatpush.msra.mxu0 %v1370
    %4409 = vmatpush.msra.mxu0 %v1362
    %4410 = vmatmul.f32.gmra.mxu0 %v70
    %v4411 = vpop.f32.mrf.mxu0
    %v4412 = vadd.f32 %v4392, %v4411
    %4413 = vdwg.mxu0
    %4414 = vmatpush.msra.mxu0 %v1610
    %4415 = vmatpush.msra.mxu0 %v1602
    %4416 = vmatpush.msra.mxu0 %v1594
    %4417 = vmatpush.msra.mxu0 %v1586
    %4418 = vmatpush.msra.mxu0 %v1578
    %4419 = vmatpush.msra.mxu0 %v1570
    %4420 = vmatpush.msra.mxu0 %v1562
    %4421 = vmatpush.msra.mxu0 %v1554
    %4422 = vmatpush.msra.mxu0 %v1546
    %4423 = vmatpush.msra.mxu0 %v1538
    %4424 = vmatpush.msra.mxu0 %v1530
    %4425 = vmatpush.msra.mxu0 %v1522
    %4426 = vmatpush.msra.mxu0 %v1514
    %4427 = vmatpush.msra.mxu0 %v1506
    %4428 = vmatpush.msra.mxu0 %v1498
    %4429 = vmatpush.msra.mxu0 %v1490
    %4430 = vmatmul.f32.gmra.mxu0 %v71
    %v4431 = vpop.f32.mrf.mxu0
    %v4432 = vadd.f32 %v4412, %v4431
    %4433 = vdwg.mxu0
    %4434 = vmatpush.msra.mxu0 %v1738
    %4435 = vmatpush.msra.mxu0 %v1730
    %4436 = vmatpush.msra.mxu0 %v1722
    %4437 = vmatpush.msra.mxu0 %v1714
    %4438 = vmatpush.msra.mxu0 %v1706
    %4439 = vmatpush.msra.mxu0 %v1698
    %4440 = vmatpush.msra.mxu0 %v1690
    %4441 = vmatpush.msra.mxu0 %v1682
    %4442 = vmatpush.msra.mxu0 %v1674
    %4443 = vmatpush.msra.mxu0 %v1666
    %4444 = vmatpush.msra.mxu0 %v1658
    %4445 = vmatpush.msra.mxu0 %v1650
    %4446 = vmatpush.msra.mxu0 %v1642
    %4447 = vmatpush.msra.mxu0 %v1634
    %4448 = vmatpush.msra.mxu0 %v1626
    %4449 = vmatpush.msra.mxu0 %v1618
    %4450 = vmatmul.f32.gmra.mxu0 %v72
    %v4451 = vpop.f32.mrf.mxu0
    %v4452 = vadd.f32 %v4432, %v4451
    %4453 = vdwg.mxu0
    %4454 = vmatpush.msra.mxu0 %v1866
    %4455 = vmatpush.msra.mxu0 %v1858
    %4456 = vmatpush.msra.mxu0 %v1850
    %4457 = vmatpush.msra.mxu0 %v1842
    %4458 = vmatpush.msra.mxu0 %v1834
    %4459 = vmatpush.msra.mxu0 %v1826
    %4460 = vmatpush.msra.mxu0 %v1818
    %4461 = vmatpush.msra.mxu0 %v1810
    %4462 = vmatpush.msra.mxu0 %v1802
    %4463 = vmatpush.msra.mxu0 %v1794
    %4464 = vmatpush.msra.mxu0 %v1786
    %4465 = vmatpush.msra.mxu0 %v1778
    %4466 = vmatpush.msra.mxu0 %v1770
    %4467 = vmatpush.msra.mxu0 %v1762
    %4468 = vmatpush.msra.mxu0 %v1754
    %4469 = vmatpush.msra.mxu0 %v1746
    %4470 = vmatmul.f32.gmra.mxu0 %v73
    %v4471 = vpop.f32.mrf.mxu0
    %v4472 = vadd.f32 %v4452, %v4471
    %4473 = vdwg.mxu0
    %4474 = vmatpush.msra.mxu0 %v1994
    %4475 = vmatpush.msra.mxu0 %v1986
    %4476 = vmatpush.msra.mxu0 %v1978
    %4477 = vmatpush.msra.mxu0 %v1970
    %4478 = vmatpush.msra.mxu0 %v1962
    %4479 = vmatpush.msra.mxu0 %v1954
    %4480 = vmatpush.msra.mxu0 %v1946
    %4481 = vmatpush.msra.mxu0 %v1938
    %4482 = vmatpush.msra.mxu0 %v1930
    %4483 = vmatpush.msra.mxu0 %v1922
    %4484 = vmatpush.msra.mxu0 %v1914
    %4485 = vmatpush.msra.mxu0 %v1906
    %4486 = vmatpush.msra.mxu0 %v1898
    %4487 = vmatpush.msra.mxu0 %v1890
    %4488 = vmatpush.msra.mxu0 %v1882
    %4489 = vmatpush.msra.mxu0 %v1874
    %4490 = vmatmul.f32.gmra.mxu0 %v74
    %v4491 = vpop.f32.mrf.mxu0
    %v4492 = vadd.f32 %v4472, %v4491
    %4493 = vdwg.mxu0
    %4494 = vmatpush.msra.mxu0 %v2122
    %4495 = vmatpush.msra.mxu0 %v2114
    %4496 = vmatpush.msra.mxu0 %v2106
    %4497 = vmatpush.msra.mxu0 %v2098
    %4498 = vmatpush.msra.mxu0 %v2090
    %4499 = vmatpush.msra.mxu0 %v2082
    %4500 = vmatpush.msra.mxu0 %v2074
    %4501 = vmatpush.msra.mxu0 %v2066
    %4502 = vmatpush.msra.mxu0 %v2058
    %4503 = vmatpush.msra.mxu0 %v2050
    %4504 = vmatpush.msra.mxu0 %v2042
    %4505 = vmatpush.msra.mxu0 %v2034
    %4506 = vmatpush.msra.mxu0 %v2026
    %4507 = vmatpush.msra.mxu0 %v2018
    %4508 = vmatpush.msra.mxu0 %v2010
    %4509 = vmatpush.msra.mxu0 %v2002
    %4510 = vmatmul.f32.gmra.mxu0 %v75
    %v4511 = vpop.f32.mrf.mxu0
    %v4512 = vadd.f32 %v4492, %v4511
    %4513 = vdwg.mxu0
    %4514 = vmatpush.msra.mxu0 %v203
    %4515 = vmatpush.msra.mxu0 %v195
    %4516 = vmatpush.msra.mxu0 %v187
    %4517 = vmatpush.msra.mxu0 %v179
    %4518 = vmatpush.msra.mxu0 %v171
    %4519 = vmatpush.msra.mxu0 %v163
    %4520 = vmatpush.msra.mxu0 %v155
    %4521 = vmatpush.msra.mxu0 %v147
    %4522 = vmatpush.msra.mxu0 %v139
    %4523 = vmatpush.msra.mxu0 %v131
    %4524 = vmatpush.msra.mxu0 %v123
    %4525 = vmatpush.msra.mxu0 %v115
    %4526 = vmatpush.msra.mxu0 %v107
    %4527 = vmatpush.msra.mxu0 %v99
    %4528 = vmatpush.msra.mxu0 %v91
    %4529 = vmatpush.msra.mxu0 %v83
    %4530 = vmatmul.f32.gmra.mxu0 %v60
    %v4531 = vpop.f32.mrf.mxu0
    %v4532 = vadd.f32 %v2265, %v4531
    %4533 = vdwg.mxu0
    %4534 = vmatpush.msra.mxu0 %v331
    %4535 = vmatpush.msra.mxu0 %v323
    %4536 = vmatpush.msra.mxu0 %v315
    %4537 = vmatpush.msra.mxu0 %v307
    %4538 = vmatpush.msra.mxu0 %v299
    %4539 = vmatpush.msra.mxu0 %v291
    %4540 = vmatpush.msra.mxu0 %v283
    %4541 = vmatpush.msra.mxu0 %v275
    %4542 = vmatpush.msra.mxu0 %v267
    %4543 = vmatpush.msra.mxu0 %v259
    %4544 = vmatpush.msra.mxu0 %v251
    %4545 = vmatpush.msra.mxu0 %v243
    %4546 = vmatpush.msra.mxu0 %v235
    %4547 = vmatpush.msra.mxu0 %v227
    %4548 = vmatpush.msra.mxu0 %v219
    %4549 = vmatpush.msra.mxu0 %v211
    %4550 = vmatmul.f32.gmra.mxu0 %v61
    %v4551 = vpop.f32.mrf.mxu0
    %v4552 = vadd.f32 %v4532, %v4551
    %4553 = vdwg.mxu0
    %4554 = vmatpush.msra.mxu0 %v459
    %4555 = vmatpush.msra.mxu0 %v451
    %4556 = vmatpush.msra.mxu0 %v443
    %4557 = vmatpush.msra.mxu0 %v435
    %4558 = vmatpush.msra.mxu0 %v427
    %4559 = vmatpush.msra.mxu0 %v419
    %4560 = vmatpush.msra.mxu0 %v411
    %4561 = vmatpush.msra.mxu0 %v403
    %4562 = vmatpush.msra.mxu0 %v395
    %4563 = vmatpush.msra.mxu0 %v387
    %4564 = vmatpush.msra.mxu0 %v379
    %4565 = vmatpush.msra.mxu0 %v371
    %4566 = vmatpush.msra.mxu0 %v363
    %4567 = vmatpush.msra.mxu0 %v355
    %4568 = vmatpush.msra.mxu0 %v347
    %4569 = vmatpush.msra.mxu0 %v339
    %4570 = vmatmul.f32.gmra.mxu0 %v62
    %v4571 = vpop.f32.mrf.mxu0
    %v4572 = vadd.f32 %v4552, %v4571
    %4573 = vdwg.mxu0
    %4574 = vmatpush.msra.mxu0 %v587
    %4575 = vmatpush.msra.mxu0 %v579
    %4576 = vmatpush.msra.mxu0 %v571
    %4577 = vmatpush.msra.mxu0 %v563
    %4578 = vmatpush.msra.mxu0 %v555
    %4579 = vmatpush.msra.mxu0 %v547
    %4580 = vmatpush.msra.mxu0 %v539
    %4581 = vmatpush.msra.mxu0 %v531
    %4582 = vmatpush.msra.mxu0 %v523
    %4583 = vmatpush.msra.mxu0 %v515
    %4584 = vmatpush.msra.mxu0 %v507
    %4585 = vmatpush.msra.mxu0 %v499
    %4586 = vmatpush.msra.mxu0 %v491
    %4587 = vmatpush.msra.mxu0 %v483
    %4588 = vmatpush.msra.mxu0 %v475
    %4589 = vmatpush.msra.mxu0 %v467
    %4590 = vmatmul.f32.gmra.mxu0 %v63
    %v4591 = vpop.f32.mrf.mxu0
    %v4592 = vadd.f32 %v4572, %v4591
    %4593 = vdwg.mxu0
    %4594 = vmatpush.msra.mxu0 %v715
    %4595 = vmatpush.msra.mxu0 %v707
    %4596 = vmatpush.msra.mxu0 %v699
    %4597 = vmatpush.msra.mxu0 %v691
    %4598 = vmatpush.msra.mxu0 %v683
    %4599 = vmatpush.msra.mxu0 %v675
    %4600 = vmatpush.msra.mxu0 %v667
    %4601 = vmatpush.msra.mxu0 %v659
    %4602 = vmatpush.msra.mxu0 %v651
    %4603 = vmatpush.msra.mxu0 %v643
    %4604 = vmatpush.msra.mxu0 %v635
    %4605 = vmatpush.msra.mxu0 %v627
    %4606 = vmatpush.msra.mxu0 %v619
    %4607 = vmatpush.msra.mxu0 %v611
    %4608 = vmatpush.msra.mxu0 %v603
    %4609 = vmatpush.msra.mxu0 %v595
    %4610 = vmatmul.f32.gmra.mxu0 %v64
    %v4611 = vpop.f32.mrf.mxu0
    %v4612 = vadd.f32 %v4592, %v4611
    %4613 = vdwg.mxu0
    %4614 = vmatpush.msra.mxu0 %v843
    %4615 = vmatpush.msra.mxu0 %v835
    %4616 = vmatpush.msra.mxu0 %v827
    %4617 = vmatpush.msra.mxu0 %v819
    %4618 = vmatpush.msra.mxu0 %v811
    %4619 = vmatpush.msra.mxu0 %v803
    %4620 = vmatpush.msra.mxu0 %v795
    %4621 = vmatpush.msra.mxu0 %v787
    %4622 = vmatpush.msra.mxu0 %v779
    %4623 = vmatpush.msra.mxu0 %v771
    %4624 = vmatpush.msra.mxu0 %v763
    %4625 = vmatpush.msra.mxu0 %v755
    %4626 = vmatpush.msra.mxu0 %v747
    %4627 = vmatpush.msra.mxu0 %v739
    %4628 = vmatpush.msra.mxu0 %v731
    %4629 = vmatpush.msra.mxu0 %v723
    %4630 = vmatmul.f32.gmra.mxu0 %v65
    %v4631 = vpop.f32.mrf.mxu0
    %v4632 = vadd.f32 %v4612, %v4631
    %4633 = vdwg.mxu0
    %4634 = vmatpush.msra.mxu0 %v971
    %4635 = vmatpush.msra.mxu0 %v963
    %4636 = vmatpush.msra.mxu0 %v955
    %4637 = vmatpush.msra.mxu0 %v947
    %4638 = vmatpush.msra.mxu0 %v939
    %4639 = vmatpush.msra.mxu0 %v931
    %4640 = vmatpush.msra.mxu0 %v923
    %4641 = vmatpush.msra.mxu0 %v915
    %4642 = vmatpush.msra.mxu0 %v907
    %4643 = vmatpush.msra.mxu0 %v899
    %4644 = vmatpush.msra.mxu0 %v891
    %4645 = vmatpush.msra.mxu0 %v883
    %4646 = vmatpush.msra.mxu0 %v875
    %4647 = vmatpush.msra.mxu0 %v867
    %4648 = vmatpush.msra.mxu0 %v859
    %4649 = vmatpush.msra.mxu0 %v851
    %4650 = vmatmul.f32.gmra.mxu0 %v66
    %v4651 = vpop.f32.mrf.mxu0
    %v4652 = vadd.f32 %v4632, %v4651
    %4653 = vdwg.mxu0
    %4654 = vmatpush.msra.mxu0 %v1099
    %4655 = vmatpush.msra.mxu0 %v1091
    %4656 = vmatpush.msra.mxu0 %v1083
    %4657 = vmatpush.msra.mxu0 %v1075
    %4658 = vmatpush.msra.mxu0 %v1067
    %4659 = vmatpush.msra.mxu0 %v1059
    %4660 = vmatpush.msra.mxu0 %v1051
    %4661 = vmatpush.msra.mxu0 %v1043
    %4662 = vmatpush.msra.mxu0 %v1035
    %4663 = vmatpush.msra.mxu0 %v1027
    %4664 = vmatpush.msra.mxu0 %v1019
    %4665 = vmatpush.msra.mxu0 %v1011
    %4666 = vmatpush.msra.mxu0 %v1003
    %4667 = vmatpush.msra.mxu0 %v995
    %4668 = vmatpush.msra.mxu0 %v987
    %4669 = vmatpush.msra.mxu0 %v979
    %4670 = vmatmul.f32.gmra.mxu0 %v67
    %v4671 = vpop.f32.mrf.mxu0
    %v4672 = vadd.f32 %v4652, %v4671
    %4673 = vdwg.mxu0
    %4674 = vmatpush.msra.mxu0 %v1227
    %4675 = vmatpush.msra.mxu0 %v1219
    %4676 = vmatpush.msra.mxu0 %v1211
    %4677 = vmatpush.msra.mxu0 %v1203
    %4678 = vmatpush.msra.mxu0 %v1195
    %4679 = vmatpush.msra.mxu0 %v1187
    %4680 = vmatpush.msra.mxu0 %v1179
    %4681 = vmatpush.msra.mxu0 %v1171
    %4682 = vmatpush.msra.mxu0 %v1163
    %4683 = vmatpush.msra.mxu0 %v1155
    %4684 = vmatpush.msra.mxu0 %v1147
    %4685 = vmatpush.msra.mxu0 %v1139
    %4686 = vmatpush.msra.mxu0 %v1131
    %4687 = vmatpush.msra.mxu0 %v1123
    %4688 = vmatpush.msra.mxu0 %v1115
    %4689 = vmatpush.msra.mxu0 %v1107
    %4690 = vmatmul.f32.gmra.mxu0 %v68
    %v4691 = vpop.f32.mrf.mxu0
    %v4692 = vadd.f32 %v4672, %v4691
    %4693 = vdwg.mxu0
    %4694 = vmatpush.msra.mxu0 %v1355
    %4695 = vmatpush.msra.mxu0 %v1347
    %4696 = vmatpush.msra.mxu0 %v1339
    %4697 = vmatpush.msra.mxu0 %v1331
    %4698 = vmatpush.msra.mxu0 %v1323
    %4699 = vmatpush.msra.mxu0 %v1315
    %4700 = vmatpush.msra.mxu0 %v1307
    %4701 = vmatpush.msra.mxu0 %v1299
    %4702 = vmatpush.msra.mxu0 %v1291
    %4703 = vmatpush.msra.mxu0 %v1283
    %4704 = vmatpush.msra.mxu0 %v1275
    %4705 = vmatpush.msra.mxu0 %v1267
    %4706 = vmatpush.msra.mxu0 %v1259
    %4707 = vmatpush.msra.mxu0 %v1251
    %4708 = vmatpush.msra.mxu0 %v1243
    %4709 = vmatpush.msra.mxu0 %v1235
    %4710 = vmatmul.f32.gmra.mxu0 %v69
    %v4711 = vpop.f32.mrf.mxu0
    %v4712 = vadd.f32 %v4692, %v4711
    %4713 = vdwg.mxu0
    %4714 = vmatpush.msra.mxu0 %v1483
    %4715 = vmatpush.msra.mxu0 %v1475
    %4716 = vmatpush.msra.mxu0 %v1467
    %4717 = vmatpush.msra.mxu0 %v1459
    %4718 = vmatpush.msra.mxu0 %v1451
    %4719 = vmatpush.msra.mxu0 %v1443
    %4720 = vmatpush.msra.mxu0 %v1435
    %4721 = vmatpush.msra.mxu0 %v1427
    %4722 = vmatpush.msra.mxu0 %v1419
    %4723 = vmatpush.msra.mxu0 %v1411
    %4724 = vmatpush.msra.mxu0 %v1403
    %4725 = vmatpush.msra.mxu0 %v1395
    %4726 = vmatpush.msra.mxu0 %v1387
    %4727 = vmatpush.msra.mxu0 %v1379
    %4728 = vmatpush.msra.mxu0 %v1371
    %4729 = vmatpush.msra.mxu0 %v1363
    %4730 = vmatmul.f32.gmra.mxu0 %v70
    %v4731 = vpop.f32.mrf.mxu0
    %v4732 = vadd.f32 %v4712, %v4731
    %4733 = vdwg.mxu0
    %4734 = vmatpush.msra.mxu0 %v1611
    %4735 = vmatpush.msra.mxu0 %v1603
    %4736 = vmatpush.msra.mxu0 %v1595
    %4737 = vmatpush.msra.mxu0 %v1587
    %4738 = vmatpush.msra.mxu0 %v1579
    %4739 = vmatpush.msra.mxu0 %v1571
    %4740 = vmatpush.msra.mxu0 %v1563
    %4741 = vmatpush.msra.mxu0 %v1555
    %4742 = vmatpush.msra.mxu0 %v1547
    %4743 = vmatpush.msra.mxu0 %v1539
    %4744 = vmatpush.msra.mxu0 %v1531
    %4745 = vmatpush.msra.mxu0 %v1523
    %4746 = vmatpush.msra.mxu0 %v1515
    %4747 = vmatpush.msra.mxu0 %v1507
    %4748 = vmatpush.msra.mxu0 %v1499
    %4749 = vmatpush.msra.mxu0 %v1491
    %4750 = vmatmul.f32.gmra.mxu0 %v71
    %v4751 = vpop.f32.mrf.mxu0
    %v4752 = vadd.f32 %v4732, %v4751
    %4753 = vdwg.mxu0
    %4754 = vmatpush.msra.mxu0 %v1739
    %4755 = vmatpush.msra.mxu0 %v1731
    %4756 = vmatpush.msra.mxu0 %v1723
    %4757 = vmatpush.msra.mxu0 %v1715
    %4758 = vmatpush.msra.mxu0 %v1707
    %4759 = vmatpush.msra.mxu0 %v1699
    %4760 = vmatpush.msra.mxu0 %v1691
    %4761 = vmatpush.msra.mxu0 %v1683
    %4762 = vmatpush.msra.mxu0 %v1675
    %4763 = vmatpush.msra.mxu0 %v1667
    %4764 = vmatpush.msra.mxu0 %v1659
    %4765 = vmatpush.msra.mxu0 %v1651
    %4766 = vmatpush.msra.mxu0 %v1643
    %4767 = vmatpush.msra.mxu0 %v1635
    %4768 = vmatpush.msra.mxu0 %v1627
    %4769 = vmatpush.msra.mxu0 %v1619
    %4770 = vmatmul.f32.gmra.mxu0 %v72
    %v4771 = vpop.f32.mrf.mxu0
    %v4772 = vadd.f32 %v4752, %v4771
    %4773 = vdwg.mxu0
    %4774 = vmatpush.msra.mxu0 %v1867
    %4775 = vmatpush.msra.mxu0 %v1859
    %4776 = vmatpush.msra.mxu0 %v1851
    %4777 = vmatpush.msra.mxu0 %v1843
    %4778 = vmatpush.msra.mxu0 %v1835
    %4779 = vmatpush.msra.mxu0 %v1827
    %4780 = vmatpush.msra.mxu0 %v1819
    %4781 = vmatpush.msra.mxu0 %v1811
    %4782 = vmatpush.msra.mxu0 %v1803
    %4783 = vmatpush.msra.mxu0 %v1795
    %4784 = vmatpush.msra.mxu0 %v1787
    %4785 = vmatpush.msra.mxu0 %v1779
    %4786 = vmatpush.msra.mxu0 %v1771
    %4787 = vmatpush.msra.mxu0 %v1763
    %4788 = vmatpush.msra.mxu0 %v1755
    %4789 = vmatpush.msra.mxu0 %v1747
    %4790 = vmatmul.f32.gmra.mxu0 %v73
    %v4791 = vpop.f32.mrf.mxu0
    %v4792 = vadd.f32 %v4772, %v4791
    %4793 = vdwg.mxu0
    %4794 = vmatpush.msra.mxu0 %v1995
    %4795 = vmatpush.msra.mxu0 %v1987
    %4796 = vmatpush.msra.mxu0 %v1979
    %4797 = vmatpush.msra.mxu0 %v1971
    %4798 = vmatpush.msra.mxu0 %v1963
    %4799 = vmatpush.msra.mxu0 %v1955
    %4800 = vmatpush.msra.mxu0 %v1947
    %4801 = vmatpush.msra.mxu0 %v1939
    %4802 = vmatpush.msra.mxu0 %v1931
    %4803 = vmatpush.msra.mxu0 %v1923
    %4804 = vmatpush.msra.mxu0 %v1915
    %4805 = vmatpush.msra.mxu0 %v1907
    %4806 = vmatpush.msra.mxu0 %v1899
    %4807 = vmatpush.msra.mxu0 %v1891
    %4808 = vmatpush.msra.mxu0 %v1883
    %4809 = vmatpush.msra.mxu0 %v1875
    %4810 = vmatmul.f32.gmra.mxu0 %v74
    %v4811 = vpop.f32.mrf.mxu0
    %v4812 = vadd.f32 %v4792, %v4811
    %4813 = vdwg.mxu0
    %4814 = vmatpush.msra.mxu0 %v2123
    %4815 = vmatpush.msra.mxu0 %v2115
    %4816 = vmatpush.msra.mxu0 %v2107
    %4817 = vmatpush.msra.mxu0 %v2099
    %4818 = vmatpush.msra.mxu0 %v2091
    %4819 = vmatpush.msra.mxu0 %v2083
    %4820 = vmatpush.msra.mxu0 %v2075
    %4821 = vmatpush.msra.mxu0 %v2067
    %4822 = vmatpush.msra.mxu0 %v2059
    %4823 = vmatpush.msra.mxu0 %v2051
    %4824 = vmatpush.msra.mxu0 %v2043
    %4825 = vmatpush.msra.mxu0 %v2035
    %4826 = vmatpush.msra.mxu0 %v2027
    %4827 = vmatpush.msra.mxu0 %v2019
    %4828 = vmatpush.msra.mxu0 %v2011
    %4829 = vmatpush.msra.mxu0 %v2003
    %4830 = vmatmul.f32.gmra.mxu0 %v75
    %v4831 = vpop.f32.mrf.mxu0
    %v4832 = vadd.f32 %v4812, %v4831
    %4833 = vdwg.mxu0
    %v4834 = vmax.f32 %v2592, 0.0
    %v4835 = vmax.f32 %v2912, 0.0
    %v4836 = vmax.f32 %v3232, 0.0
    %v4837 = vmax.f32 %v3552, 0.0
    %v4838 = vmax.f32 %v3872, 0.0
    %v4839 = vmax.f32 %v4192, 0.0
    %v4840 = vmax.f32 %v4512, 0.0
    %v4841 = vmax.f32 %v4832, 0.0
    %v4842 = vperm.slane %v2256, 0
    %4843 = vmatpush.msra.mxu0 %v2143
    %4844 = vmatpush.msra.mxu0 %v2142
    %4845 = vmatpush.msra.mxu0 %v2141
    %4846 = vmatpush.msra.mxu0 %v2140
    %4847 = vmatpush.msra.mxu0 %v2139
    %4848 = vmatpush.msra.mxu0 %v2138
    %4849 = vmatpush.msra.mxu0 %v2137
    %4850 = vmatpush.msra.mxu0 %v2136
    %4851 = vmatpush.msra.mxu0 %v2135
    %4852 = vmatpush.msra.mxu0 %v2134
    %4853 = vmatpush.msra.mxu0 %v2133
    %4854 = vmatpush.msra.mxu0 %v2132
    %4855 = vmatpush.msra.mxu0 %v2131
    %4856 = vmatpush.msra.mxu0 %v2130
    %4857 = vmatpush.msra.mxu0 %v2129
    %4858 = vmatpush.msra.mxu0 %v2128
    %4859 = vmatmul.f32.gmra.mxu0 %v4834
    %v4860 = vpop.f32.mrf.mxu0
    %v4861 = vadd.f32 %v4842, %v4860
    %4862 = vdwg.mxu0
    %4863 = vmatpush.msra.mxu0 %v2159
    %4864 = vmatpush.msra.mxu0 %v2158
    %4865 = vmatpush.msra.mxu0 %v2157
    %4866 = vmatpush.msra.mxu0 %v2156
    %4867 = vmatpush.msra.mxu0 %v2155
    %4868 = vmatpush.msra.mxu0 %v2154
    %4869 = vmatpush.msra.mxu0 %v2153
    %4870 = vmatpush.msra.mxu0 %v2152
    %4871 = vmatpush.msra.mxu0 %v2151
    %4872 = vmatpush.msra.mxu0 %v2150
    %4873 = vmatpush.msra.mxu0 %v2149
    %4874 = vmatpush.msra.mxu0 %v2148
    %4875 = vmatpush.msra.mxu0 %v2147
    %4876 = vmatpush.msra.mxu0 %v2146
    %4877 = vmatpush.msra.mxu0 %v2145
    %4878 = vmatpush.msra.mxu0 %v2144
    %4879 = vmatmul.f32.gmra.mxu0 %v4835
    %v4880 = vpop.f32.mrf.mxu0
    %v4881 = vadd.f32 %v4861, %v4880
    %4882 = vdwg.mxu0
    %4883 = vmatpush.msra.mxu0 %v2175
    %4884 = vmatpush.msra.mxu0 %v2174
    %4885 = vmatpush.msra.mxu0 %v2173
    %4886 = vmatpush.msra.mxu0 %v2172
    %4887 = vmatpush.msra.mxu0 %v2171
    %4888 = vmatpush.msra.mxu0 %v2170
    %4889 = vmatpush.msra.mxu0 %v2169
    %4890 = vmatpush.msra.mxu0 %v2168
    %4891 = vmatpush.msra.mxu0 %v2167
    %4892 = vmatpush.msra.mxu0 %v2166
    %4893 = vmatpush.msra.mxu0 %v2165
    %4894 = vmatpush.msra.mxu0 %v2164
    %4895 = vmatpush.msra.mxu0 %v2163
    %4896 = vmatpush.msra.mxu0 %v2162
    %4897 = vmatpush.msra.mxu0 %v2161
    %4898 = vmatpush.msra.mxu0 %v2160
    %4899 = vmatmul.f32.gmra.mxu0 %v4836
    %v4900 = vpop.f32.mrf.mxu0
    %v4901 = vadd.f32 %v4881, %v4900
    %4902 = vdwg.mxu0
    %4903 = vmatpush.msra.mxu0 %v2191
    %4904 = vmatpush.msra.mxu0 %v2190
    %4905 = vmatpush.msra.mxu0 %v2189
    %4906 = vmatpush.msra.mxu0 %v2188
    %4907 = vmatpush.msra.mxu0 %v2187
    %4908 = vmatpush.msra.mxu0 %v2186
    %4909 = vmatpush.msra.mxu0 %v2185
    %4910 = vmatpush.msra.mxu0 %v2184
    %4911 = vmatpush.msra.mxu0 %v2183
    %4912 = vmatpush.msra.mxu0 %v2182
    %4913 = vmatpush.msra.mxu0 %v2181
    %4914 = vmatpush.msra.mxu0 %v2180
    %4915 = vmatpush.msra.mxu0 %v2179
    %4916 = vmatpush.msra.mxu0 %v2178
    %4917 = vmatpush.msra.mxu0 %v2177
    %4918 = vmatpush.msra.mxu0 %v2176
    %4919 = vmatmul.f32.gmra.mxu0 %v4837
    %v4920 = vpop.f32.mrf.mxu0
    %v4921 = vadd.f32 %v4901, %v4920
    %4922 = vdwg.mxu0
    %4923 = vmatpush.msra.mxu0 %v2207
    %4924 = vmatpush.msra.mxu0 %v2206
    %4925 = vmatpush.msra.mxu0 %v2205
    %4926 = vmatpush.msra.mxu0 %v2204
    %4927 = vmatpush.msra.mxu0 %v2203
    %4928 = vmatpush.msra.mxu0 %v2202
    %4929 = vmatpush.msra.mxu0 %v2201
    %4930 = vmatpush.msra.mxu0 %v2200
    %4931 = vmatpush.msra.mxu0 %v2199
    %4932 = vmatpush.msra.mxu0 %v2198
    %4933 = vmatpush.msra.mxu0 %v2197
    %4934 = vmatpush.msra.mxu0 %v2196
    %4935 = vmatpush.msra.mxu0 %v2195
    %4936 = vmatpush.msra.mxu0 %v2194
    %4937 = vmatpush.msra.mxu0 %v2193
    %4938 = vmatpush.msra.mxu0 %v2192
    %4939 = vmatmul.f32.gmra.mxu0 %v4838
    %v4940 = vpop.f32.mrf.mxu0
    %v4941 = vadd.f32 %v4921, %v4940
    %4942 = vdwg.mxu0
    %4943 = vmatpush.msra.mxu0 %v2223
    %4944 = vmatpush.msra.mxu0 %v2222
    %4945 = vmatpush.msra.mxu0 %v2221
    %4946 = vmatpush.msra.mxu0 %v2220
    %4947 = vmatpush.msra.mxu0 %v2219
    %4948 = vmatpush.msra.mxu0 %v2218
    %4949 = vmatpush.msra.mxu0 %v2217
    %4950 = vmatpush.msra.mxu0 %v2216
    %4951 = vmatpush.msra.mxu0 %v2215
    %4952 = vmatpush.msra.mxu0 %v2214
    %4953 = vmatpush.msra.mxu0 %v2213
    %4954 = vmatpush.msra.mxu0 %v2212
    %4955 = vmatpush.msra.mxu0 %v2211
    %4956 = vmatpush.msra.mxu0 %v2210
    %4957 = vmatpush.msra.mxu0 %v2209
    %4958 = vmatpush.msra.mxu0 %v2208
    %4959 = vmatmul.f32.gmra.mxu0 %v4839
    %v4960 = vpop.f32.mrf.mxu0
    %v4961 = vadd.f32 %v4941, %v4960
    %4962 = vdwg.mxu0
    %4963 = vmatpush.msra.mxu0 %v2239
    %4964 = vmatpush.msra.mxu0 %v2238
    %4965 = vmatpush.msra.mxu0 %v2237
    %4966 = vmatpush.msra.mxu0 %v2236
    %4967 = vmatpush.msra.mxu0 %v2235
    %4968 = vmatpush.msra.mxu0 %v2234
    %4969 = vmatpush.msra.mxu0 %v2233
    %4970 = vmatpush.msra.mxu0 %v2232
    %4971 = vmatpush.msra.mxu0 %v2231
    %4972 = vmatpush.msra.mxu0 %v2230
    %4973 = vmatpush.msra.mxu0 %v2229
    %4974 = vmatpush.msra.mxu0 %v2228
    %4975 = vmatpush.msra.mxu0 %v2227
    %4976 = vmatpush.msra.mxu0 %v2226
    %4977 = vmatpush.msra.mxu0 %v2225
    %4978 = vmatpush.msra.mxu0 %v2224
    %4979 = vmatmul.f32.gmra.mxu0 %v4840
    %v4980 = vpop.f32.mrf.mxu0
    %v4981 = vadd.f32 %v4961, %v4980
    %4982 = vdwg.mxu0
    %4983 = vmatpush.msra.mxu0 %v2255
    %4984 = vmatpush.msra.mxu0 %v2254
    %4985 = vmatpush.msra.mxu0 %v2253
    %4986 = vmatpush.msra.mxu0 %v2252
    %4987 = vmatpush.msra.mxu0 %v2251
    %4988 = vmatpush.msra.mxu0 %v2250
    %4989 = vmatpush.msra.mxu0 %v2249
    %4990 = vmatpush.msra.mxu0 %v2248
    %4991 = vmatpush.msra.mxu0 %v2247
    %4992 = vmatpush.msra.mxu0 %v2246
    %4993 = vmatpush.msra.mxu0 %v2245
    %4994 = vmatpush.msra.mxu0 %v2244
    %4995 = vmatpush.msra.mxu0 %v2243
    %4996 = vmatpush.msra.mxu0 %v2242
    %4997 = vmatpush.msra.mxu0 %v2241
    %4998 = vmatpush.msra.mxu0 %v2240
    %4999 = vmatmul.f32.gmra.mxu0 %v4841
    %v5000 = vpop.f32.mrf.mxu0
    %v5001 = vadd.f32 %v4981, %v5000
    %5002 = vdwg.mxu0
    %v5003 = vlaneseq
    %v5004 = vand.u32 %v5003, 127
    %vm5005 = vcmp.lt.s32.totalorder %v5004, 6
    %v5006 = vsel %vm5005, %v5001, -inf
    %5007 = vmax.xlane.f32.xlu0 %v5006
    %v5008 = vpop.xlane.xlu0 %5007
    %v5009 = vsub.f32 %v5006, %v5008
    %v5010 = vmul.f32 %v5009, 1.442695
    %v5011 = vpow.pop %v5010
    %5012 = vadd.xlane.f32.xlu0 %v5011
    %v5013 = vpop.xlane.xlu0 %5012
    %v5014 = vrcp.pop %v5013
    %v5015 = vmul.f32 %v5013, %v5014
    %v5016 = vsub.f32 1.0, %v5015
    %v5017 = vmul.f32 %v5014, %v5016
    %v5018 = vadd.f32 %v5014, %v5017
    %vm5019 = vweird.f32 %v5013
    %vm5020 = vweird.f32 %v5014
    %vm5021 = vmor %vm5019, %vm5020
    %v5022 = vsel %vm5021, %v5014, %v5018
    %v5023 = vand.u32 2147483647, %v5013
    %vm5024 = vcmp.eq.f32.partialorder %v5023, 8.507059e+37
    %v5025 = vand.u32 %v5013, 2147483648
    %v5026 = vor.u32 1.1754944e-38, %v5025
    %v5027 = vsel %vm5024, %v5026, %v5022
    %v5028 = vmul.f32 %v5011, %v5027
    %vm5029 = vcmp.eq.s32.totalorder %v5004, 6
    %v5030 = vsel %vm5029, %v5001, 0.0
    %v5031 = vsel %vm5005, %v5028, %v5030
    %5032 = vst [vmem:[#allocation8] sm:$0xff] %v5031
    // Predicated region
    $region26: #{tpu_custom_call.1} parent=1 // pred_check
      _
    $region27: #{tpu_custom_call.1} parent=1 // pred_check_branch
      %5034 = sbr.rel (0) target = $region29
    $region28: #{tpu_custom_call.1} parent=1 // pred_region
      %5036 = vsyncadd [#allocation4], 0
      %s5038 = sshll.u32 [#allocation8], 4
      %s5039 = int_to_ptr.vmem [resolvable:$true] %s5038
      %s5040 = sshll.u32 %s3, 4
      %s5041 = int_to_ptr.hbm [resolvable:$true] %s5040
      %5043 = dma.vmem_to_hbm [thread:$0]  %s5039, 128, %s5041, [#allocation4]
    $region29: #{tpu_custom_call.1} parent=1 // pred_fallthru
      _
    // Predicated region
    $region30: #{tpu_custom_call.1} parent=1 // pred_check
      _
    $region31: #{tpu_custom_call.1} parent=1 // pred_check_branch
      %5045 = sbr.rel (0) target = $region33
    $region32: #{tpu_custom_call.1} parent=1 // pred_region
      %5047 = dma.done [#allocation4], 128
    $region33: #{tpu_custom_call.1} parent=1 // pred_fallthru
      _
    %5048 = vsyncpa [#allocation3], 1
    %5049 = vsyncpa [#allocation6], 1
    %5050 = vsyncpa [#allocation4], 1

</llo_original>
